<compile_context>
chip_gen: v7x
topology: tpu7x:2x2x1
jax: 0.10.0
libtpu: 0.0.40
codegen_flags: <defaults>
</compile_context>

<pallas_src>
import jax
import jax.numpy as jnp
from jax.experimental import pallas as pl
from jax.experimental.pallas import tpu as pltpu

BN_EPS = 1e-5
POOL = 4          # MaxPool1d kernel/stride used by every pooling stage


def _vmem():
    # Whole-array block resident in VMEM (the entire net is tiny).
    return pl.BlockSpec(memory_space=pltpu.MemorySpace.VMEM)


# ---------------------------------------------------------------------------
# In-kernel building blocks (traced inline inside the single fused kernel)
# ---------------------------------------------------------------------------
def _bn_relu(y, g_ref, be_ref):
    """Training-mode BatchNorm1d over all (batch*time) rows of y, fused with ReLU.

    y : (M, C) f32 value (batch already folded into the rows).
    g_ref / be_ref : (1, C) BatchNorm affine parameters.
    """
    cnt = float(y.shape[0])
    s1 = jnp.sum(y, axis=0, keepdims=True)
    s2 = jnp.sum(y * y, axis=0, keepdims=True)
    mean = s1 / cnt
    var = jnp.maximum(s2 / cnt - mean * mean, 0.0)        # single-pass E[y^2] - m^2
    scale = g_ref[...] * jax.lax.rsqrt(var + BN_EPS)      # rsqrt -> EUP slot
    shift = be_ref[...] - mean * scale
    return jnp.maximum(y * scale + shift, 0.0)            # BN + ReLU as one FMA + max


def _pool4(z_ref, base, lp):
    """MaxPool1d(4), floor mode, over rows [base, base+4*lp) of a 2-D f32 VMEM ref."""
    p = z_ref[pl.ds(base, lp, stride=POOL), :]
    for j in range(1, POOL):
        p = jnp.maximum(p, z_ref[pl.ds(base + j, lp, stride=POOL), :])
    return p


def _build_patch(q_ref, p_ref, taps, l_out):
    """im2col for a k=`taps`, stride=1 conv: copy the shifted windows of every batch
    element side-by-side into the shared bf16 patch scratch so the whole conv becomes
    ONE (B*l_out, taps*C_in) x (taps*C_in, C_out) matmul (batch folded into M, taps
    folded into K)."""
    b_n, _, c_in = q_ref.shape
    for b in range(b_n):
        for t in range(taps):
            p_ref[pl.ds(b * l_out, l_out), pl.ds(t * c_in, c_in)] = \
                q_ref[b, pl.ds(t, l_out), :]
    return p_ref[pl.ds(0, b_n * l_out), pl.ds(0, taps * c_in)]


# ---------------------------------------------------------------------------
# The fused kernel: whole AudioCNN forward, everything VMEM-resident
# ---------------------------------------------------------------------------
def _audio_cnn_kernel(xf_ref,
                      w1_ref, g1_ref, be1_ref,
                      w2_ref, g2_ref, be2_ref,
                      w3_ref, g3_ref, be3_ref,
                      w4_ref, g4_ref, be4_ref,
                      wfc_ref, bfc_ref,
                      feat_ref, lsm_ref,
                      z1_ref, q1_ref, p_ref, z2_ref, q2_ref, z3_ref, q3_ref, z4_ref):
    B = q1_ref.shape[0]

    # ---- Stage 1: conv1 (im2col done in the wrapper) as ONE MXU matmul + BN/ReLU/pool
    l1 = z1_ref.shape[0] // B
    lp1 = q1_ref.shape[1]
    y1 = jnp.dot(xf_ref[...], w1_ref[...], preferred_element_type=jnp.float32)
    z1_ref[...] = _bn_relu(y1, g1_ref, be1_ref)
    for b in range(B):
        q1_ref[b, :, :] = _pool4(z1_ref, b * l1, lp1).astype(q1_ref.dtype)

    # ---- Stages 2-4: k=3 convs; one matmul each (batch in M, taps in K) ----------
    def conv_stage(q_in_ref, w_ref, g_ref, be_ref, z_ref):
        c_in = q_in_ref.shape[2]
        taps = w_ref.shape[0] // c_in
        l_out = z_ref.shape[0] // B
        lhs = _build_patch(q_in_ref, p_ref, taps, l_out)            # bf16 im2col
        y = jnp.dot(lhs, w_ref[...], preferred_element_type=jnp.float32)
        z_ref[...] = _bn_relu(y, g_ref, be_ref)
        return l_out

    l2 = conv_stage(q1_ref, w2_ref, g2_ref, be2_ref, z2_ref)
    for b in range(B):
        q2_ref[b, :, :] = _pool4(z2_ref, b * l2, q2_ref.shape[1]).astype(q2_ref.dtype)

    l3 = conv_stage(q2_ref, w3_ref, g3_ref, be3_ref, z3_ref)
    for b in range(B):
        q3_ref[b, :, :] = _pool4(z3_ref, b * l3, q3_ref.shape[1]).astype(q3_ref.dtype)

    l4 = conv_stage(q3_ref, w4_ref, g4_ref, be4_ref, z4_ref)
    lp4 = l4 // POOL

    # ---- Head: pool4 + avg_pool over the full remaining length + Linear + log_softmax
    for b in range(B):
        p = _pool4(z4_ref, b * l4, lp4)                             # (lp4, C4) f32
        feat_ref[pl.ds(b, 1), :] = jnp.sum(p, axis=0, keepdims=True) / float(lp4)
    feat = feat_ref[...]                                            # (B, C4)
    logits = jnp.dot(feat, wfc_ref[...],
                     preferred_element_type=jnp.float32) + bfc_ref[...]
    m = jnp.max(logits, axis=-1, keepdims=True)
    lse = m + jnp.log(jnp.sum(jnp.exp(logits - m), axis=-1, keepdims=True))
    lsm_ref[...] = logits - lse


# ---------------------------------------------------------------------------
# Wrapper: layout glue (transpose + free frame im2col) + the fused call
# ---------------------------------------------------------------------------
def audio_cnn_forward(params, x_ncl, *, stride=16, kernel1=80):
    """x_ncl: (B, C_in, L) in PyTorch Conv1d layout."""
    x = jnp.transpose(x_ncl, (0, 2, 1)).astype(jnp.float32)     # (B, L, C_in)
    B, L, c_in = x.shape
    assert kernel1 % stride == 0, "conv1 frame layout needs kernel % stride == 0"

    c1 = params["w1"].shape[1]
    c2 = params["w2"].shape[1]
    c3 = params["w3"].shape[1]
    c4 = params["w4"].shape[1]
    n_out = params["wfc"].shape[1]
    k2 = params["w2"].shape[0] // c1
    k3 = params["w3"].shape[0] // c2
    k4 = params["w4"].shape[0] // c3

    taps1 = kernel1 // stride
    l1 = (L - kernel1) // stride + 1
    lp1 = l1 // POOL
    l2 = lp1 - k2 + 1
    lp2 = l2 // POOL
    l3 = lp2 - k3 + 1
    lp3 = l3 // POOL
    l4 = lp3 - k4 + 1
    lp4 = l4 // POOL
    assert lp4 >= 1, "input sequence too short for this architecture"

    # conv1 im2col in the wrapper, shipped as bf16: (B*l1, kernel1*c_in).
    # Free contiguous frame reshape + taps1 shifted slices (no gather); column order
    # (k, c_in) matches the conv-weight row order.
    n_frames = l1 + taps1 - 1
    frames = x[:, :n_frames * stride, :].reshape(B, n_frames, stride * c_in)
    xf = jnp.concatenate([frames[:, t:t + l1, :] for t in range(taps1)], axis=-1)
    xf = xf.reshape(B * l1, kernel1 * c_in).astype(jnp.bfloat16)

    g = lambda v: v.reshape(1, -1).astype(jnp.float32)
    operands = (
        xf,
        params["w1"], g(params["g1"]), g(params["be1"]),
        params["w2"], g(params["g2"]), g(params["be2"]),
        params["w3"], g(params["g3"]), g(params["be3"]),
        params["w4"], g(params["g4"]), g(params["be4"]),
        params["wfc"], params["bfc"].reshape(1, -1),
    )

    flops = 2 * B * (l1 * kernel1 * c_in * c1 + l2 * k2 * c1 * c2
                     + l3 * k3 * c2 * c3 + l4 * k4 * c3 * c4 + c4 * n_out)
    bytes_accessed = int(sum(o.size * o.dtype.itemsize for o in operands)
                         + B * (c4 + n_out) * 4)

    patch_cols = max(k2 * c1, k3 * c2, k4 * c3)

    feat, lsm = pl.pallas_call(
        _audio_cnn_kernel,
        out_shape=(jax.ShapeDtypeStruct((B, c4), jnp.float32),
                   jax.ShapeDtypeStruct((B, n_out), jnp.float32)),
        in_specs=[_vmem()] * len(operands),
        out_specs=(_vmem(), _vmem()),
        scratch_shapes=[
            pltpu.VMEM((B * l1, c1), jnp.float32),        # z1: conv1+BN+ReLU (pre-pool)
            pltpu.VMEM((B, lp1, c1), jnp.bfloat16),       # q1: pooled (bf16 MXU feed)
            pltpu.VMEM((B * l2, patch_cols), jnp.bfloat16),  # shared im2col patch buffer
            pltpu.VMEM((B * l2, c2), jnp.float32),        # z2
            pltpu.VMEM((B, lp2, c2), jnp.bfloat16),       # q2
            pltpu.VMEM((B * l3, c3), jnp.float32),        # z3
            pltpu.VMEM((B, lp3, c3), jnp.bfloat16),       # q3
            pltpu.VMEM((B * l4, c4), jnp.float32),        # z4
        ],
        compiler_params=pltpu.CompilerParams(
            vmem_limit_bytes=32 * 1024 * 1024),
        cost_estimate=pl.CostEstimate(flops=flops,
                                      transcendentals=B * n_out + 16,
                                      bytes_accessed=bytes_accessed),
    )(*operands)

    # PyTorch shapes: features (B, 1, 2*hidden), log-probs (B, 1, num_outputs).
    return feat.reshape(B, 1, c4), lsm.reshape(B, 1, n_out)


# ---------------------------------------------------------------------------
# Parameter construction (deterministic, PyTorch-like uniform init)
# ---------------------------------------------------------------------------
def _conv_weight(key, c_out, c_in, ksz):
    bound = 1.0 / float(c_in * ksz) ** 0.5
    w = jax.random.uniform(key, (c_out, c_in, ksz), jnp.float32, -bound, bound)
    # (C_out, C_in, K) -> (K*C_in, C_out) matmul layout; row order (k, c_in) matches
    # the im2col column order.  bf16 = MXU-native operand dtype.
    return jnp.transpose(w, (2, 1, 0)).reshape(ksz * c_in, c_out).astype(jnp.bfloat16)


def _bn_params(key, c):
    kg, kb = jax.random.split(key)
    gamma = 1.0 + 0.01 * jax.random.normal(kg, (c,), jnp.float32)
    beta = 0.02 * jax.random.normal(kb, (c,), jnp.float32)
    return gamma, beta


def init_params(key, num_channels_input=1, num_outputs=35, hidden=32):
    keys = jax.random.split(key, 9)
    p = {}
    # NOTE: conv biases are intentionally not created -- under training-mode BatchNorm
    # a per-channel constant bias is cancelled exactly by the mean subtraction.
    p["w1"] = _conv_weight(keys[0], hidden, num_channels_input, 80)
    p["g1"], p["be1"] = _bn_params(keys[1], hidden)
    p["w2"] = _conv_weight(keys[2], hidden, hidden, 3)
    p["g2"], p["be2"] = _bn_params(keys[3], hidden)
    p["w3"] = _conv_weight(keys[4], 2 * hidden, hidden, 3)
    p["g3"], p["be3"] = _bn_params(keys[5], 2 * hidden)
    p["w4"] = _conv_weight(keys[6], 2 * hidden, 2 * hidden, 3)
    p["g4"], p["be4"] = _bn_params(keys[7], 2 * hidden)
    kfw, kfb = jax.random.split(keys[8])
    bound = 1.0 / float(2 * hidden) ** 0.5
    # nn.Linear weight is (out, in); store transposed for x @ W.
    p["wfc"] = jax.random.uniform(kfw, (2 * hidden, num_outputs), jnp.float32, -bound, bound)
    p["bfc"] = jax.random.uniform(kfb, (num_outputs,), jnp.float32, -bound, bound)
    return p


if __name__ == "__main__":
    key = jax.random.PRNGKey(0)
    k_param, k_data = jax.random.split(key)

    # conv1 (k=80, s=16) plus four MaxPool(4) stages need L >= 6848 to keep a final
    # temporal length >= 1; 8000 samples: 496 -> 124 -> 122 -> 30 -> 28 -> 7 -> 5 -> 1.
    B, C_IN, L = 2, 1, 8000
    x = jax.random.normal(k_data, (B, C_IN, L), jnp.float32)

    params = init_params(k_param, num_channels_input=C_IN, num_outputs=35, hidden=32)

    fwd = jax.jit(audio_cnn_forward)
    features, log_probs = fwd(params, x)
    jax.block_until_ready((features, log_probs))

    assert features.shape == (B, 1, 64), features.shape
    assert log_probs.shape == (B, 1, 35), log_probs.shape
    print("KERNEL_OK")
</pallas_src>

<mosaic_0001>
module attributes {stable_mosaic.version = 11 : i64} {
  func.func @_audio_cnn_kernel(%arg0: memref<992x80xbf16, #tpu.memory_space<vmem>>, %arg1: memref<80x32xbf16, #tpu.memory_space<vmem>>, %arg2: memref<1x32xf32, #tpu.memory_space<vmem>>, %arg3: memref<1x32xf32, #tpu.memory_space<vmem>>, %arg4: memref<96x32xbf16, #tpu.memory_space<vmem>>, %arg5: memref<1x32xf32, #tpu.memory_space<vmem>>, %arg6: memref<1x32xf32, #tpu.memory_space<vmem>>, %arg7: memref<96x64xbf16, #tpu.memory_space<vmem>>, %arg8: memref<1x64xf32, #tpu.memory_space<vmem>>, %arg9: memref<1x64xf32, #tpu.memory_space<vmem>>, %arg10: memref<192x64xbf16, #tpu.memory_space<vmem>>, %arg11: memref<1x64xf32, #tpu.memory_space<vmem>>, %arg12: memref<1x64xf32, #tpu.memory_space<vmem>>, %arg13: memref<64x35xf32, #tpu.memory_space<vmem>>, %arg14: memref<1x35xf32, #tpu.memory_space<vmem>>, %arg15: memref<2x64xf32, #tpu.memory_space<vmem>>, %arg16: memref<2x35xf32, #tpu.memory_space<vmem>>, %arg17: memref<992x32xf32, #tpu.memory_space<vmem>>, %arg18: memref<2x124x32xbf16, #tpu.memory_space<vmem>>, %arg19: memref<244x192xbf16, #tpu.memory_space<vmem>>, %arg20: memref<244x32xf32, #tpu.memory_space<vmem>>, %arg21: memref<2x30x32xbf16, #tpu.memory_space<vmem>>, %arg22: memref<56x64xf32, #tpu.memory_space<vmem>>, %arg23: memref<2x7x64xbf16, #tpu.memory_space<vmem>>, %arg24: memref<10x64xf32, #tpu.memory_space<vmem>>) attributes {dimension_semantics = [], scalar_prefetch = 0 : i64, scratch_operands = 8 : i64, tpu.core_type = #tpu.core_type<tc>} {
    %c0 = arith.constant 0 : index
    %c0_0 = arith.constant 0 : index
    %0 = vector.load %arg0[%c0, %c0_0] : memref<992x80xbf16, #tpu.memory_space<vmem>>, vector<992x80xbf16>
    %c0_1 = arith.constant 0 : index
    %c0_2 = arith.constant 0 : index
    %1 = vector.load %arg1[%c0_1, %c0_2] : memref<80x32xbf16, #tpu.memory_space<vmem>>, vector<80x32xbf16>
    %cst = arith.constant dense<0.000000e+00> : vector<992x32xf32>
    %2 = tpu.matmul %0, %1, %cst {dimension_numbers = #tpu.dot_dimension_numbers<[1], [0], [0], [1], [0, 0, 1, 1], [], []>} : vector<992x80xbf16>, vector<80x32xbf16>, vector<992x32xf32> -> vector<992x32xf32>
    %cst_3 = arith.constant dense<0.000000e+00> : vector<32xf32>
    %3 = vector.multi_reduction <add>, %2, %cst_3 [0] : vector<992x32xf32> to vector<32xf32>
    %4 = vector.shape_cast %3 : vector<32xf32> to vector<1x32xf32>
    %5 = arith.mulf %2, %2 : vector<992x32xf32>
    %cst_4 = arith.constant dense<0.000000e+00> : vector<32xf32>
    %6 = vector.multi_reduction <add>, %5, %cst_4 [0] : vector<992x32xf32> to vector<32xf32>
    %7 = vector.shape_cast %6 : vector<32xf32> to vector<1x32xf32>
    %cst_5 = arith.constant 9.920000e+02 : f32
    %8 = vector.broadcast %cst_5 : f32 to vector<1x32xf32>
    %9 = arith.divf %4, %8 : vector<1x32xf32>
    %cst_6 = arith.constant 9.920000e+02 : f32
    %10 = vector.broadcast %cst_6 : f32 to vector<1x32xf32>
    %11 = arith.divf %7, %10 : vector<1x32xf32>
    %12 = arith.mulf %9, %9 : vector<1x32xf32>
    %13 = arith.subf %11, %12 : vector<1x32xf32>
    %cst_7 = arith.constant 0.000000e+00 : f32
    %14 = vector.broadcast %cst_7 : f32 to vector<1x32xf32>
    %15 = arith.maximumf %13, %14 : vector<1x32xf32>
    %c0_8 = arith.constant 0 : index
    %c0_9 = arith.constant 0 : index
    %16 = vector.load %arg2[%c0_8, %c0_9] : memref<1x32xf32, #tpu.memory_space<vmem>>, vector<1x32xf32>
    %cst_10 = arith.constant 9.99999974E-6 : f32
    %17 = vector.broadcast %cst_10 : f32 to vector<1x32xf32>
    %18 = arith.addf %15, %17 : vector<1x32xf32>
    %19 = math.rsqrt %18 : vector<1x32xf32>
    %20 = arith.mulf %16, %19 : vector<1x32xf32>
    %c0_11 = arith.constant 0 : index
    %c0_12 = arith.constant 0 : index
    %21 = vector.load %arg3[%c0_11, %c0_12] : memref<1x32xf32, #tpu.memory_space<vmem>>, vector<1x32xf32>
    %22 = arith.mulf %9, %20 : vector<1x32xf32>
    %23 = arith.subf %21, %22 : vector<1x32xf32>
    %24 = vector.broadcast %20 : vector<1x32xf32> to vector<992x32xf32>
    %25 = arith.mulf %2, %24 : vector<992x32xf32>
    %26 = vector.broadcast %23 : vector<1x32xf32> to vector<992x32xf32>
    %27 = arith.addf %25, %26 : vector<992x32xf32>
    %cst_13 = arith.constant 0.000000e+00 : f32
    %28 = vector.broadcast %cst_13 : f32 to vector<992x32xf32>
    %29 = arith.maximumf %27, %28 : vector<992x32xf32>
    %c0_14 = arith.constant 0 : index
    %c0_15 = arith.constant 0 : index
    %30 = vector.load %arg17[%c0_14, %c0_15] : memref<992x32xf32, #tpu.memory_space<vmem>>, vector<992x32xf32>
    tpu.vector_store %arg17[%c0_14, %c0_15], %29 {strides = array<i32>} : memref<992x32xf32, #tpu.memory_space<vmem>>, vector<992x32xf32>,
    %c0_16 = arith.constant 0 : index
    %c0_17 = arith.constant 0 : index
    %31 = tpu.strided_load %arg17[%c0_16, %c0_17] {strides = array<i32: 4, 1>} : memref<992x32xf32, #tpu.memory_space<vmem>>, vector<124x32xf32>
    %c1 = arith.constant 1 : index
    %c0_18 = arith.constant 0 : index
    %32 = tpu.strided_load %arg17[%c1, %c0_18] {strides = array<i32: 4, 1>} : memref<992x32xf32, #tpu.memory_space<vmem>>, vector<124x32xf32>
    %33 = arith.maximumf %31, %32 : vector<124x32xf32>
    %c2 = arith.constant 2 : index
    %c0_19 = arith.constant 0 : index
    %34 = tpu.strided_load %arg17[%c2, %c0_19] {strides = array<i32: 4, 1>} : memref<992x32xf32, #tpu.memory_space<vmem>>, vector<124x32xf32>
    %35 = arith.maximumf %33, %34 : vector<124x32xf32>
    %c3 = arith.constant 3 : index
    %c0_20 = arith.constant 0 : index
    %36 = tpu.strided_load %arg17[%c3, %c0_20] {strides = array<i32: 4, 1>} : memref<992x32xf32, #tpu.memory_space<vmem>>, vector<124x32xf32>
    %37 = arith.maximumf %35, %36 : vector<124x32xf32>
    %38 = arith.truncf %37 : vector<124x32xf32> to vector<124x32xbf16>
    %c0_21 = arith.constant 0 : index
    %c0_22 = arith.constant 0 : index
    %c0_23 = arith.constant 0 : index
    %39 = vector.load %arg18[%c0_21, %c0_22, %c0_23] : memref<2x124x32xbf16, #tpu.memory_space<vmem>>, vector<1x124x32xbf16>
    %40 = vector.shape_cast %39 : vector<1x124x32xbf16> to vector<124x32xbf16>
    %41 = vector.shape_cast %38 : vector<124x32xbf16> to vector<1x124x32xbf16>
    tpu.vector_store %arg18[%c0_21, %c0_22, %c0_23], %41 {strides = array<i32>} : memref<2x124x32xbf16, #tpu.memory_space<vmem>>, vector<1x124x32xbf16>,
    %c496 = arith.constant 496 : index
    %c0_24 = arith.constant 0 : index
    %42 = tpu.strided_load %arg17[%c496, %c0_24] {strides = array<i32: 4, 1>} : memref<992x32xf32, #tpu.memory_space<vmem>>, vector<124x32xf32>
    %c497 = arith.constant 497 : index
    %c0_25 = arith.constant 0 : index
    %43 = tpu.strided_load %arg17[%c497, %c0_25] {strides = array<i32: 4, 1>} : memref<992x32xf32, #tpu.memory_space<vmem>>, vector<124x32xf32>
    %44 = arith.maximumf %42, %43 : vector<124x32xf32>
    %c498 = arith.constant 498 : index
    %c0_26 = arith.constant 0 : index
    %45 = tpu.strided_load %arg17[%c498, %c0_26] {strides = array<i32: 4, 1>} : memref<992x32xf32, #tpu.memory_space<vmem>>, vector<124x32xf32>
    %46 = arith.maximumf %44, %45 : vector<124x32xf32>
    %c499 = arith.constant 499 : index
    %c0_27 = arith.constant 0 : index
    %47 = tpu.strided_load %arg17[%c499, %c0_27] {strides = array<i32: 4, 1>} : memref<992x32xf32, #tpu.memory_space<vmem>>, vector<124x32xf32>
    %48 = arith.maximumf %46, %47 : vector<124x32xf32>
    %49 = arith.truncf %48 : vector<124x32xf32> to vector<124x32xbf16>
    %c1_28 = arith.constant 1 : index
    %c0_29 = arith.constant 0 : index
    %c0_30 = arith.constant 0 : index
    %50 = vector.load %arg18[%c1_28, %c0_29, %c0_30] : memref<2x124x32xbf16, #tpu.memory_space<vmem>>, vector<1x124x32xbf16>
    %51 = vector.shape_cast %50 : vector<1x124x32xbf16> to vector<124x32xbf16>
    %52 = vector.shape_cast %49 : vector<124x32xbf16> to vector<1x124x32xbf16>
    tpu.vector_store %arg18[%c1_28, %c0_29, %c0_30], %52 {strides = array<i32>} : memref<2x124x32xbf16, #tpu.memory_space<vmem>>, vector<1x124x32xbf16>,
    %c0_31 = arith.constant 0 : index
    %c0_32 = arith.constant 0 : index
    %c0_33 = arith.constant 0 : index
    %53 = vector.load %arg18[%c0_31, %c0_32, %c0_33] : memref<2x124x32xbf16, #tpu.memory_space<vmem>>, vector<1x122x32xbf16>
    %54 = vector.shape_cast %53 : vector<1x122x32xbf16> to vector<122x32xbf16>
    %c0_34 = arith.constant 0 : index
    %c0_35 = arith.constant 0 : index
    %55 = vector.load %arg19[%c0_34, %c0_35] : memref<244x192xbf16, #tpu.memory_space<vmem>>, vector<122x32xbf16>
    tpu.vector_store %arg19[%c0_34, %c0_35], %54 {strides = array<i32>} : memref<244x192xbf16, #tpu.memory_space<vmem>>, vector<122x32xbf16>,
    %c0_36 = arith.constant 0 : index
    %c1_37 = arith.constant 1 : index
    %c0_38 = arith.constant 0 : index
    %56 = vector.load %arg18[%c0_36, %c1_37, %c0_38] : memref<2x124x32xbf16, #tpu.memory_space<vmem>>, vector<1x122x32xbf16>
    %57 = vector.shape_cast %56 : vector<1x122x32xbf16> to vector<122x32xbf16>
    %c0_39 = arith.constant 0 : index
    %c32 = arith.constant 32 : index
    %58 = vector.load %arg19[%c0_39, %c32] : memref<244x192xbf16, #tpu.memory_space<vmem>>, vector<122x32xbf16>
    tpu.vector_store %arg19[%c0_39, %c32], %57 {strides = array<i32>} : memref<244x192xbf16, #tpu.memory_space<vmem>>, vector<122x32xbf16>,
    %c0_40 = arith.constant 0 : index
    %c2_41 = arith.constant 2 : index
    %c0_42 = arith.constant 0 : index
    %59 = vector.load %arg18[%c0_40, %c2_41, %c0_42] : memref<2x124x32xbf16, #tpu.memory_space<vmem>>, vector<1x122x32xbf16>
    %60 = vector.shape_cast %59 : vector<1x122x32xbf16> to vector<122x32xbf16>
    %c0_43 = arith.constant 0 : index
    %c64 = arith.constant 64 : index
    %61 = vector.load %arg19[%c0_43, %c64] : memref<244x192xbf16, #tpu.memory_space<vmem>>, vector<122x32xbf16>
    tpu.vector_store %arg19[%c0_43, %c64], %60 {strides = array<i32>} : memref<244x192xbf16, #tpu.memory_space<vmem>>, vector<122x32xbf16>,
    %c1_44 = arith.constant 1 : index
    %c0_45 = arith.constant 0 : index
    %c0_46 = arith.constant 0 : index
    %62 = vector.load %arg18[%c1_44, %c0_45, %c0_46] : memref<2x124x32xbf16, #tpu.memory_space<vmem>>, vector<1x122x32xbf16>
    %63 = vector.shape_cast %62 : vector<1x122x32xbf16> to vector<122x32xbf16>
    %c122 = arith.constant 122 : index
    %c0_47 = arith.constant 0 : index
    %64 = vector.load %arg19[%c122, %c0_47] : memref<244x192xbf16, #tpu.memory_space<vmem>>, vector<122x32xbf16>
    tpu.vector_store %arg19[%c122, %c0_47], %63 {strides = array<i32>} : memref<244x192xbf16, #tpu.memory_space<vmem>>, vector<122x32xbf16>,
    %c1_48 = arith.constant 1 : index
    %c1_49 = arith.constant 1 : index
    %c0_50 = arith.constant 0 : index
    %65 = vector.load %arg18[%c1_48, %c1_49, %c0_50] : memref<2x124x32xbf16, #tpu.memory_space<vmem>>, vector<1x122x32xbf16>
    %66 = vector.shape_cast %65 : vector<1x122x32xbf16> to vector<122x32xbf16>
    %c122_51 = arith.constant 122 : index
    %c32_52 = arith.constant 32 : index
    %67 = vector.load %arg19[%c122_51, %c32_52] : memref<244x192xbf16, #tpu.memory_space<vmem>>, vector<122x32xbf16>
    tpu.vector_store %arg19[%c122_51, %c32_52], %66 {strides = array<i32>} : memref<244x192xbf16, #tpu.memory_space<vmem>>, vector<122x32xbf16>,
    %c1_53 = arith.constant 1 : index
    %c2_54 = arith.constant 2 : index
    %c0_55 = arith.constant 0 : index
    %68 = vector.load %arg18[%c1_53, %c2_54, %c0_55] : memref<2x124x32xbf16, #tpu.memory_space<vmem>>, vector<1x122x32xbf16>
    %69 = vector.shape_cast %68 : vector<1x122x32xbf16> to vector<122x32xbf16>
    %c122_56 = arith.constant 122 : index
    %c64_57 = arith.constant 64 : index
    %70 = vector.load %arg19[%c122_56, %c64_57] : memref<244x192xbf16, #tpu.memory_space<vmem>>, vector<122x32xbf16>
    tpu.vector_store %arg19[%c122_56, %c64_57], %69 {strides = array<i32>} : memref<244x192xbf16, #tpu.memory_space<vmem>>, vector<122x32xbf16>,
    %c0_58 = arith.constant 0 : index
    %c0_59 = arith.constant 0 : index
    %71 = vector.load %arg19[%c0_58, %c0_59] : memref<244x192xbf16, #tpu.memory_space<vmem>>, vector<244x96xbf16>
    %c0_60 = arith.constant 0 : index
    %c0_61 = arith.constant 0 : index
    %72 = vector.load %arg4[%c0_60, %c0_61] : memref<96x32xbf16, #tpu.memory_space<vmem>>, vector<96x32xbf16>
    %cst_62 = arith.constant dense<0.000000e+00> : vector<244x32xf32>
    %73 = tpu.matmul %71, %72, %cst_62 {dimension_numbers = #tpu.dot_dimension_numbers<[1], [0], [0], [1], [0, 0, 1, 1], [], []>} : vector<244x96xbf16>, vector<96x32xbf16>, vector<244x32xf32> -> vector<244x32xf32>
    %cst_63 = arith.constant dense<0.000000e+00> : vector<32xf32>
    %74 = vector.multi_reduction <add>, %73, %cst_63 [0] : vector<244x32xf32> to vector<32xf32>
    %75 = vector.shape_cast %74 : vector<32xf32> to vector<1x32xf32>
    %76 = arith.mulf %73, %73 : vector<244x32xf32>
    %cst_64 = arith.constant dense<0.000000e+00> : vector<32xf32>
    %77 = vector.multi_reduction <add>, %76, %cst_64 [0] : vector<244x32xf32> to vector<32xf32>
    %78 = vector.shape_cast %77 : vector<32xf32> to vector<1x32xf32>
    %cst_65 = arith.constant 2.440000e+02 : f32
    %79 = vector.broadcast %cst_65 : f32 to vector<1x32xf32>
    %80 = arith.divf %75, %79 : vector<1x32xf32>
    %cst_66 = arith.constant 2.440000e+02 : f32
    %81 = vector.broadcast %cst_66 : f32 to vector<1x32xf32>
    %82 = arith.divf %78, %81 : vector<1x32xf32>
    %83 = arith.mulf %80, %80 : vector<1x32xf32>
    %84 = arith.subf %82, %83 : vector<1x32xf32>
    %cst_67 = arith.constant 0.000000e+00 : f32
    %85 = vector.broadcast %cst_67 : f32 to vector<1x32xf32>
    %86 = arith.maximumf %84, %85 : vector<1x32xf32>
    %c0_68 = arith.constant 0 : index
    %c0_69 = arith.constant 0 : index
    %87 = vector.load %arg5[%c0_68, %c0_69] : memref<1x32xf32, #tpu.memory_space<vmem>>, vector<1x32xf32>
    %cst_70 = arith.constant 9.99999974E-6 : f32
    %88 = vector.broadcast %cst_70 : f32 to vector<1x32xf32>
    %89 = arith.addf %86, %88 : vector<1x32xf32>
    %90 = math.rsqrt %89 : vector<1x32xf32>
    %91 = arith.mulf %87, %90 : vector<1x32xf32>
    %c0_71 = arith.constant 0 : index
    %c0_72 = arith.constant 0 : index
    %92 = vector.load %arg6[%c0_71, %c0_72] : memref<1x32xf32, #tpu.memory_space<vmem>>, vector<1x32xf32>
    %93 = arith.mulf %80, %91 : vector<1x32xf32>
    %94 = arith.subf %92, %93 : vector<1x32xf32>
    %95 = vector.broadcast %91 : vector<1x32xf32> to vector<244x32xf32>
    %96 = arith.mulf %73, %95 : vector<244x32xf32>
    %97 = vector.broadcast %94 : vector<1x32xf32> to vector<244x32xf32>
    %98 = arith.addf %96, %97 : vector<244x32xf32>
    %cst_73 = arith.constant 0.000000e+00 : f32
    %99 = vector.broadcast %cst_73 : f32 to vector<244x32xf32>
    %100 = arith.maximumf %98, %99 : vector<244x32xf32>
    %c0_74 = arith.constant 0 : index
    %c0_75 = arith.constant 0 : index
    %101 = vector.load %arg20[%c0_74, %c0_75] : memref<244x32xf32, #tpu.memory_space<vmem>>, vector<244x32xf32>
    tpu.vector_store %arg20[%c0_74, %c0_75], %100 {strides = array<i32>} : memref<244x32xf32, #tpu.memory_space<vmem>>, vector<244x32xf32>,
    %c0_76 = arith.constant 0 : index
    %c0_77 = arith.constant 0 : index
    %102 = tpu.strided_load %arg20[%c0_76, %c0_77] {strides = array<i32: 4, 1>} : memref<244x32xf32, #tpu.memory_space<vmem>>, vector<30x32xf32>
    %c1_78 = arith.constant 1 : index
    %c0_79 = arith.constant 0 : index
    %103 = tpu.strided_load %arg20[%c1_78, %c0_79] {strides = array<i32: 4, 1>} : memref<244x32xf32, #tpu.memory_space<vmem>>, vector<30x32xf32>
    %104 = arith.maximumf %102, %103 : vector<30x32xf32>
    %c2_80 = arith.constant 2 : index
    %c0_81 = arith.constant 0 : index
    %105 = tpu.strided_load %arg20[%c2_80, %c0_81] {strides = array<i32: 4, 1>} : memref<244x32xf32, #tpu.memory_space<vmem>>, vector<30x32xf32>
    %106 = arith.maximumf %104, %105 : vector<30x32xf32>
    %c3_82 = arith.constant 3 : index
    %c0_83 = arith.constant 0 : index
    %107 = tpu.strided_load %arg20[%c3_82, %c0_83] {strides = array<i32: 4, 1>} : memref<244x32xf32, #tpu.memory_space<vmem>>, vector<30x32xf32>
    %108 = arith.maximumf %106, %107 : vector<30x32xf32>
    %109 = arith.truncf %108 : vector<30x32xf32> to vector<30x32xbf16>
    %c0_84 = arith.constant 0 : index
    %c0_85 = arith.constant 0 : index
    %c0_86 = arith.constant 0 : index
    %110 = vector.load %arg21[%c0_84, %c0_85, %c0_86] : memref<2x30x32xbf16, #tpu.memory_space<vmem>>, vector<1x30x32xbf16>
    %111 = vector.shape_cast %110 : vector<1x30x32xbf16> to vector<30x32xbf16>
    %112 = vector.shape_cast %109 : vector<30x32xbf16> to vector<1x30x32xbf16>
    tpu.vector_store %arg21[%c0_84, %c0_85, %c0_86], %112 {strides = array<i32>} : memref<2x30x32xbf16, #tpu.memory_space<vmem>>, vector<1x30x32xbf16>,
    %c122_87 = arith.constant 122 : index
    %c0_88 = arith.constant 0 : index
    %113 = tpu.strided_load %arg20[%c122_87, %c0_88] {strides = array<i32: 4, 1>} : memref<244x32xf32, #tpu.memory_space<vmem>>, vector<30x32xf32>
    %c123 = arith.constant 123 : index
    %c0_89 = arith.constant 0 : index
    %114 = tpu.strided_load %arg20[%c123, %c0_89] {strides = array<i32: 4, 1>} : memref<244x32xf32, #tpu.memory_space<vmem>>, vector<30x32xf32>
    %115 = arith.maximumf %113, %114 : vector<30x32xf32>
    %c124 = arith.constant 124 : index
    %c0_90 = arith.constant 0 : index
    %116 = tpu.strided_load %arg20[%c124, %c0_90] {strides = array<i32: 4, 1>} : memref<244x32xf32, #tpu.memory_space<vmem>>, vector<30x32xf32>
    %117 = arith.maximumf %115, %116 : vector<30x32xf32>
    %c125 = arith.constant 125 : index
    %c0_91 = arith.constant 0 : index
    %118 = tpu.strided_load %arg20[%c125, %c0_91] {strides = array<i32: 4, 1>} : memref<244x32xf32, #tpu.memory_space<vmem>>, vector<30x32xf32>
    %119 = arith.maximumf %117, %118 : vector<30x32xf32>
    %120 = arith.truncf %119 : vector<30x32xf32> to vector<30x32xbf16>
    %c1_92 = arith.constant 1 : index
    %c0_93 = arith.constant 0 : index
    %c0_94 = arith.constant 0 : index
    %121 = vector.load %arg21[%c1_92, %c0_93, %c0_94] : memref<2x30x32xbf16, #tpu.memory_space<vmem>>, vector<1x30x32xbf16>
    %122 = vector.shape_cast %121 : vector<1x30x32xbf16> to vector<30x32xbf16>
    %123 = vector.shape_cast %120 : vector<30x32xbf16> to vector<1x30x32xbf16>
    tpu.vector_store %arg21[%c1_92, %c0_93, %c0_94], %123 {strides = array<i32>} : memref<2x30x32xbf16, #tpu.memory_space<vmem>>, vector<1x30x32xbf16>,
    %c0_95 = arith.constant 0 : index
    %c0_96 = arith.constant 0 : index
    %c0_97 = arith.constant 0 : index
    %124 = vector.load %arg21[%c0_95, %c0_96, %c0_97] : memref<2x30x32xbf16, #tpu.memory_space<vmem>>, vector<1x28x32xbf16>
    %125 = vector.shape_cast %124 : vector<1x28x32xbf16> to vector<28x32xbf16>
    %c0_98 = arith.constant 0 : index
    %c0_99 = arith.constant 0 : index
    %126 = vector.load %arg19[%c0_98, %c0_99] : memref<244x192xbf16, #tpu.memory_space<vmem>>, vector<28x32xbf16>
    tpu.vector_store %arg19[%c0_98, %c0_99], %125 {strides = array<i32>} : memref<244x192xbf16, #tpu.memory_space<vmem>>, vector<28x32xbf16>,
    %c0_100 = arith.constant 0 : index
    %c1_101 = arith.constant 1 : index
    %c0_102 = arith.constant 0 : index
    %127 = vector.load %arg21[%c0_100, %c1_101, %c0_102] : memref<2x30x32xbf16, #tpu.memory_space<vmem>>, vector<1x28x32xbf16>
    %128 = vector.shape_cast %127 : vector<1x28x32xbf16> to vector<28x32xbf16>
    %c0_103 = arith.constant 0 : index
    %c32_104 = arith.constant 32 : index
    %129 = vector.load %arg19[%c0_103, %c32_104] : memref<244x192xbf16, #tpu.memory_space<vmem>>, vector<28x32xbf16>
    tpu.vector_store %arg19[%c0_103, %c32_104], %128 {strides = array<i32>} : memref<244x192xbf16, #tpu.memory_space<vmem>>, vector<28x32xbf16>,
    %c0_105 = arith.constant 0 : index
    %c2_106 = arith.constant 2 : index
    %c0_107 = arith.constant 0 : index
    %130 = vector.load %arg21[%c0_105, %c2_106, %c0_107] : memref<2x30x32xbf16, #tpu.memory_space<vmem>>, vector<1x28x32xbf16>
    %131 = vector.shape_cast %130 : vector<1x28x32xbf16> to vector<28x32xbf16>
    %c0_108 = arith.constant 0 : index
    %c64_109 = arith.constant 64 : index
    %132 = vector.load %arg19[%c0_108, %c64_109] : memref<244x192xbf16, #tpu.memory_space<vmem>>, vector<28x32xbf16>
    tpu.vector_store %arg19[%c0_108, %c64_109], %131 {strides = array<i32>} : memref<244x192xbf16, #tpu.memory_space<vmem>>, vector<28x32xbf16>,
    %c1_110 = arith.constant 1 : index
    %c0_111 = arith.constant 0 : index
    %c0_112 = arith.constant 0 : index
    %133 = vector.load %arg21[%c1_110, %c0_111, %c0_112] : memref<2x30x32xbf16, #tpu.memory_space<vmem>>, vector<1x28x32xbf16>
    %134 = vector.shape_cast %133 : vector<1x28x32xbf16> to vector<28x32xbf16>
    %c28 = arith.constant 28 : index
    %c0_113 = arith.constant 0 : index
    %135 = vector.load %arg19[%c28, %c0_113] : memref<244x192xbf16, #tpu.memory_space<vmem>>, vector<28x32xbf16>
    tpu.vector_store %arg19[%c28, %c0_113], %134 {strides = array<i32>} : memref<244x192xbf16, #tpu.memory_space<vmem>>, vector<28x32xbf16>,
    %c1_114 = arith.constant 1 : index
    %c1_115 = arith.constant 1 : index
    %c0_116 = arith.constant 0 : index
    %136 = vector.load %arg21[%c1_114, %c1_115, %c0_116] : memref<2x30x32xbf16, #tpu.memory_space<vmem>>, vector<1x28x32xbf16>
    %137 = vector.shape_cast %136 : vector<1x28x32xbf16> to vector<28x32xbf16>
    %c28_117 = arith.constant 28 : index
    %c32_118 = arith.constant 32 : index
    %138 = vector.load %arg19[%c28_117, %c32_118] : memref<244x192xbf16, #tpu.memory_space<vmem>>, vector<28x32xbf16>
    tpu.vector_store %arg19[%c28_117, %c32_118], %137 {strides = array<i32>} : memref<244x192xbf16, #tpu.memory_space<vmem>>, vector<28x32xbf16>,
    %c1_119 = arith.constant 1 : index
    %c2_120 = arith.constant 2 : index
    %c0_121 = arith.constant 0 : index
    %139 = vector.load %arg21[%c1_119, %c2_120, %c0_121] : memref<2x30x32xbf16, #tpu.memory_space<vmem>>, vector<1x28x32xbf16>
    %140 = vector.shape_cast %139 : vector<1x28x32xbf16> to vector<28x32xbf16>
    %c28_122 = arith.constant 28 : index
    %c64_123 = arith.constant 64 : index
    %141 = vector.load %arg19[%c28_122, %c64_123] : memref<244x192xbf16, #tpu.memory_space<vmem>>, vector<28x32xbf16>
    tpu.vector_store %arg19[%c28_122, %c64_123], %140 {strides = array<i32>} : memref<244x192xbf16, #tpu.memory_space<vmem>>, vector<28x32xbf16>,
    %c0_124 = arith.constant 0 : index
    %c0_125 = arith.constant 0 : index
    %142 = vector.load %arg19[%c0_124, %c0_125] : memref<244x192xbf16, #tpu.memory_space<vmem>>, vector<56x96xbf16>
    %c0_126 = arith.constant 0 : index
    %c0_127 = arith.constant 0 : index
    %143 = vector.load %arg7[%c0_126, %c0_127] : memref<96x64xbf16, #tpu.memory_space<vmem>>, vector<96x64xbf16>
    %cst_128 = arith.constant dense<0.000000e+00> : vector<56x64xf32>
    %144 = tpu.matmul %142, %143, %cst_128 {dimension_numbers = #tpu.dot_dimension_numbers<[1], [0], [0], [1], [0, 0, 1, 1], [], []>} : vector<56x96xbf16>, vector<96x64xbf16>, vector<56x64xf32> -> vector<56x64xf32>
    %cst_129 = arith.constant dense<0.000000e+00> : vector<64xf32>
    %145 = vector.multi_reduction <add>, %144, %cst_129 [0] : vector<56x64xf32> to vector<64xf32>
    %146 = vector.shape_cast %145 : vector<64xf32> to vector<1x64xf32>
    %147 = arith.mulf %144, %144 : vector<56x64xf32>
    %cst_130 = arith.constant dense<0.000000e+00> : vector<64xf32>
    %148 = vector.multi_reduction <add>, %147, %cst_130 [0] : vector<56x64xf32> to vector<64xf32>
    %149 = vector.shape_cast %148 : vector<64xf32> to vector<1x64xf32>
    %cst_131 = arith.constant 5.600000e+01 : f32
    %150 = vector.broadcast %cst_131 : f32 to vector<1x64xf32>
    %151 = arith.divf %146, %150 : vector<1x64xf32>
    %cst_132 = arith.constant 5.600000e+01 : f32
    %152 = vector.broadcast %cst_132 : f32 to vector<1x64xf32>
    %153 = arith.divf %149, %152 : vector<1x64xf32>
    %154 = arith.mulf %151, %151 : vector<1x64xf32>
    %155 = arith.subf %153, %154 : vector<1x64xf32>
    %cst_133 = arith.constant 0.000000e+00 : f32
    %156 = vector.broadcast %cst_133 : f32 to vector<1x64xf32>
    %157 = arith.maximumf %155, %156 : vector<1x64xf32>
    %c0_134 = arith.constant 0 : index
    %c0_135 = arith.constant 0 : index
    %158 = vector.load %arg8[%c0_134, %c0_135] : memref<1x64xf32, #tpu.memory_space<vmem>>, vector<1x64xf32>
    %cst_136 = arith.constant 9.99999974E-6 : f32
    %159 = vector.broadcast %cst_136 : f32 to vector<1x64xf32>
    %160 = arith.addf %157, %159 : vector<1x64xf32>
    %161 = math.rsqrt %160 : vector<1x64xf32>
    %162 = arith.mulf %158, %161 : vector<1x64xf32>
    %c0_137 = arith.constant 0 : index
    %c0_138 = arith.constant 0 : index
    %163 = vector.load %arg9[%c0_137, %c0_138] : memref<1x64xf32, #tpu.memory_space<vmem>>, vector<1x64xf32>
    %164 = arith.mulf %151, %162 : vector<1x64xf32>
    %165 = arith.subf %163, %164 : vector<1x64xf32>
    %166 = vector.broadcast %162 : vector<1x64xf32> to vector<56x64xf32>
    %167 = arith.mulf %144, %166 : vector<56x64xf32>
    %168 = vector.broadcast %165 : vector<1x64xf32> to vector<56x64xf32>
    %169 = arith.addf %167, %168 : vector<56x64xf32>
    %cst_139 = arith.constant 0.000000e+00 : f32
    %170 = vector.broadcast %cst_139 : f32 to vector<56x64xf32>
    %171 = arith.maximumf %169, %170 : vector<56x64xf32>
    %c0_140 = arith.constant 0 : index
    %c0_141 = arith.constant 0 : index
    %172 = vector.load %arg22[%c0_140, %c0_141] : memref<56x64xf32, #tpu.memory_space<vmem>>, vector<56x64xf32>
    tpu.vector_store %arg22[%c0_140, %c0_141], %171 {strides = array<i32>} : memref<56x64xf32, #tpu.memory_space<vmem>>, vector<56x64xf32>,
    %c0_142 = arith.constant 0 : index
    %c0_143 = arith.constant 0 : index
    %173 = tpu.strided_load %arg22[%c0_142, %c0_143] {strides = array<i32: 4, 1>} : memref<56x64xf32, #tpu.memory_space<vmem>>, vector<7x64xf32>
    %c1_144 = arith.constant 1 : index
    %c0_145 = arith.constant 0 : index
    %174 = tpu.strided_load %arg22[%c1_144, %c0_145] {strides = array<i32: 4, 1>} : memref<56x64xf32, #tpu.memory_space<vmem>>, vector<7x64xf32>
    %175 = arith.maximumf %173, %174 : vector<7x64xf32>
    %c2_146 = arith.constant 2 : index
    %c0_147 = arith.constant 0 : index
    %176 = tpu.strided_load %arg22[%c2_146, %c0_147] {strides = array<i32: 4, 1>} : memref<56x64xf32, #tpu.memory_space<vmem>>, vector<7x64xf32>
    %177 = arith.maximumf %175, %176 : vector<7x64xf32>
    %c3_148 = arith.constant 3 : index
    %c0_149 = arith.constant 0 : index
    %178 = tpu.strided_load %arg22[%c3_148, %c0_149] {strides = array<i32: 4, 1>} : memref<56x64xf32, #tpu.memory_space<vmem>>, vector<7x64xf32>
    %179 = arith.maximumf %177, %178 : vector<7x64xf32>
    %180 = arith.truncf %179 : vector<7x64xf32> to vector<7x64xbf16>
    %c0_150 = arith.constant 0 : index
    %c0_151 = arith.constant 0 : index
    %c0_152 = arith.constant 0 : index
    %181 = vector.load %arg23[%c0_150, %c0_151, %c0_152] : memref<2x7x64xbf16, #tpu.memory_space<vmem>>, vector<1x7x64xbf16>
    %182 = vector.shape_cast %181 : vector<1x7x64xbf16> to vector<7x64xbf16>
    %183 = vector.shape_cast %180 : vector<7x64xbf16> to vector<1x7x64xbf16>
    tpu.vector_store %arg23[%c0_150, %c0_151, %c0_152], %183 {strides = array<i32>} : memref<2x7x64xbf16, #tpu.memory_space<vmem>>, vector<1x7x64xbf16>,
    %c28_153 = arith.constant 28 : index
    %c0_154 = arith.constant 0 : index
    %184 = tpu.strided_load %arg22[%c28_153, %c0_154] {strides = array<i32: 4, 1>} : memref<56x64xf32, #tpu.memory_space<vmem>>, vector<7x64xf32>
    %c29 = arith.constant 29 : index
    %c0_155 = arith.constant 0 : index
    %185 = tpu.strided_load %arg22[%c29, %c0_155] {strides = array<i32: 4, 1>} : memref<56x64xf32, #tpu.memory_space<vmem>>, vector<7x64xf32>
    %186 = arith.maximumf %184, %185 : vector<7x64xf32>
    %c30 = arith.constant 30 : index
    %c0_156 = arith.constant 0 : index
    %187 = tpu.strided_load %arg22[%c30, %c0_156] {strides = array<i32: 4, 1>} : memref<56x64xf32, #tpu.memory_space<vmem>>, vector<7x64xf32>
    %188 = arith.maximumf %186, %187 : vector<7x64xf32>
    %c31 = arith.constant 31 : index
    %c0_157 = arith.constant 0 : index
    %189 = tpu.strided_load %arg22[%c31, %c0_157] {strides = array<i32: 4, 1>} : memref<56x64xf32, #tpu.memory_space<vmem>>, vector<7x64xf32>
    %190 = arith.maximumf %188, %189 : vector<7x64xf32>
    %191 = arith.truncf %190 : vector<7x64xf32> to vector<7x64xbf16>
    %c1_158 = arith.constant 1 : index
    %c0_159 = arith.constant 0 : index
    %c0_160 = arith.constant 0 : index
    %192 = vector.load %arg23[%c1_158, %c0_159, %c0_160] : memref<2x7x64xbf16, #tpu.memory_space<vmem>>, vector<1x7x64xbf16>
    %193 = vector.shape_cast %192 : vector<1x7x64xbf16> to vector<7x64xbf16>
    %194 = vector.shape_cast %191 : vector<7x64xbf16> to vector<1x7x64xbf16>
    tpu.vector_store %arg23[%c1_158, %c0_159, %c0_160], %194 {strides = array<i32>} : memref<2x7x64xbf16, #tpu.memory_space<vmem>>, vector<1x7x64xbf16>,
    %c0_161 = arith.constant 0 : index
    %c0_162 = arith.constant 0 : index
    %c0_163 = arith.constant 0 : index
    %195 = vector.load %arg23[%c0_161, %c0_162, %c0_163] : memref<2x7x64xbf16, #tpu.memory_space<vmem>>, vector<1x5x64xbf16>
    %196 = vector.shape_cast %195 : vector<1x5x64xbf16> to vector<5x64xbf16>
    %c0_164 = arith.constant 0 : index
    %c0_165 = arith.constant 0 : index
    %197 = vector.load %arg19[%c0_164, %c0_165] : memref<244x192xbf16, #tpu.memory_space<vmem>>, vector<5x64xbf16>
    tpu.vector_store %arg19[%c0_164, %c0_165], %196 {strides = array<i32>} : memref<244x192xbf16, #tpu.memory_space<vmem>>, vector<5x64xbf16>,
    %c0_166 = arith.constant 0 : index
    %c1_167 = arith.constant 1 : index
    %c0_168 = arith.constant 0 : index
    %198 = vector.load %arg23[%c0_166, %c1_167, %c0_168] : memref<2x7x64xbf16, #tpu.memory_space<vmem>>, vector<1x5x64xbf16>
    %199 = vector.shape_cast %198 : vector<1x5x64xbf16> to vector<5x64xbf16>
    %c0_169 = arith.constant 0 : index
    %c64_170 = arith.constant 64 : index
    %200 = vector.load %arg19[%c0_169, %c64_170] : memref<244x192xbf16, #tpu.memory_space<vmem>>, vector<5x64xbf16>
    tpu.vector_store %arg19[%c0_169, %c64_170], %199 {strides = array<i32>} : memref<244x192xbf16, #tpu.memory_space<vmem>>, vector<5x64xbf16>,
    %c0_171 = arith.constant 0 : index
    %c2_172 = arith.constant 2 : index
    %c0_173 = arith.constant 0 : index
    %201 = vector.load %arg23[%c0_171, %c2_172, %c0_173] : memref<2x7x64xbf16, #tpu.memory_space<vmem>>, vector<1x5x64xbf16>
    %202 = vector.shape_cast %201 : vector<1x5x64xbf16> to vector<5x64xbf16>
    %c0_174 = arith.constant 0 : index
    %c128 = arith.constant 128 : index
    %203 = vector.load %arg19[%c0_174, %c128] : memref<244x192xbf16, #tpu.memory_space<vmem>>, vector<5x64xbf16>
    tpu.vector_store %arg19[%c0_174, %c128], %202 {strides = array<i32>} : memref<244x192xbf16, #tpu.memory_space<vmem>>, vector<5x64xbf16>,
    %c1_175 = arith.constant 1 : index
    %c0_176 = arith.constant 0 : index
    %c0_177 = arith.constant 0 : index
    %204 = vector.load %arg23[%c1_175, %c0_176, %c0_177] : memref<2x7x64xbf16, #tpu.memory_space<vmem>>, vector<1x5x64xbf16>
    %205 = vector.shape_cast %204 : vector<1x5x64xbf16> to vector<5x64xbf16>
    %c5 = arith.constant 5 : index
    %c0_178 = arith.constant 0 : index
    %206 = vector.load %arg19[%c5, %c0_178] : memref<244x192xbf16, #tpu.memory_space<vmem>>, vector<5x64xbf16>
    tpu.vector_store %arg19[%c5, %c0_178], %205 {strides = array<i32>} : memref<244x192xbf16, #tpu.memory_space<vmem>>, vector<5x64xbf16>,
    %c1_179 = arith.constant 1 : index
    %c1_180 = arith.constant 1 : index
    %c0_181 = arith.constant 0 : index
    %207 = vector.load %arg23[%c1_179, %c1_180, %c0_181] : memref<2x7x64xbf16, #tpu.memory_space<vmem>>, vector<1x5x64xbf16>
    %208 = vector.shape_cast %207 : vector<1x5x64xbf16> to vector<5x64xbf16>
    %c5_182 = arith.constant 5 : index
    %c64_183 = arith.constant 64 : index
    %209 = vector.load %arg19[%c5_182, %c64_183] : memref<244x192xbf16, #tpu.memory_space<vmem>>, vector<5x64xbf16>
    tpu.vector_store %arg19[%c5_182, %c64_183], %208 {strides = array<i32>} : memref<244x192xbf16, #tpu.memory_space<vmem>>, vector<5x64xbf16>,
    %c1_184 = arith.constant 1 : index
    %c2_185 = arith.constant 2 : index
    %c0_186 = arith.constant 0 : index
    %210 = vector.load %arg23[%c1_184, %c2_185, %c0_186] : memref<2x7x64xbf16, #tpu.memory_space<vmem>>, vector<1x5x64xbf16>
    %211 = vector.shape_cast %210 : vector<1x5x64xbf16> to vector<5x64xbf16>
    %c5_187 = arith.constant 5 : index
    %c128_188 = arith.constant 128 : index
    %212 = vector.load %arg19[%c5_187, %c128_188] : memref<244x192xbf16, #tpu.memory_space<vmem>>, vector<5x64xbf16>
    tpu.vector_store %arg19[%c5_187, %c128_188], %211 {strides = array<i32>} : memref<244x192xbf16, #tpu.memory_space<vmem>>, vector<5x64xbf16>,
    %c0_189 = arith.constant 0 : index
    %c0_190 = arith.constant 0 : index
    %213 = vector.load %arg19[%c0_189, %c0_190] : memref<244x192xbf16, #tpu.memory_space<vmem>>, vector<10x192xbf16>
    %c0_191 = arith.constant 0 : index
    %c0_192 = arith.constant 0 : index
    %214 = vector.load %arg10[%c0_191, %c0_192] : memref<192x64xbf16, #tpu.memory_space<vmem>>, vector<192x64xbf16>
    %cst_193 = arith.constant dense<0.000000e+00> : vector<10x64xf32>
    %215 = tpu.matmul %213, %214, %cst_193 {dimension_numbers = #tpu.dot_dimension_numbers<[1], [0], [0], [1], [0, 0, 1, 1], [], []>} : vector<10x192xbf16>, vector<192x64xbf16>, vector<10x64xf32> -> vector<10x64xf32>
    %cst_194 = arith.constant dense<0.000000e+00> : vector<64xf32>
    %216 = vector.multi_reduction <add>, %215, %cst_194 [0] : vector<10x64xf32> to vector<64xf32>
    %217 = vector.shape_cast %216 : vector<64xf32> to vector<1x64xf32>
    %218 = arith.mulf %215, %215 : vector<10x64xf32>
    %cst_195 = arith.constant dense<0.000000e+00> : vector<64xf32>
    %219 = vector.multi_reduction <add>, %218, %cst_195 [0] : vector<10x64xf32> to vector<64xf32>
    %220 = vector.shape_cast %219 : vector<64xf32> to vector<1x64xf32>
    %cst_196 = arith.constant 1.000000e+01 : f32
    %221 = vector.broadcast %cst_196 : f32 to vector<1x64xf32>
    %222 = arith.divf %217, %221 : vector<1x64xf32>
    %cst_197 = arith.constant 1.000000e+01 : f32
    %223 = vector.broadcast %cst_197 : f32 to vector<1x64xf32>
    %224 = arith.divf %220, %223 : vector<1x64xf32>
    %225 = arith.mulf %222, %222 : vector<1x64xf32>
    %226 = arith.subf %224, %225 : vector<1x64xf32>
    %cst_198 = arith.constant 0.000000e+00 : f32
    %227 = vector.broadcast %cst_198 : f32 to vector<1x64xf32>
    %228 = arith.maximumf %226, %227 : vector<1x64xf32>
    %c0_199 = arith.constant 0 : index
    %c0_200 = arith.constant 0 : index
    %229 = vector.load %arg11[%c0_199, %c0_200] : memref<1x64xf32, #tpu.memory_space<vmem>>, vector<1x64xf32>
    %cst_201 = arith.constant 9.99999974E-6 : f32
    %230 = vector.broadcast %cst_201 : f32 to vector<1x64xf32>
    %231 = arith.addf %228, %230 : vector<1x64xf32>
    %232 = math.rsqrt %231 : vector<1x64xf32>
    %233 = arith.mulf %229, %232 : vector<1x64xf32>
    %c0_202 = arith.constant 0 : index
    %c0_203 = arith.constant 0 : index
    %234 = vector.load %arg12[%c0_202, %c0_203] : memref<1x64xf32, #tpu.memory_space<vmem>>, vector<1x64xf32>
    %235 = arith.mulf %222, %233 : vector<1x64xf32>
    %236 = arith.subf %234, %235 : vector<1x64xf32>
    %237 = vector.broadcast %233 : vector<1x64xf32> to vector<10x64xf32>
    %238 = arith.mulf %215, %237 : vector<10x64xf32>
    %239 = vector.broadcast %236 : vector<1x64xf32> to vector<10x64xf32>
    %240 = arith.addf %238, %239 : vector<10x64xf32>
    %cst_204 = arith.constant 0.000000e+00 : f32
    %241 = vector.broadcast %cst_204 : f32 to vector<10x64xf32>
    %242 = arith.maximumf %240, %241 : vector<10x64xf32>
    %c0_205 = arith.constant 0 : index
    %c0_206 = arith.constant 0 : index
    %243 = vector.load %arg24[%c0_205, %c0_206] : memref<10x64xf32, #tpu.memory_space<vmem>>, vector<10x64xf32>
    tpu.vector_store %arg24[%c0_205, %c0_206], %242 {strides = array<i32>} : memref<10x64xf32, #tpu.memory_space<vmem>>, vector<10x64xf32>,
    %c0_207 = arith.constant 0 : index
    %c0_208 = arith.constant 0 : index
    %244 = tpu.strided_load %arg24[%c0_207, %c0_208] {strides = array<i32: 4, 1>} : memref<10x64xf32, #tpu.memory_space<vmem>>, vector<1x64xf32>
    %c1_209 = arith.constant 1 : index
    %c0_210 = arith.constant 0 : index
    %245 = tpu.strided_load %arg24[%c1_209, %c0_210] {strides = array<i32: 4, 1>} : memref<10x64xf32, #tpu.memory_space<vmem>>, vector<1x64xf32>
    %246 = arith.maximumf %244, %245 : vector<1x64xf32>
    %c2_211 = arith.constant 2 : index
    %c0_212 = arith.constant 0 : index
    %247 = tpu.strided_load %arg24[%c2_211, %c0_212] {strides = array<i32: 4, 1>} : memref<10x64xf32, #tpu.memory_space<vmem>>, vector<1x64xf32>
    %248 = arith.maximumf %246, %247 : vector<1x64xf32>
    %c3_213 = arith.constant 3 : index
    %c0_214 = arith.constant 0 : index
    %249 = tpu.strided_load %arg24[%c3_213, %c0_214] {strides = array<i32: 4, 1>} : memref<10x64xf32, #tpu.memory_space<vmem>>, vector<1x64xf32>
    %250 = arith.maximumf %248, %249 : vector<1x64xf32>
    %cst_215 = arith.constant dense<0.000000e+00> : vector<64xf32>
    %251 = vector.multi_reduction <add>, %250, %cst_215 [0] : vector<1x64xf32> to vector<64xf32>
    %252 = vector.shape_cast %251 : vector<64xf32> to vector<1x64xf32>
    %cst_216 = arith.constant 1.000000e+00 : f32
    %253 = vector.broadcast %cst_216 : f32 to vector<1x64xf32>
    %254 = arith.divf %252, %253 : vector<1x64xf32>
    %c0_217 = arith.constant 0 : index
    %c0_218 = arith.constant 0 : index
    %255 = vector.load %arg15[%c0_217, %c0_218] : memref<2x64xf32, #tpu.memory_space<vmem>>, vector<1x64xf32>
    tpu.vector_store %arg15[%c0_217, %c0_218], %254 {strides = array<i32>} : memref<2x64xf32, #tpu.memory_space<vmem>>, vector<1x64xf32>,
    %c5_219 = arith.constant 5 : index
    %c0_220 = arith.constant 0 : index
    %256 = tpu.strided_load %arg24[%c5_219, %c0_220] {strides = array<i32: 4, 1>} : memref<10x64xf32, #tpu.memory_space<vmem>>, vector<1x64xf32>
    %c6 = arith.constant 6 : index
    %c0_221 = arith.constant 0 : index
    %257 = tpu.strided_load %arg24[%c6, %c0_221] {strides = array<i32: 4, 1>} : memref<10x64xf32, #tpu.memory_space<vmem>>, vector<1x64xf32>
    %258 = arith.maximumf %256, %257 : vector<1x64xf32>
    %c7 = arith.constant 7 : index
    %c0_222 = arith.constant 0 : index
    %259 = tpu.strided_load %arg24[%c7, %c0_222] {strides = array<i32: 4, 1>} : memref<10x64xf32, #tpu.memory_space<vmem>>, vector<1x64xf32>
    %260 = arith.maximumf %258, %259 : vector<1x64xf32>
    %c8 = arith.constant 8 : index
    %c0_223 = arith.constant 0 : index
    %261 = tpu.strided_load %arg24[%c8, %c0_223] {strides = array<i32: 4, 1>} : memref<10x64xf32, #tpu.memory_space<vmem>>, vector<1x64xf32>
    %262 = arith.maximumf %260, %261 : vector<1x64xf32>
    %cst_224 = arith.constant dense<0.000000e+00> : vector<64xf32>
    %263 = vector.multi_reduction <add>, %262, %cst_224 [0] : vector<1x64xf32> to vector<64xf32>
    %264 = vector.shape_cast %263 : vector<64xf32> to vector<1x64xf32>
    %cst_225 = arith.constant 1.000000e+00 : f32
    %265 = vector.broadcast %cst_225 : f32 to vector<1x64xf32>
    %266 = arith.divf %264, %265 : vector<1x64xf32>
    %c1_226 = arith.constant 1 : index
    %c0_227 = arith.constant 0 : index
    %267 = vector.load %arg15[%c1_226, %c0_227] : memref<2x64xf32, #tpu.memory_space<vmem>>, vector<1x64xf32>
    tpu.vector_store %arg15[%c1_226, %c0_227], %266 {strides = array<i32>} : memref<2x64xf32, #tpu.memory_space<vmem>>, vector<1x64xf32>,
    %c0_228 = arith.constant 0 : index
    %c0_229 = arith.constant 0 : index
    %268 = vector.load %arg15[%c0_228, %c0_229] : memref<2x64xf32, #tpu.memory_space<vmem>>, vector<2x64xf32>
    %c0_230 = arith.constant 0 : index
    %c0_231 = arith.constant 0 : index
    %269 = vector.load %arg13[%c0_230, %c0_231] : memref<64x35xf32, #tpu.memory_space<vmem>>, vector<64x35xf32>
    %cst_232 = arith.constant dense<0.000000e+00> : vector<2x35xf32>
    %270 = tpu.matmul %268, %269, %cst_232 {dimension_numbers = #tpu.dot_dimension_numbers<[1], [0], [0], [1], [0, 0, 1, 1], [], []>} : vector<2x64xf32>, vector<64x35xf32>, vector<2x35xf32> -> vector<2x35xf32>
    %c0_233 = arith.constant 0 : index
    %c0_234 = arith.constant 0 : index
    %271 = vector.load %arg14[%c0_233, %c0_234] : memref<1x35xf32, #tpu.memory_space<vmem>>, vector<1x35xf32>
    %272 = vector.broadcast %271 : vector<1x35xf32> to vector<2x35xf32>
    %273 = arith.addf %270, %272 : vector<2x35xf32>
    %cst_235 = arith.constant dense<0xFF800000> : vector<2xf32>
    %274 = vector.multi_reduction <maximumf>, %273, %cst_235 [1] : vector<2x35xf32> to vector<2xf32>
    %275 = vector.shape_cast %274 : vector<2xf32> to vector<2x1xf32>
    %276 = vector.broadcast %275 : vector<2x1xf32> to vector<2x35xf32>
    %277 = arith.subf %273, %276 : vector<2x35xf32>
    %278 = math.exp %277 : vector<2x35xf32>
    %cst_236 = arith.constant dense<0.000000e+00> : vector<2xf32>
    %279 = vector.multi_reduction <add>, %278, %cst_236 [1] : vector<2x35xf32> to vector<2xf32>
    %280 = vector.shape_cast %279 : vector<2xf32> to vector<2x1xf32>
    %281 = math.log %280 : vector<2x1xf32>
    %282 = arith.addf %275, %281 : vector<2x1xf32>
    %283 = vector.broadcast %282 : vector<2x1xf32> to vector<2x35xf32>
    %284 = arith.subf %273, %283 : vector<2x35xf32>
    %c0_237 = arith.constant 0 : index
    %c0_238 = arith.constant 0 : index
    %285 = vector.load %arg16[%c0_237, %c0_238] : memref<2x35xf32, #tpu.memory_space<vmem>>, vector<2x35xf32>
    tpu.vector_store %arg16[%c0_237, %c0_238], %284 {strides = array<i32>} : memref<2x35xf32, #tpu.memory_space<vmem>>, vector<2x35xf32>,
    return
  }
}

</mosaic_0001>

<llo_original>
// kernel: audio_cnn_forward.1
$region0: #{audio_cnn_forward.1}
  #allocation0 [shape = 'u32[]', space=smem, size = 0x4, offset = 0x4, fixed_abs, tag = 'smem constant byte address 0x4 - core index']
  #allocation1 [shape = 'u32[144,128]{1,0:T(1,128)}', space=vmem, size = 0x12000, scoped, tag = 'internal scratch']
  #allocation2 [shape = 'f32[992,32]{1,0:T(8,128)}', space=vmem, size = 0x7c000, scoped, tag = 'scratch operand']
  #allocation3 [shape = 'bf16[2,124,32]{2,1,0:T(8,128)(2,1)}', space=vmem, size = 0x10000, scoped, tag = 'scratch operand']
  #allocation4 [shape = 'bf16[244,192]{1,0:T(8,128)(2,1)}', space=vmem, size = 0x1f000, scoped, tag = 'scratch operand']
  #allocation5 [shape = 'f32[244,32]{1,0:T(8,128)}', space=vmem, size = 0x1f000, scoped, tag = 'scratch operand']
  #allocation6 [shape = 'bf16[2,30,32]{2,1,0:T(8,128)(2,1)}', space=vmem, size = 0x4000, scoped, tag = 'scratch operand']
  #allocation7 [shape = 'f32[56,64]{1,0:T(8,128)}', space=vmem, size = 0x7000, scoped, tag = 'scratch operand']
  #allocation8 [shape = 'bf16[2,7,64]{2,1,0:T(8,128)(2,1)}', space=vmem, size = 0x1000, scoped, tag = 'scratch operand']
  #allocation9 [shape = 'f32[10,64]{1,0:T(8,128)}', space=vmem, size = 0x2000, scoped, tag = 'scratch operand']
  %s0 = inlined_call_operand.vmem [shape: bf16[992,80], index: 0, kind: input, shape index: {}]
  %s1 = inlined_call_operand.vmem [shape: bf16[80,32], index: 1, kind: input, shape index: {}]
  %s2 = inlined_call_operand.vmem [shape: f32[1,32], index: 2, kind: input, shape index: {}]
  %s3 = inlined_call_operand.vmem [shape: f32[1,32], index: 3, kind: input, shape index: {}]
  %s4 = inlined_call_operand.vmem [shape: bf16[96,32], index: 4, kind: input, shape index: {}]
  %s5 = inlined_call_operand.vmem [shape: f32[1,32], index: 5, kind: input, shape index: {}]
  %s6 = inlined_call_operand.vmem [shape: f32[1,32], index: 6, kind: input, shape index: {}]
  %s7 = inlined_call_operand.vmem [shape: bf16[96,64], index: 7, kind: input, shape index: {}]
  %s8 = inlined_call_operand.vmem [shape: f32[1,64], index: 8, kind: input, shape index: {}]
  %s9 = inlined_call_operand.vmem [shape: f32[1,64], index: 9, kind: input, shape index: {}]
  %s10 = inlined_call_operand.vmem [shape: bf16[192,64], index: 10, kind: input, shape index: {}]
  %s11 = inlined_call_operand.vmem [shape: f32[1,64], index: 11, kind: input, shape index: {}]
  %s12 = inlined_call_operand.vmem [shape: f32[1,64], index: 12, kind: input, shape index: {}]
  %s13 = inlined_call_operand.vmem [shape: f32[64,35], index: 13, kind: input, shape index: {}]
  %s14 = inlined_call_operand.vmem [shape: f32[1,35], index: 14, kind: input, shape index: {}]
  %s15 = inlined_call_operand.hbm [shape: f32[2,64], index: 15, kind: output, shape index: {0}]
  %s16 = inlined_call_operand.hbm [shape: f32[2,35], index: 16, kind: output, shape index: {1}]
  %17 = xla_tuple %s15, %s16
  %s18 = sld [smem:[#allocation0]]
  $region78: #{audio_cnn_forward.1} parent=0
    _
  %s20 = ssub.s32 1, %s18
  %s21 = scalar_select 0, %s20, %s18
  $region1: #{audio_cnn_forward.1} parent=0
    #allocation10 [shape = 'u8[1024]{0}', space=vmem, size = 0x400, scoped, tag = 'output window, operand 0, single buffered']
    #allocation11 [shape = 's32[1]{0}', space=sflag, size = 0x4, scoped, tag = 'scoped memory for audio_cnn_forward.1']
    #allocation12 [shape = 'u8[1024]{0}', space=vmem, size = 0x400, scoped, tag = 'output window, operand 1, single buffered']
    #allocation13 [shape = 's32[1]{0}', space=sflag, size = 0x4, scoped, tag = 'scoped memory for audio_cnn_forward.1']
    %22 = vsyncpa [#allocation11], 0
    %23 = vsyncpa [#allocation13], 0
    // Predicated region
    $region2: #{audio_cnn_forward.1} parent=1 // pred_check
      _
    $region3: #{audio_cnn_forward.1} parent=1 // pred_check_branch
      %25 = sbr.rel (0) target = $region5
    $region4: #{audio_cnn_forward.1} parent=1 // pred_region
      _
    $region5: #{audio_cnn_forward.1} parent=1 // pred_fallthru
      _
    // Predicated region
    $region6: #{audio_cnn_forward.1} parent=1 // pred_check
      _
    $region7: #{audio_cnn_forward.1} parent=1 // pred_check_branch
      %27 = sbr.rel (0) target = $region9
    $region8: #{audio_cnn_forward.1} parent=1 // pred_region
      _
    $region9: #{audio_cnn_forward.1} parent=1 // pred_fallthru
      _
    // Predicated region
    $region10: #{audio_cnn_forward.1} parent=1 // pred_check
      _
    $region11: #{audio_cnn_forward.1} parent=1 // pred_check_branch
      %29 = sbr.rel (0) target = $region13
    $region12: #{audio_cnn_forward.1} parent=1 // pred_region
      _
    $region13: #{audio_cnn_forward.1} parent=1 // pred_fallthru
      _
    // Predicated region
    $region14: #{audio_cnn_forward.1} parent=1 // pred_check
      _
    $region15: #{audio_cnn_forward.1} parent=1 // pred_check_branch
      %31 = sbr.rel (0) target = $region17
    $region16: #{audio_cnn_forward.1} parent=1 // pred_region
      _
    $region17: #{audio_cnn_forward.1} parent=1 // pred_fallthru
      _
    // Predicated region
    $region18: #{audio_cnn_forward.1} parent=1 // pred_check
      _
    $region19: #{audio_cnn_forward.1} parent=1 // pred_check_branch
      %33 = sbr.rel (0) target = $region21
    $region20: #{audio_cnn_forward.1} parent=1 // pred_region
      _
    $region21: #{audio_cnn_forward.1} parent=1 // pred_fallthru
      _
    // Predicated region
    $region22: #{audio_cnn_forward.1} parent=1 // pred_check
      _
    $region23: #{audio_cnn_forward.1} parent=1 // pred_check_branch
      %35 = sbr.rel (0) target = $region25
    $region24: #{audio_cnn_forward.1} parent=1 // pred_region
      _
    $region25: #{audio_cnn_forward.1} parent=1 // pred_fallthru
      _
    // Predicated region
    $region26: #{audio_cnn_forward.1} parent=1 // pred_check
      _
    $region27: #{audio_cnn_forward.1} parent=1 // pred_check_branch
      %37 = sbr.rel (0) target = $region29
    $region28: #{audio_cnn_forward.1} parent=1 // pred_region
      _
    $region29: #{audio_cnn_forward.1} parent=1 // pred_fallthru
      _
    // Predicated region
    $region30: #{audio_cnn_forward.1} parent=1 // pred_check
      _
    $region31: #{audio_cnn_forward.1} parent=1 // pred_check_branch
      %39 = sbr.rel (0) target = $region33
    $region32: #{audio_cnn_forward.1} parent=1 // pred_region
      _
    $region33: #{audio_cnn_forward.1} parent=1 // pred_fallthru
      _
    // Predicated region
    $region34: #{audio_cnn_forward.1} parent=1 // pred_check
      _
    $region35: #{audio_cnn_forward.1} parent=1 // pred_check_branch
      %41 = sbr.rel (0) target = $region37
    $region36: #{audio_cnn_forward.1} parent=1 // pred_region
      _
    $region37: #{audio_cnn_forward.1} parent=1 // pred_fallthru
      _
    // Predicated region
    $region38: #{audio_cnn_forward.1} parent=1 // pred_check
      _
    $region39: #{audio_cnn_forward.1} parent=1 // pred_check_branch
      %43 = sbr.rel (0) target = $region41
    $region40: #{audio_cnn_forward.1} parent=1 // pred_region
      _
    $region41: #{audio_cnn_forward.1} parent=1 // pred_fallthru
      _
    // Predicated region
    $region42: #{audio_cnn_forward.1} parent=1 // pred_check
      _
    $region43: #{audio_cnn_forward.1} parent=1 // pred_check_branch
      %45 = sbr.rel (0) target = $region45
    $region44: #{audio_cnn_forward.1} parent=1 // pred_region
      _
    $region45: #{audio_cnn_forward.1} parent=1 // pred_fallthru
      _
    // Predicated region
    $region46: #{audio_cnn_forward.1} parent=1 // pred_check
      _
    $region47: #{audio_cnn_forward.1} parent=1 // pred_check_branch
      %47 = sbr.rel (0) target = $region49
    $region48: #{audio_cnn_forward.1} parent=1 // pred_region
      _
    $region49: #{audio_cnn_forward.1} parent=1 // pred_fallthru
      _
    // Predicated region
    $region50: #{audio_cnn_forward.1} parent=1 // pred_check
      _
    $region51: #{audio_cnn_forward.1} parent=1 // pred_check_branch
      %49 = sbr.rel (0) target = $region53
    $region52: #{audio_cnn_forward.1} parent=1 // pred_region
      _
    $region53: #{audio_cnn_forward.1} parent=1 // pred_fallthru
      _
    // Predicated region
    $region54: #{audio_cnn_forward.1} parent=1 // pred_check
      _
    $region55: #{audio_cnn_forward.1} parent=1 // pred_check_branch
      %51 = sbr.rel (0) target = $region57
    $region56: #{audio_cnn_forward.1} parent=1 // pred_region
      _
    $region57: #{audio_cnn_forward.1} parent=1 // pred_fallthru
      _
    // Predicated region
    $region58: #{audio_cnn_forward.1} parent=1 // pred_check
      _
    $region59: #{audio_cnn_forward.1} parent=1 // pred_check_branch
      %53 = sbr.rel (0) target = $region61
    $region60: #{audio_cnn_forward.1} parent=1 // pred_region
      _
    $region61: #{audio_cnn_forward.1} parent=1 // pred_fallthru
      _
    %v55 = vld [vmem:[%s0] sm:$0xf]
    %v56 = vld [vmem:[%s0 + $0x4] sm:$0xf]
    %v57 = vld [vmem:[%s0 + $0x8] sm:$0xf]
    %v58 = vld [vmem:[%s0 + $0xc] sm:$0xf]
    %v59 = vld [vmem:[%s0 + $0x10] sm:$0xf]
    %v60 = vld [vmem:[%s0 + $0x14] sm:$0xf]
    %v61 = vld [vmem:[%s0 + $0x18] sm:$0xf]
    %v62 = vld [vmem:[%s0 + $0x1c] sm:$0xf]
    %v63 = vld [vmem:[%s0 + $0x20] sm:$0xf]
    %v64 = vld [vmem:[%s0 + $0x24] sm:$0xf]
    %v65 = vld [vmem:[%s0 + $0x28] sm:$0xf]
    %v66 = vld [vmem:[%s0 + $0x2c] sm:$0xf]
    %v67 = vld [vmem:[%s0 + $0x30] sm:$0xf]
    %v68 = vld [vmem:[%s0 + $0x34] sm:$0xf]
    %v69 = vld [vmem:[%s0 + $0x38] sm:$0xf]
    %v70 = vld [vmem:[%s0 + $0x3c] sm:$0xf]
    %v71 = vld [vmem:[%s0 + $0x40] sm:$0xf]
    %v72 = vld [vmem:[%s0 + $0x44] sm:$0xf]
    %v73 = vld [vmem:[%s0 + $0x48] sm:$0xf]
    %v74 = vld [vmem:[%s0 + $0x4c] sm:$0xf]
    %v75 = vld [vmem:[%s0 + $0x50] sm:$0xf]
    %v76 = vld [vmem:[%s0 + $0x54] sm:$0xf]
    %v77 = vld [vmem:[%s0 + $0x58] sm:$0xf]
    %v78 = vld [vmem:[%s0 + $0x5c] sm:$0xf]
    %v79 = vld [vmem:[%s0 + $0x60] sm:$0xf]
    %v80 = vld [vmem:[%s0 + $0x64] sm:$0xf]
    %v81 = vld [vmem:[%s0 + $0x68] sm:$0xf]
    %v82 = vld [vmem:[%s0 + $0x6c] sm:$0xf]
    %v83 = vld [vmem:[%s0 + $0x70] sm:$0xf]
    %v84 = vld [vmem:[%s0 + $0x74] sm:$0xf]
    %v85 = vld [vmem:[%s0 + $0x78] sm:$0xf]
    %v86 = vld [vmem:[%s0 + $0x7c] sm:$0xf]
    %v87 = vld [vmem:[%s0 + $0x80] sm:$0xf]
    %v88 = vld [vmem:[%s0 + $0x84] sm:$0xf]
    %v89 = vld [vmem:[%s0 + $0x88] sm:$0xf]
    %v90 = vld [vmem:[%s0 + $0x8c] sm:$0xf]
    %v91 = vld [vmem:[%s0 + $0x90] sm:$0xf]
    %v92 = vld [vmem:[%s0 + $0x94] sm:$0xf]
    %v93 = vld [vmem:[%s0 + $0x98] sm:$0xf]
    %v94 = vld [vmem:[%s0 + $0x9c] sm:$0xf]
    %v95 = vld [vmem:[%s0 + $0xa0] sm:$0xf]
    %v96 = vld [vmem:[%s0 + $0xa4] sm:$0xf]
    %v97 = vld [vmem:[%s0 + $0xa8] sm:$0xf]
    %v98 = vld [vmem:[%s0 + $0xac] sm:$0xf]
    %v99 = vld [vmem:[%s0 + $0xb0] sm:$0xf]
    %v100 = vld [vmem:[%s0 + $0xb4] sm:$0xf]
    %v101 = vld [vmem:[%s0 + $0xb8] sm:$0xf]
    %v102 = vld [vmem:[%s0 + $0xbc] sm:$0xf]
    %v103 = vld [vmem:[%s0 + $0xc0] sm:$0xf]
    %v104 = vld [vmem:[%s0 + $0xc4] sm:$0xf]
    %v105 = vld [vmem:[%s0 + $0xc8] sm:$0xf]
    %v106 = vld [vmem:[%s0 + $0xcc] sm:$0xf]
    %v107 = vld [vmem:[%s0 + $0xd0] sm:$0xf]
    %v108 = vld [vmem:[%s0 + $0xd4] sm:$0xf]
    %v109 = vld [vmem:[%s0 + $0xd8] sm:$0xf]
    %v110 = vld [vmem:[%s0 + $0xdc] sm:$0xf]
    %v111 = vld [vmem:[%s0 + $0xe0] sm:$0xf]
    %v112 = vld [vmem:[%s0 + $0xe4] sm:$0xf]
    %v113 = vld [vmem:[%s0 + $0xe8] sm:$0xf]
    %v114 = vld [vmem:[%s0 + $0xec] sm:$0xf]
    %v115 = vld [vmem:[%s0 + $0xf0] sm:$0xf]
    %v116 = vld [vmem:[%s0 + $0xf4] sm:$0xf]
    %v117 = vld [vmem:[%s0 + $0xf8] sm:$0xf]
    %v118 = vld [vmem:[%s0 + $0xfc] sm:$0xf]
    %v119 = vld [vmem:[%s0 + $0x100] sm:$0xf]
    %v120 = vld [vmem:[%s0 + $0x104] sm:$0xf]
    %v121 = vld [vmem:[%s0 + $0x108] sm:$0xf]
    %v122 = vld [vmem:[%s0 + $0x10c] sm:$0xf]
    %v123 = vld [vmem:[%s0 + $0x110] sm:$0xf]
    %v124 = vld [vmem:[%s0 + $0x114] sm:$0xf]
    %v125 = vld [vmem:[%s0 + $0x118] sm:$0xf]
    %v126 = vld [vmem:[%s0 + $0x11c] sm:$0xf]
    %v127 = vld [vmem:[%s0 + $0x120] sm:$0xf]
    %v128 = vld [vmem:[%s0 + $0x124] sm:$0xf]
    %v129 = vld [vmem:[%s0 + $0x128] sm:$0xf]
    %v130 = vld [vmem:[%s0 + $0x12c] sm:$0xf]
    %v131 = vld [vmem:[%s0 + $0x130] sm:$0xf]
    %v132 = vld [vmem:[%s0 + $0x134] sm:$0xf]
    %v133 = vld [vmem:[%s0 + $0x138] sm:$0xf]
    %v134 = vld [vmem:[%s0 + $0x13c] sm:$0xf]
    %v135 = vld [vmem:[%s0 + $0x140] sm:$0xf]
    %v136 = vld [vmem:[%s0 + $0x144] sm:$0xf]
    %v137 = vld [vmem:[%s0 + $0x148] sm:$0xf]
    %v138 = vld [vmem:[%s0 + $0x14c] sm:$0xf]
    %v139 = vld [vmem:[%s0 + $0x150] sm:$0xf]
    %v140 = vld [vmem:[%s0 + $0x154] sm:$0xf]
    %v141 = vld [vmem:[%s0 + $0x158] sm:$0xf]
    %v142 = vld [vmem:[%s0 + $0x15c] sm:$0xf]
    %v143 = vld [vmem:[%s0 + $0x160] sm:$0xf]
    %v144 = vld [vmem:[%s0 + $0x164] sm:$0xf]
    %v145 = vld [vmem:[%s0 + $0x168] sm:$0xf]
    %v146 = vld [vmem:[%s0 + $0x16c] sm:$0xf]
    %v147 = vld [vmem:[%s0 + $0x170] sm:$0xf]
    %v148 = vld [vmem:[%s0 + $0x174] sm:$0xf]
    %v149 = vld [vmem:[%s0 + $0x178] sm:$0xf]
    %v150 = vld [vmem:[%s0 + $0x17c] sm:$0xf]
    %v151 = vld [vmem:[%s0 + $0x180] sm:$0xf]
    %v152 = vld [vmem:[%s0 + $0x184] sm:$0xf]
    %v153 = vld [vmem:[%s0 + $0x188] sm:$0xf]
    %v154 = vld [vmem:[%s0 + $0x18c] sm:$0xf]
    %v155 = vld [vmem:[%s0 + $0x190] sm:$0xf]
    %v156 = vld [vmem:[%s0 + $0x194] sm:$0xf]
    %v157 = vld [vmem:[%s0 + $0x198] sm:$0xf]
    %v158 = vld [vmem:[%s0 + $0x19c] sm:$0xf]
    %v159 = vld [vmem:[%s0 + $0x1a0] sm:$0xf]
    %v160 = vld [vmem:[%s0 + $0x1a4] sm:$0xf]
    %v161 = vld [vmem:[%s0 + $0x1a8] sm:$0xf]
    %v162 = vld [vmem:[%s0 + $0x1ac] sm:$0xf]
    %v163 = vld [vmem:[%s0 + $0x1b0] sm:$0xf]
    %v164 = vld [vmem:[%s0 + $0x1b4] sm:$0xf]
    %v165 = vld [vmem:[%s0 + $0x1b8] sm:$0xf]
    %v166 = vld [vmem:[%s0 + $0x1bc] sm:$0xf]
    %v167 = vld [vmem:[%s0 + $0x1c0] sm:$0xf]
    %v168 = vld [vmem:[%s0 + $0x1c4] sm:$0xf]
    %v169 = vld [vmem:[%s0 + $0x1c8] sm:$0xf]
    %v170 = vld [vmem:[%s0 + $0x1cc] sm:$0xf]
    %v171 = vld [vmem:[%s0 + $0x1d0] sm:$0xf]
    %v172 = vld [vmem:[%s0 + $0x1d4] sm:$0xf]
    %v173 = vld [vmem:[%s0 + $0x1d8] sm:$0xf]
    %v174 = vld [vmem:[%s0 + $0x1dc] sm:$0xf]
    %v175 = vld [vmem:[%s0 + $0x1e0] sm:$0xf]
    %v176 = vld [vmem:[%s0 + $0x1e4] sm:$0xf]
    %v177 = vld [vmem:[%s0 + $0x1e8] sm:$0xf]
    %v178 = vld [vmem:[%s0 + $0x1ec] sm:$0xf]
    %v179 = vld [vmem:[%s1] sm:$0xf]
    %v180 = vld [vmem:[%s1 + $0x4] sm:$0xf]
    %v181 = vld [vmem:[%s1 + $0x8] sm:$0xf]
    %v182 = vld [vmem:[%s1 + $0xc] sm:$0xf]
    %v183 = vld [vmem:[%s1 + $0x10] sm:$0xf]
    %v184 = vld [vmem:[%s1 + $0x14] sm:$0xf]
    %v185 = vld [vmem:[%s1 + $0x18] sm:$0xf]
    %v186 = vld [vmem:[%s1 + $0x1c] sm:$0xf]
    %v187 = vld [vmem:[%s1 + $0x20] sm:$0xf]
    %v188 = vld [vmem:[%s1 + $0x24] sm:$0xf]
    %v313 = vunpack.c.l.b16 %v55
    %v314 = vunpack.c.l.b16 %v56
    %v315 = vunpack.c.l.b16 %v57
    %v316 = vunpack.c.l.b16 %v58
    %v317 = vunpack.c.l.b16 %v59
    %v318 = vunpack.c.l.b16 %v60
    %v319 = vunpack.c.l.b16 %v61
    %v320 = vunpack.c.l.b16 %v62
    %v321 = vunpack.c.l.b16 %v63
    %v322 = vunpack.c.l.b16 %v64
    %v323 = vunpack.c.l.b16 %v65
    %v324 = vunpack.c.l.b16 %v66
    %v325 = vunpack.c.l.b16 %v67
    %v326 = vunpack.c.l.b16 %v68
    %v327 = vunpack.c.l.b16 %v69
    %v328 = vunpack.c.l.b16 %v70
    %v329 = vunpack.c.l.b16 %v71
    %v330 = vunpack.c.l.b16 %v72
    %v331 = vunpack.c.l.b16 %v73
    %v332 = vunpack.c.l.b16 %v74
    %v333 = vunpack.c.l.b16 %v75
    %v334 = vunpack.c.l.b16 %v76
    %v335 = vunpack.c.l.b16 %v77
    %v336 = vunpack.c.l.b16 %v78
    %v337 = vunpack.c.l.b16 %v79
    %v338 = vunpack.c.l.b16 %v80
    %v339 = vunpack.c.l.b16 %v81
    %v340 = vunpack.c.l.b16 %v82
    %v341 = vunpack.c.l.b16 %v83
    %v342 = vunpack.c.l.b16 %v84
    %v343 = vunpack.c.l.b16 %v85
    %v344 = vunpack.c.l.b16 %v86
    %v345 = vunpack.c.l.b16 %v87
    %v346 = vunpack.c.l.b16 %v88
    %v347 = vunpack.c.l.b16 %v89
    %v348 = vunpack.c.l.b16 %v90
    %v349 = vunpack.c.l.b16 %v91
    %v350 = vunpack.c.l.b16 %v92
    %v351 = vunpack.c.l.b16 %v93
    %v352 = vunpack.c.l.b16 %v94
    %v353 = vunpack.c.l.b16 %v95
    %v354 = vunpack.c.l.b16 %v96
    %v355 = vunpack.c.l.b16 %v97
    %v356 = vunpack.c.l.b16 %v98
    %v357 = vunpack.c.l.b16 %v99
    %v358 = vunpack.c.l.b16 %v100
    %v359 = vunpack.c.l.b16 %v101
    %v360 = vunpack.c.l.b16 %v102
    %v361 = vunpack.c.l.b16 %v103
    %v362 = vunpack.c.l.b16 %v104
    %v363 = vunpack.c.l.b16 %v105
    %v364 = vunpack.c.l.b16 %v106
    %v365 = vunpack.c.l.b16 %v107
    %v366 = vunpack.c.l.b16 %v108
    %v367 = vunpack.c.l.b16 %v109
    %v368 = vunpack.c.l.b16 %v110
    %v369 = vunpack.c.l.b16 %v111
    %v370 = vunpack.c.l.b16 %v112
    %v371 = vunpack.c.l.b16 %v113
    %v372 = vunpack.c.l.b16 %v114
    %v373 = vunpack.c.l.b16 %v115
    %v374 = vunpack.c.l.b16 %v116
    %v375 = vunpack.c.l.b16 %v117
    %v376 = vunpack.c.l.b16 %v118
    %v377 = vunpack.c.l.b16 %v119
    %v378 = vunpack.c.l.b16 %v120
    %v379 = vunpack.c.l.b16 %v121
    %v380 = vunpack.c.l.b16 %v122
    %v381 = vunpack.c.l.b16 %v123
    %v382 = vunpack.c.l.b16 %v124
    %v383 = vunpack.c.l.b16 %v125
    %v384 = vunpack.c.l.b16 %v126
    %v385 = vunpack.c.l.b16 %v127
    %v386 = vunpack.c.l.b16 %v128
    %v387 = vunpack.c.l.b16 %v129
    %v388 = vunpack.c.l.b16 %v130
    %v389 = vunpack.c.l.b16 %v131
    %v390 = vunpack.c.l.b16 %v132
    %v391 = vunpack.c.l.b16 %v133
    %v392 = vunpack.c.l.b16 %v134
    %v393 = vunpack.c.l.b16 %v135
    %v394 = vunpack.c.l.b16 %v136
    %v395 = vunpack.c.l.b16 %v137
    %v396 = vunpack.c.l.b16 %v138
    %v397 = vunpack.c.l.b16 %v139
    %v398 = vunpack.c.l.b16 %v140
    %v399 = vunpack.c.l.b16 %v141
    %v400 = vunpack.c.l.b16 %v142
    %v401 = vunpack.c.l.b16 %v143
    %v402 = vunpack.c.l.b16 %v144
    %v403 = vunpack.c.l.b16 %v145
    %v404 = vunpack.c.l.b16 %v146
    %v405 = vunpack.c.l.b16 %v147
    %v406 = vunpack.c.l.b16 %v148
    %v407 = vunpack.c.l.b16 %v149
    %v408 = vunpack.c.l.b16 %v150
    %v409 = vunpack.c.l.b16 %v151
    %v410 = vunpack.c.l.b16 %v152
    %v411 = vunpack.c.l.b16 %v153
    %v412 = vunpack.c.l.b16 %v154
    %v413 = vunpack.c.l.b16 %v155
    %v414 = vunpack.c.l.b16 %v156
    %v415 = vunpack.c.l.b16 %v157
    %v416 = vunpack.c.l.b16 %v158
    %v417 = vunpack.c.l.b16 %v159
    %v418 = vunpack.c.l.b16 %v160
    %v419 = vunpack.c.l.b16 %v161
    %v420 = vunpack.c.l.b16 %v162
    %v421 = vunpack.c.l.b16 %v163
    %v422 = vunpack.c.l.b16 %v164
    %v423 = vunpack.c.l.b16 %v165
    %v424 = vunpack.c.l.b16 %v166
    %v425 = vunpack.c.l.b16 %v167
    %v426 = vunpack.c.l.b16 %v168
    %v427 = vunpack.c.l.b16 %v169
    %v428 = vunpack.c.l.b16 %v170
    %v429 = vunpack.c.l.b16 %v171
    %v430 = vunpack.c.l.b16 %v172
    %v431 = vunpack.c.l.b16 %v173
    %v432 = vunpack.c.l.b16 %v174
    %v433 = vunpack.c.l.b16 %v175
    %v434 = vunpack.c.l.b16 %v176
    %v435 = vunpack.c.l.b16 %v177
    %v436 = vunpack.c.l.b16 %v178
    %v437 = vpack.c.b16 %v314, %v313
    %v438 = vpack.c.b16 %v316, %v315
    %v439 = vpack.c.b16 %v318, %v317
    %v440 = vpack.c.b16 %v320, %v319
    %v441 = vpack.c.b16 %v322, %v321
    %v442 = vpack.c.b16 %v324, %v323
    %v443 = vpack.c.b16 %v326, %v325
    %v444 = vpack.c.b16 %v328, %v327
    %v445 = vpack.c.b16 %v330, %v329
    %v446 = vpack.c.b16 %v332, %v331
    %v447 = vpack.c.b16 %v334, %v333
    %v448 = vpack.c.b16 %v336, %v335
    %v449 = vpack.c.b16 %v338, %v337
    %v450 = vpack.c.b16 %v340, %v339
    %v451 = vpack.c.b16 %v342, %v341
    %v452 = vpack.c.b16 %v344, %v343
    %v453 = vpack.c.b16 %v346, %v345
    %v454 = vpack.c.b16 %v348, %v347
    %v455 = vpack.c.b16 %v350, %v349
    %v456 = vpack.c.b16 %v352, %v351
    %v457 = vpack.c.b16 %v354, %v353
    %v458 = vpack.c.b16 %v356, %v355
    %v459 = vpack.c.b16 %v358, %v357
    %v460 = vpack.c.b16 %v360, %v359
    %v461 = vpack.c.b16 %v362, %v361
    %v462 = vpack.c.b16 %v364, %v363
    %v463 = vpack.c.b16 %v366, %v365
    %v464 = vpack.c.b16 %v368, %v367
    %v465 = vpack.c.b16 %v370, %v369
    %v466 = vpack.c.b16 %v372, %v371
    %v467 = vpack.c.b16 %v374, %v373
    %v468 = vpack.c.b16 %v376, %v375
    %v469 = vpack.c.b16 %v378, %v377
    %v470 = vpack.c.b16 %v380, %v379
    %v471 = vpack.c.b16 %v382, %v381
    %v472 = vpack.c.b16 %v384, %v383
    %v473 = vpack.c.b16 %v386, %v385
    %v474 = vpack.c.b16 %v388, %v387
    %v475 = vpack.c.b16 %v390, %v389
    %v476 = vpack.c.b16 %v392, %v391
    %v477 = vpack.c.b16 %v394, %v393
    %v478 = vpack.c.b16 %v396, %v395
    %v479 = vpack.c.b16 %v398, %v397
    %v480 = vpack.c.b16 %v400, %v399
    %v481 = vpack.c.b16 %v402, %v401
    %v482 = vpack.c.b16 %v404, %v403
    %v483 = vpack.c.b16 %v406, %v405
    %v484 = vpack.c.b16 %v408, %v407
    %v485 = vpack.c.b16 %v410, %v409
    %v486 = vpack.c.b16 %v412, %v411
    %v487 = vpack.c.b16 %v414, %v413
    %v488 = vpack.c.b16 %v416, %v415
    %v489 = vpack.c.b16 %v418, %v417
    %v490 = vpack.c.b16 %v420, %v419
    %v491 = vpack.c.b16 %v422, %v421
    %v492 = vpack.c.b16 %v424, %v423
    %v493 = vpack.c.b16 %v426, %v425
    %v494 = vpack.c.b16 %v428, %v427
    %v495 = vpack.c.b16 %v430, %v429
    %v496 = vpack.c.b16 %v432, %v431
    %v497 = vpack.c.b16 %v434, %v433
    %v498 = vpack.c.b16 %v436, %v435
    %v509 = vunpack.c.l.b16 %v179
    %v510 = vunpack.c.l.b16 %v180
    %v511 = vunpack.c.l.b16 %v181
    %v512 = vunpack.c.l.b16 %v182
    %v513 = vunpack.c.l.b16 %v183
    %v514 = vunpack.c.l.b16 %v184
    %v515 = vunpack.c.l.b16 %v185
    %v516 = vunpack.c.l.b16 %v186
    %v517 = vunpack.c.l.b16 %v187
    %v518 = vunpack.c.l.b16 %v188
    %v519 = vpack.c.b16 %v510, %v509
    %v520 = vpack.c.b16 %v512, %v511
    %v521 = vpack.c.b16 %v514, %v513
    %v522 = vpack.c.b16 %v516, %v515
    %v523 = vpack.c.b16 %v518, %v517
    %vm529 = vcmask 654336
    %v531 = vsel %vm529, %v437, 0
    %v534 = vsel %vm529, %v438, 0
    %v537 = vsel %vm529, %v439, 0
    %v540 = vsel %vm529, %v440, 0
    %v543 = vsel %vm529, %v441, 0
    %v546 = vsel %vm529, %v442, 0
    %v549 = vsel %vm529, %v443, 0
    %v552 = vsel %vm529, %v444, 0
    %v555 = vsel %vm529, %v445, 0
    %v558 = vsel %vm529, %v446, 0
    %v561 = vsel %vm529, %v447, 0
    %v564 = vsel %vm529, %v448, 0
    %v567 = vsel %vm529, %v449, 0
    %v570 = vsel %vm529, %v450, 0
    %v573 = vsel %vm529, %v451, 0
    %v576 = vsel %vm529, %v452, 0
    %v579 = vsel %vm529, %v453, 0
    %v582 = vsel %vm529, %v454, 0
    %v585 = vsel %vm529, %v455, 0
    %v588 = vsel %vm529, %v456, 0
    %v591 = vsel %vm529, %v457, 0
    %v594 = vsel %vm529, %v458, 0
    %v597 = vsel %vm529, %v459, 0
    %v600 = vsel %vm529, %v460, 0
    %v603 = vsel %vm529, %v461, 0
    %v606 = vsel %vm529, %v462, 0
    %v609 = vsel %vm529, %v463, 0
    %v612 = vsel %vm529, %v464, 0
    %v615 = vsel %vm529, %v465, 0
    %v618 = vsel %vm529, %v466, 0
    %v621 = vsel %vm529, %v467, 0
    %v624 = vsel %vm529, %v468, 0
    %v627 = vsel %vm529, %v469, 0
    %v630 = vsel %vm529, %v470, 0
    %v633 = vsel %vm529, %v471, 0
    %v636 = vsel %vm529, %v472, 0
    %v639 = vsel %vm529, %v473, 0
    %v642 = vsel %vm529, %v474, 0
    %v645 = vsel %vm529, %v475, 0
    %v648 = vsel %vm529, %v476, 0
    %v651 = vsel %vm529, %v477, 0
    %v654 = vsel %vm529, %v478, 0
    %v657 = vsel %vm529, %v479, 0
    %v660 = vsel %vm529, %v480, 0
    %v663 = vsel %vm529, %v481, 0
    %v666 = vsel %vm529, %v482, 0
    %v669 = vsel %vm529, %v483, 0
    %v672 = vsel %vm529, %v484, 0
    %v675 = vsel %vm529, %v485, 0
    %v678 = vsel %vm529, %v486, 0
    %v681 = vsel %vm529, %v487, 0
    %v684 = vsel %vm529, %v488, 0
    %v687 = vsel %vm529, %v489, 0
    %v690 = vsel %vm529, %v490, 0
    %v693 = vsel %vm529, %v491, 0
    %v696 = vsel %vm529, %v492, 0
    %v699 = vsel %vm529, %v493, 0
    %v702 = vsel %vm529, %v494, 0
    %v705 = vsel %vm529, %v495, 0
    %v708 = vsel %vm529, %v496, 0
    %v711 = vsel %vm529, %v497, 0
    %v714 = vsel %vm529, %v498, 0
    %716 = vmatprep.subr.bf16.mxu0 0
    %717 = vmatpush1.bf16.msra.mxu0 %v519
    %718 = vmatprep.subr.bf16.mxu0 0
    %719 = vmatpush1.bf16.msra.mxu0 %v520
    %720 = vmatprep.subr.bf16.mxu0 0
    %721 = vmatpush1.bf16.msra.mxu0 %v521
    %722 = vmatprep.subr.bf16.mxu0 0
    %723 = vmatpush1.bf16.msra.mxu0 %v522
    %724 = vmatprep.subr.bf16.mxu0 0
    %725 = vmatpush1.bf16.msra.mxu0 %v523
    %726 = vmatprep.subr.bf16.mxu0 0
    %727 = vmatpush1.bf16.msra.mxu0 0
    %728 = vmatprep.subr.bf16.mxu0 0
    %729 = vmatpush1.bf16.msra.mxu0 0
    %730 = vmatprep.subr.bf16.mxu0 0
    %731 = vmatpush1.bf16.msra.mxu0 0
    %732 = vmatprep.subr.bf16.mxu0 0
    %733 = vmatpush1.bf16.msra.mxu0 0
    %734 = vmatprep.subr.bf16.mxu0 0
    %735 = vmatpush1.bf16.msra.mxu0 0
    %736 = vmatprep.subr.bf16.mxu0 0
    %737 = vmatpush1.bf16.msra.mxu0 0
    %738 = vmatprep.subr.bf16.mxu0 0
    %739 = vmatpush1.bf16.msra.mxu0 0
    %740 = vmatprep.subr.bf16.mxu0 0
    %741 = vmatpush1.bf16.msra.mxu0 0
    %742 = vmatprep.subr.bf16.mxu0 0
    %743 = vmatpush1.bf16.msra.mxu0 0
    %744 = vmatprep.subr.bf16.mxu0 0
    %745 = vmatpush1.bf16.msra.mxu0 0
    %746 = vmatprep.subr.bf16.mxu0 0
    %747 = vmatpush1.bf16.msra.mxu0 0
    %748 = vmatprep.mubr.bf16.mxu0 0
    %749 = vmatmul.mubr.bf16.gmra.mrb[0].mxu0 %v531
    %v750 = vpop.f32.mrb[0].mxu0
    %v751 = vadd.f32 0.0, %v750
    %v752 = vpop.f32.mrb[0].mxu0
    %v753 = vpop.f32.mrb[0].mxu0
    %v754 = vadd.f32 0.0, %v753
    %v755 = vpop.f32.mrb[0].mxu0
    %756 = vmatprep.mubr.bf16.mxu0 0
    %757 = vmatmul.mubr.bf16.gmra.mrb[0].mxu0 %v534
    %v758 = vpop.f32.mrb[0].mxu0
    %v759 = vadd.f32 0.0, %v758
    %v760 = vpop.f32.mrb[0].mxu0
    %v761 = vpop.f32.mrb[0].mxu0
    %v762 = vadd.f32 0.0, %v761
    %v763 = vpop.f32.mrb[0].mxu0
    %764 = vmatprep.mubr.bf16.mxu0 0
    %765 = vmatmul.mubr.bf16.gmra.mrb[0].mxu0 %v537
    %v766 = vpop.f32.mrb[0].mxu0
    %v767 = vadd.f32 0.0, %v766
    %v768 = vpop.f32.mrb[0].mxu0
    %v769 = vpop.f32.mrb[0].mxu0
    %v770 = vadd.f32 0.0, %v769
    %v771 = vpop.f32.mrb[0].mxu0
    %772 = vmatprep.mubr.bf16.mxu0 0
    %773 = vmatmul.mubr.bf16.gmra.mrb[0].mxu0 %v540
    %v774 = vpop.f32.mrb[0].mxu0
    %v775 = vadd.f32 0.0, %v774
    %v776 = vpop.f32.mrb[0].mxu0
    %v777 = vpop.f32.mrb[0].mxu0
    %v778 = vadd.f32 0.0, %v777
    %v779 = vpop.f32.mrb[0].mxu0
    %780 = vmatprep.mubr.bf16.mxu0 0
    %781 = vmatmul.mubr.bf16.gmra.mrb[0].mxu0 %v543
    %v782 = vpop.f32.mrb[0].mxu0
    %v783 = vadd.f32 0.0, %v782
    %v784 = vpop.f32.mrb[0].mxu0
    %v785 = vpop.f32.mrb[0].mxu0
    %v786 = vadd.f32 0.0, %v785
    %v787 = vpop.f32.mrb[0].mxu0
    %788 = vmatprep.mubr.bf16.mxu0 0
    %789 = vmatmul.mubr.bf16.gmra.mrb[0].mxu0 %v546
    %v790 = vpop.f32.mrb[0].mxu0
    %v791 = vadd.f32 0.0, %v790
    %v792 = vpop.f32.mrb[0].mxu0
    %v793 = vpop.f32.mrb[0].mxu0
    %v794 = vadd.f32 0.0, %v793
    %v795 = vpop.f32.mrb[0].mxu0
    %796 = vmatprep.mubr.bf16.mxu0 0
    %797 = vmatmul.mubr.bf16.gmra.mrb[0].mxu0 %v549
    %v798 = vpop.f32.mrb[0].mxu0
    %v799 = vadd.f32 0.0, %v798
    %v800 = vpop.f32.mrb[0].mxu0
    %v801 = vpop.f32.mrb[0].mxu0
    %v802 = vadd.f32 0.0, %v801
    %v803 = vpop.f32.mrb[0].mxu0
    %804 = vmatprep.mubr.bf16.mxu0 0
    %805 = vmatmul.mubr.bf16.gmra.mrb[0].mxu0 %v552
    %v806 = vpop.f32.mrb[0].mxu0
    %v807 = vadd.f32 0.0, %v806
    %v808 = vpop.f32.mrb[0].mxu0
    %v809 = vpop.f32.mrb[0].mxu0
    %v810 = vadd.f32 0.0, %v809
    %v811 = vpop.f32.mrb[0].mxu0
    %812 = vmatprep.mubr.bf16.mxu0 0
    %813 = vmatmul.mubr.bf16.gmra.mrb[0].mxu0 %v555
    %v814 = vpop.f32.mrb[0].mxu0
    %v815 = vadd.f32 0.0, %v814
    %v816 = vpop.f32.mrb[0].mxu0
    %v817 = vpop.f32.mrb[0].mxu0
    %v818 = vadd.f32 0.0, %v817
    %v819 = vpop.f32.mrb[0].mxu0
    %820 = vmatprep.mubr.bf16.mxu0 0
    %821 = vmatmul.mubr.bf16.gmra.mrb[0].mxu0 %v558
    %v822 = vpop.f32.mrb[0].mxu0
    %v823 = vadd.f32 0.0, %v822
    %v824 = vpop.f32.mrb[0].mxu0
    %v825 = vpop.f32.mrb[0].mxu0
    %v826 = vadd.f32 0.0, %v825
    %v827 = vpop.f32.mrb[0].mxu0
    %828 = vmatprep.mubr.bf16.mxu0 0
    %829 = vmatmul.mubr.bf16.gmra.mrb[0].mxu0 %v561
    %v830 = vpop.f32.mrb[0].mxu0
    %v831 = vadd.f32 0.0, %v830
    %v832 = vpop.f32.mrb[0].mxu0
    %v833 = vpop.f32.mrb[0].mxu0
    %v834 = vadd.f32 0.0, %v833
    %v835 = vpop.f32.mrb[0].mxu0
    %836 = vmatprep.mubr.bf16.mxu0 0
    %837 = vmatmul.mubr.bf16.gmra.mrb[0].mxu0 %v564
    %v838 = vpop.f32.mrb[0].mxu0
    %v839 = vadd.f32 0.0, %v838
    %v840 = vpop.f32.mrb[0].mxu0
    %v841 = vpop.f32.mrb[0].mxu0
    %v842 = vadd.f32 0.0, %v841
    %v843 = vpop.f32.mrb[0].mxu0
    %844 = vmatprep.mubr.bf16.mxu0 0
    %845 = vmatmul.mubr.bf16.gmra.mrb[0].mxu0 %v567
    %v846 = vpop.f32.mrb[0].mxu0
    %v847 = vadd.f32 0.0, %v846
    %v848 = vpop.f32.mrb[0].mxu0
    %v849 = vpop.f32.mrb[0].mxu0
    %v850 = vadd.f32 0.0, %v849
    %v851 = vpop.f32.mrb[0].mxu0
    %852 = vmatprep.mubr.bf16.mxu0 0
    %853 = vmatmul.mubr.bf16.gmra.mrb[0].mxu0 %v570
    %v854 = vpop.f32.mrb[0].mxu0
    %v855 = vadd.f32 0.0, %v854
    %v856 = vpop.f32.mrb[0].mxu0
    %v857 = vpop.f32.mrb[0].mxu0
    %v858 = vadd.f32 0.0, %v857
    %v859 = vpop.f32.mrb[0].mxu0
    %860 = vmatprep.mubr.bf16.mxu0 0
    %861 = vmatmul.mubr.bf16.gmra.mrb[0].mxu0 %v573
    %v862 = vpop.f32.mrb[0].mxu0
    %v863 = vadd.f32 0.0, %v862
    %v864 = vpop.f32.mrb[0].mxu0
    %v865 = vpop.f32.mrb[0].mxu0
    %v866 = vadd.f32 0.0, %v865
    %v867 = vpop.f32.mrb[0].mxu0
    %868 = vmatprep.mubr.bf16.mxu0 0
    %869 = vmatmul.mubr.bf16.gmra.mrb[0].mxu0 %v576
    %v870 = vpop.f32.mrb[0].mxu0
    %v871 = vadd.f32 0.0, %v870
    %v872 = vpop.f32.mrb[0].mxu0
    %v873 = vpop.f32.mrb[0].mxu0
    %v874 = vadd.f32 0.0, %v873
    %v875 = vpop.f32.mrb[0].mxu0
    %876 = vmatprep.mubr.bf16.mxu0 0
    %877 = vmatmul.mubr.bf16.gmra.mrb[0].mxu0 %v579
    %v878 = vpop.f32.mrb[0].mxu0
    %v879 = vadd.f32 0.0, %v878
    %v880 = vpop.f32.mrb[0].mxu0
    %v881 = vpop.f32.mrb[0].mxu0
    %v882 = vadd.f32 0.0, %v881
    %v883 = vpop.f32.mrb[0].mxu0
    %884 = vmatprep.mubr.bf16.mxu0 0
    %885 = vmatmul.mubr.bf16.gmra.mrb[0].mxu0 %v582
    %v886 = vpop.f32.mrb[0].mxu0
    %v887 = vadd.f32 0.0, %v886
    %v888 = vpop.f32.mrb[0].mxu0
    %v889 = vpop.f32.mrb[0].mxu0
    %v890 = vadd.f32 0.0, %v889
    %v891 = vpop.f32.mrb[0].mxu0
    %892 = vmatprep.mubr.bf16.mxu0 0
    %893 = vmatmul.mubr.bf16.gmra.mrb[0].mxu0 %v585
    %v894 = vpop.f32.mrb[0].mxu0
    %v895 = vadd.f32 0.0, %v894
    %v896 = vpop.f32.mrb[0].mxu0
    %v897 = vpop.f32.mrb[0].mxu0
    %v898 = vadd.f32 0.0, %v897
    %v899 = vpop.f32.mrb[0].mxu0
    %900 = vmatprep.mubr.bf16.mxu0 0
    %901 = vmatmul.mubr.bf16.gmra.mrb[0].mxu0 %v588
    %v902 = vpop.f32.mrb[0].mxu0
    %v903 = vadd.f32 0.0, %v902
    %v904 = vpop.f32.mrb[0].mxu0
    %v905 = vpop.f32.mrb[0].mxu0
    %v906 = vadd.f32 0.0, %v905
    %v907 = vpop.f32.mrb[0].mxu0
    %908 = vmatprep.mubr.bf16.mxu0 0
    %909 = vmatmul.mubr.bf16.gmra.mrb[0].mxu0 %v591
    %v910 = vpop.f32.mrb[0].mxu0
    %v911 = vadd.f32 0.0, %v910
    %v912 = vpop.f32.mrb[0].mxu0
    %v913 = vpop.f32.mrb[0].mxu0
    %v914 = vadd.f32 0.0, %v913
    %v915 = vpop.f32.mrb[0].mxu0
    %916 = vmatprep.mubr.bf16.mxu0 0
    %917 = vmatmul.mubr.bf16.gmra.mrb[0].mxu0 %v594
    %v918 = vpop.f32.mrb[0].mxu0
    %v919 = vadd.f32 0.0, %v918
    %v920 = vpop.f32.mrb[0].mxu0
    %v921 = vpop.f32.mrb[0].mxu0
    %v922 = vadd.f32 0.0, %v921
    %v923 = vpop.f32.mrb[0].mxu0
    %924 = vmatprep.mubr.bf16.mxu0 0
    %925 = vmatmul.mubr.bf16.gmra.mrb[0].mxu0 %v597
    %v926 = vpop.f32.mrb[0].mxu0
    %v927 = vadd.f32 0.0, %v926
    %v928 = vpop.f32.mrb[0].mxu0
    %v929 = vpop.f32.mrb[0].mxu0
    %v930 = vadd.f32 0.0, %v929
    %v931 = vpop.f32.mrb[0].mxu0
    %932 = vmatprep.mubr.bf16.mxu0 0
    %933 = vmatmul.mubr.bf16.gmra.mrb[0].mxu0 %v600
    %v934 = vpop.f32.mrb[0].mxu0
    %v935 = vadd.f32 0.0, %v934
    %v936 = vpop.f32.mrb[0].mxu0
    %v937 = vpop.f32.mrb[0].mxu0
    %v938 = vadd.f32 0.0, %v937
    %v939 = vpop.f32.mrb[0].mxu0
    %940 = vmatprep.mubr.bf16.mxu0 0
    %941 = vmatmul.mubr.bf16.gmra.mrb[0].mxu0 %v603
    %v942 = vpop.f32.mrb[0].mxu0
    %v943 = vadd.f32 0.0, %v942
    %v944 = vpop.f32.mrb[0].mxu0
    %v945 = vpop.f32.mrb[0].mxu0
    %v946 = vadd.f32 0.0, %v945
    %v947 = vpop.f32.mrb[0].mxu0
    %948 = vmatprep.mubr.bf16.mxu0 0
    %949 = vmatmul.mubr.bf16.gmra.mrb[0].mxu0 %v606
    %v950 = vpop.f32.mrb[0].mxu0
    %v951 = vadd.f32 0.0, %v950
    %v952 = vpop.f32.mrb[0].mxu0
    %v953 = vpop.f32.mrb[0].mxu0
    %v954 = vadd.f32 0.0, %v953
    %v955 = vpop.f32.mrb[0].mxu0
    %956 = vmatprep.mubr.bf16.mxu0 0
    %957 = vmatmul.mubr.bf16.gmra.mrb[0].mxu0 %v609
    %v958 = vpop.f32.mrb[0].mxu0
    %v959 = vadd.f32 0.0, %v958
    %v960 = vpop.f32.mrb[0].mxu0
    %v961 = vpop.f32.mrb[0].mxu0
    %v962 = vadd.f32 0.0, %v961
    %v963 = vpop.f32.mrb[0].mxu0
    %964 = vmatprep.mubr.bf16.mxu0 0
    %965 = vmatmul.mubr.bf16.gmra.mrb[0].mxu0 %v612
    %v966 = vpop.f32.mrb[0].mxu0
    %v967 = vadd.f32 0.0, %v966
    %v968 = vpop.f32.mrb[0].mxu0
    %v969 = vpop.f32.mrb[0].mxu0
    %v970 = vadd.f32 0.0, %v969
    %v971 = vpop.f32.mrb[0].mxu0
    %972 = vmatprep.mubr.bf16.mxu0 0
    %973 = vmatmul.mubr.bf16.gmra.mrb[0].mxu0 %v615
    %v974 = vpop.f32.mrb[0].mxu0
    %v975 = vadd.f32 0.0, %v974
    %v976 = vpop.f32.mrb[0].mxu0
    %v977 = vpop.f32.mrb[0].mxu0
    %v978 = vadd.f32 0.0, %v977
    %v979 = vpop.f32.mrb[0].mxu0
    %980 = vmatprep.mubr.bf16.mxu0 0
    %981 = vmatmul.mubr.bf16.gmra.mrb[0].mxu0 %v618
    %v982 = vpop.f32.mrb[0].mxu0
    %v983 = vadd.f32 0.0, %v982
    %v984 = vpop.f32.mrb[0].mxu0
    %v985 = vpop.f32.mrb[0].mxu0
    %v986 = vadd.f32 0.0, %v985
    %v987 = vpop.f32.mrb[0].mxu0
    %988 = vmatprep.mubr.bf16.mxu0 0
    %989 = vmatmul.mubr.bf16.gmra.mrb[0].mxu0 %v621
    %v990 = vpop.f32.mrb[0].mxu0
    %v991 = vadd.f32 0.0, %v990
    %v992 = vpop.f32.mrb[0].mxu0
    %v993 = vpop.f32.mrb[0].mxu0
    %v994 = vadd.f32 0.0, %v993
    %v995 = vpop.f32.mrb[0].mxu0
    %996 = vmatprep.mubr.bf16.mxu0 0
    %997 = vmatmul.mubr.bf16.gmra.mrb[0].mxu0 %v624
    %v998 = vpop.f32.mrb[0].mxu0
    %v999 = vadd.f32 0.0, %v998
    %v1000 = vpop.f32.mrb[0].mxu0
    %v1001 = vpop.f32.mrb[0].mxu0
    %v1002 = vadd.f32 0.0, %v1001
    %v1003 = vpop.f32.mrb[0].mxu0
    %1004 = vmatprep.mubr.bf16.mxu0 0
    %1005 = vmatmul.mubr.bf16.gmra.mrb[0].mxu0 %v627
    %v1006 = vpop.f32.mrb[0].mxu0
    %v1007 = vadd.f32 0.0, %v1006
    %v1008 = vpop.f32.mrb[0].mxu0
    %v1009 = vpop.f32.mrb[0].mxu0
    %v1010 = vadd.f32 0.0, %v1009
    %v1011 = vpop.f32.mrb[0].mxu0
    %1012 = vmatprep.mubr.bf16.mxu0 0
    %1013 = vmatmul.mubr.bf16.gmra.mrb[0].mxu0 %v630
    %v1014 = vpop.f32.mrb[0].mxu0
    %v1015 = vadd.f32 0.0, %v1014
    %v1016 = vpop.f32.mrb[0].mxu0
    %v1017 = vpop.f32.mrb[0].mxu0
    %v1018 = vadd.f32 0.0, %v1017
    %v1019 = vpop.f32.mrb[0].mxu0
    %1020 = vmatprep.mubr.bf16.mxu0 0
    %1021 = vmatmul.mubr.bf16.gmra.mrb[0].mxu0 %v633
    %v1022 = vpop.f32.mrb[0].mxu0
    %v1023 = vadd.f32 0.0, %v1022
    %v1024 = vpop.f32.mrb[0].mxu0
    %v1025 = vpop.f32.mrb[0].mxu0
    %v1026 = vadd.f32 0.0, %v1025
    %v1027 = vpop.f32.mrb[0].mxu0
    %1028 = vmatprep.mubr.bf16.mxu0 0
    %1029 = vmatmul.mubr.bf16.gmra.mrb[0].mxu0 %v636
    %v1030 = vpop.f32.mrb[0].mxu0
    %v1031 = vadd.f32 0.0, %v1030
    %v1032 = vpop.f32.mrb[0].mxu0
    %v1033 = vpop.f32.mrb[0].mxu0
    %v1034 = vadd.f32 0.0, %v1033
    %v1035 = vpop.f32.mrb[0].mxu0
    %1036 = vmatprep.mubr.bf16.mxu0 0
    %1037 = vmatmul.mubr.bf16.gmra.mrb[0].mxu0 %v639
    %v1038 = vpop.f32.mrb[0].mxu0
    %v1039 = vadd.f32 0.0, %v1038
    %v1040 = vpop.f32.mrb[0].mxu0
    %v1041 = vpop.f32.mrb[0].mxu0
    %v1042 = vadd.f32 0.0, %v1041
    %v1043 = vpop.f32.mrb[0].mxu0
    %1044 = vmatprep.mubr.bf16.mxu0 0
    %1045 = vmatmul.mubr.bf16.gmra.mrb[0].mxu0 %v642
    %v1046 = vpop.f32.mrb[0].mxu0
    %v1047 = vadd.f32 0.0, %v1046
    %v1048 = vpop.f32.mrb[0].mxu0
    %v1049 = vpop.f32.mrb[0].mxu0
    %v1050 = vadd.f32 0.0, %v1049
    %v1051 = vpop.f32.mrb[0].mxu0
    %1052 = vmatprep.mubr.bf16.mxu0 0
    %1053 = vmatmul.mubr.bf16.gmra.mrb[0].mxu0 %v645
    %v1054 = vpop.f32.mrb[0].mxu0
    %v1055 = vadd.f32 0.0, %v1054
    %v1056 = vpop.f32.mrb[0].mxu0
    %v1057 = vpop.f32.mrb[0].mxu0
    %v1058 = vadd.f32 0.0, %v1057
    %v1059 = vpop.f32.mrb[0].mxu0
    %1060 = vmatprep.mubr.bf16.mxu0 0
    %1061 = vmatmul.mubr.bf16.gmra.mrb[0].mxu0 %v648
    %v1062 = vpop.f32.mrb[0].mxu0
    %v1063 = vadd.f32 0.0, %v1062
    %v1064 = vpop.f32.mrb[0].mxu0
    %v1065 = vpop.f32.mrb[0].mxu0
    %v1066 = vadd.f32 0.0, %v1065
    %v1067 = vpop.f32.mrb[0].mxu0
    %1068 = vmatprep.mubr.bf16.mxu0 0
    %1069 = vmatmul.mubr.bf16.gmra.mrb[0].mxu0 %v651
    %v1070 = vpop.f32.mrb[0].mxu0
    %v1071 = vadd.f32 0.0, %v1070
    %v1072 = vpop.f32.mrb[0].mxu0
    %v1073 = vpop.f32.mrb[0].mxu0
    %v1074 = vadd.f32 0.0, %v1073
    %v1075 = vpop.f32.mrb[0].mxu0
    %1076 = vmatprep.mubr.bf16.mxu0 0
    %1077 = vmatmul.mubr.bf16.gmra.mrb[0].mxu0 %v654
    %v1078 = vpop.f32.mrb[0].mxu0
    %v1079 = vadd.f32 0.0, %v1078
    %v1080 = vpop.f32.mrb[0].mxu0
    %v1081 = vpop.f32.mrb[0].mxu0
    %v1082 = vadd.f32 0.0, %v1081
    %v1083 = vpop.f32.mrb[0].mxu0
    %1084 = vmatprep.mubr.bf16.mxu0 0
    %1085 = vmatmul.mubr.bf16.gmra.mrb[0].mxu0 %v657
    %v1086 = vpop.f32.mrb[0].mxu0
    %v1087 = vadd.f32 0.0, %v1086
    %v1088 = vpop.f32.mrb[0].mxu0
    %v1089 = vpop.f32.mrb[0].mxu0
    %v1090 = vadd.f32 0.0, %v1089
    %v1091 = vpop.f32.mrb[0].mxu0
    %1092 = vmatprep.mubr.bf16.mxu0 0
    %1093 = vmatmul.mubr.bf16.gmra.mrb[0].mxu0 %v660
    %v1094 = vpop.f32.mrb[0].mxu0
    %v1095 = vadd.f32 0.0, %v1094
    %v1096 = vpop.f32.mrb[0].mxu0
    %v1097 = vpop.f32.mrb[0].mxu0
    %v1098 = vadd.f32 0.0, %v1097
    %v1099 = vpop.f32.mrb[0].mxu0
    %1100 = vmatprep.mubr.bf16.mxu0 0
    %1101 = vmatmul.mubr.bf16.gmra.mrb[0].mxu0 %v663
    %v1102 = vpop.f32.mrb[0].mxu0
    %v1103 = vadd.f32 0.0, %v1102
    %v1104 = vpop.f32.mrb[0].mxu0
    %v1105 = vpop.f32.mrb[0].mxu0
    %v1106 = vadd.f32 0.0, %v1105
    %v1107 = vpop.f32.mrb[0].mxu0
    %1108 = vmatprep.mubr.bf16.mxu0 0
    %1109 = vmatmul.mubr.bf16.gmra.mrb[0].mxu0 %v666
    %v1110 = vpop.f32.mrb[0].mxu0
    %v1111 = vadd.f32 0.0, %v1110
    %v1112 = vpop.f32.mrb[0].mxu0
    %v1113 = vpop.f32.mrb[0].mxu0
    %v1114 = vadd.f32 0.0, %v1113
    %v1115 = vpop.f32.mrb[0].mxu0
    %1116 = vmatprep.mubr.bf16.mxu0 0
    %1117 = vmatmul.mubr.bf16.gmra.mrb[0].mxu0 %v669
    %v1118 = vpop.f32.mrb[0].mxu0
    %v1119 = vadd.f32 0.0, %v1118
    %v1120 = vpop.f32.mrb[0].mxu0
    %v1121 = vpop.f32.mrb[0].mxu0
    %v1122 = vadd.f32 0.0, %v1121
    %v1123 = vpop.f32.mrb[0].mxu0
    %1124 = vmatprep.mubr.bf16.mxu0 0
    %1125 = vmatmul.mubr.bf16.gmra.mrb[0].mxu0 %v672
    %v1126 = vpop.f32.mrb[0].mxu0
    %v1127 = vadd.f32 0.0, %v1126
    %v1128 = vpop.f32.mrb[0].mxu0
    %v1129 = vpop.f32.mrb[0].mxu0
    %v1130 = vadd.f32 0.0, %v1129
    %v1131 = vpop.f32.mrb[0].mxu0
    %1132 = vmatprep.mubr.bf16.mxu0 0
    %1133 = vmatmul.mubr.bf16.gmra.mrb[0].mxu0 %v675
    %v1134 = vpop.f32.mrb[0].mxu0
    %v1135 = vadd.f32 0.0, %v1134
    %v1136 = vpop.f32.mrb[0].mxu0
    %v1137 = vpop.f32.mrb[0].mxu0
    %v1138 = vadd.f32 0.0, %v1137
    %v1139 = vpop.f32.mrb[0].mxu0
    %1140 = vmatprep.mubr.bf16.mxu0 0
    %1141 = vmatmul.mubr.bf16.gmra.mrb[0].mxu0 %v678
    %v1142 = vpop.f32.mrb[0].mxu0
    %v1143 = vadd.f32 0.0, %v1142
    %v1144 = vpop.f32.mrb[0].mxu0
    %v1145 = vpop.f32.mrb[0].mxu0
    %v1146 = vadd.f32 0.0, %v1145
    %v1147 = vpop.f32.mrb[0].mxu0
    %1148 = vmatprep.mubr.bf16.mxu0 0
    %1149 = vmatmul.mubr.bf16.gmra.mrb[0].mxu0 %v681
    %v1150 = vpop.f32.mrb[0].mxu0
    %v1151 = vadd.f32 0.0, %v1150
    %v1152 = vpop.f32.mrb[0].mxu0
    %v1153 = vpop.f32.mrb[0].mxu0
    %v1154 = vadd.f32 0.0, %v1153
    %v1155 = vpop.f32.mrb[0].mxu0
    %1156 = vmatprep.mubr.bf16.mxu0 0
    %1157 = vmatmul.mubr.bf16.gmra.mrb[0].mxu0 %v684
    %v1158 = vpop.f32.mrb[0].mxu0
    %v1159 = vadd.f32 0.0, %v1158
    %v1160 = vpop.f32.mrb[0].mxu0
    %v1161 = vpop.f32.mrb[0].mxu0
    %v1162 = vadd.f32 0.0, %v1161
    %v1163 = vpop.f32.mrb[0].mxu0
    %1164 = vmatprep.mubr.bf16.mxu0 0
    %1165 = vmatmul.mubr.bf16.gmra.mrb[0].mxu0 %v687
    %v1166 = vpop.f32.mrb[0].mxu0
    %v1167 = vadd.f32 0.0, %v1166
    %v1168 = vpop.f32.mrb[0].mxu0
    %v1169 = vpop.f32.mrb[0].mxu0
    %v1170 = vadd.f32 0.0, %v1169
    %v1171 = vpop.f32.mrb[0].mxu0
    %1172 = vmatprep.mubr.bf16.mxu0 0
    %1173 = vmatmul.mubr.bf16.gmra.mrb[0].mxu0 %v690
    %v1174 = vpop.f32.mrb[0].mxu0
    %v1175 = vadd.f32 0.0, %v1174
    %v1176 = vpop.f32.mrb[0].mxu0
    %v1177 = vpop.f32.mrb[0].mxu0
    %v1178 = vadd.f32 0.0, %v1177
    %v1179 = vpop.f32.mrb[0].mxu0
    %1180 = vmatprep.mubr.bf16.mxu0 0
    %1181 = vmatmul.mubr.bf16.gmra.mrb[0].mxu0 %v693
    %v1182 = vpop.f32.mrb[0].mxu0
    %v1183 = vadd.f32 0.0, %v1182
    %v1184 = vpop.f32.mrb[0].mxu0
    %v1185 = vpop.f32.mrb[0].mxu0
    %v1186 = vadd.f32 0.0, %v1185
    %v1187 = vpop.f32.mrb[0].mxu0
    %1188 = vmatprep.mubr.bf16.mxu0 0
    %1189 = vmatmul.mubr.bf16.gmra.mrb[0].mxu0 %v696
    %v1190 = vpop.f32.mrb[0].mxu0
    %v1191 = vadd.f32 0.0, %v1190
    %v1192 = vpop.f32.mrb[0].mxu0
    %v1193 = vpop.f32.mrb[0].mxu0
    %v1194 = vadd.f32 0.0, %v1193
    %v1195 = vpop.f32.mrb[0].mxu0
    %1196 = vmatprep.mubr.bf16.mxu0 0
    %1197 = vmatmul.mubr.bf16.gmra.mrb[0].mxu0 %v699
    %v1198 = vpop.f32.mrb[0].mxu0
    %v1199 = vadd.f32 0.0, %v1198
    %v1200 = vpop.f32.mrb[0].mxu0
    %v1201 = vpop.f32.mrb[0].mxu0
    %v1202 = vadd.f32 0.0, %v1201
    %v1203 = vpop.f32.mrb[0].mxu0
    %1204 = vmatprep.mubr.bf16.mxu0 0
    %1205 = vmatmul.mubr.bf16.gmra.mrb[0].mxu0 %v702
    %v1206 = vpop.f32.mrb[0].mxu0
    %v1207 = vadd.f32 0.0, %v1206
    %v1208 = vpop.f32.mrb[0].mxu0
    %v1209 = vpop.f32.mrb[0].mxu0
    %v1210 = vadd.f32 0.0, %v1209
    %v1211 = vpop.f32.mrb[0].mxu0
    %1212 = vmatprep.mubr.bf16.mxu0 0
    %1213 = vmatmul.mubr.bf16.gmra.mrb[0].mxu0 %v705
    %v1214 = vpop.f32.mrb[0].mxu0
    %v1215 = vadd.f32 0.0, %v1214
    %v1216 = vpop.f32.mrb[0].mxu0
    %v1217 = vpop.f32.mrb[0].mxu0
    %v1218 = vadd.f32 0.0, %v1217
    %v1219 = vpop.f32.mrb[0].mxu0
    %1220 = vmatprep.mubr.bf16.mxu0 0
    %1221 = vmatmul.mubr.bf16.gmra.mrb[0].mxu0 %v708
    %v1222 = vpop.f32.mrb[0].mxu0
    %v1223 = vadd.f32 0.0, %v1222
    %v1224 = vpop.f32.mrb[0].mxu0
    %v1225 = vpop.f32.mrb[0].mxu0
    %v1226 = vadd.f32 0.0, %v1225
    %v1227 = vpop.f32.mrb[0].mxu0
    %1228 = vmatprep.mubr.bf16.mxu0 0
    %1229 = vmatmul.mubr.bf16.gmra.mrb[0].mxu0 %v711
    %v1230 = vpop.f32.mrb[0].mxu0
    %v1231 = vadd.f32 0.0, %v1230
    %v1232 = vpop.f32.mrb[0].mxu0
    %v1233 = vpop.f32.mrb[0].mxu0
    %v1234 = vadd.f32 0.0, %v1233
    %v1235 = vpop.f32.mrb[0].mxu0
    %1236 = vmatprep.mubr.bf16.mxu0 0
    %1237 = vmatmul.mubr.bf16.gmra.mrb[0].mxu0 %v714
    %v1238 = vpop.f32.mrb[0].mxu0
    %v1239 = vadd.f32 0.0, %v1238
    %v1240 = vpop.f32.mrb[0].mxu0
    %v1241 = vpop.f32.mrb[0].mxu0
    %v1242 = vadd.f32 0.0, %v1241
    %v1243 = vpop.f32.mrb[0].mxu0
    %1244 = vdwg.mxu0
    %vm1245 = vcmask 261120
    %v1246 = vsel %vm1245, %v751, 0.0
    %v1247 = vsel %vm1245, %v754, 0.0
    %v1248 = vadd.f32 %v1246, %v1247
    %v1249 = vsel %vm1245, %v759, 0.0
    %v1250 = vadd.f32 %v1248, %v1249
    %v1251 = vsel %vm1245, %v762, 0.0
    %v1252 = vadd.f32 %v1250, %v1251
    %v1253 = vsel %vm1245, %v767, 0.0
    %v1254 = vadd.f32 %v1252, %v1253
    %v1255 = vsel %vm1245, %v770, 0.0
    %v1256 = vadd.f32 %v1254, %v1255
    %v1257 = vsel %vm1245, %v775, 0.0
    %v1258 = vadd.f32 %v1256, %v1257
    %v1259 = vsel %vm1245, %v778, 0.0
    %v1260 = vadd.f32 %v1258, %v1259
    %v1261 = vsel %vm1245, %v783, 0.0
    %v1262 = vadd.f32 %v1260, %v1261
    %v1263 = vsel %vm1245, %v786, 0.0
    %v1264 = vadd.f32 %v1262, %v1263
    %v1265 = vsel %vm1245, %v791, 0.0
    %v1266 = vadd.f32 %v1264, %v1265
    %v1267 = vsel %vm1245, %v794, 0.0
    %v1268 = vadd.f32 %v1266, %v1267
    %v1269 = vsel %vm1245, %v799, 0.0
    %v1270 = vadd.f32 %v1268, %v1269
    %v1271 = vsel %vm1245, %v802, 0.0
    %v1272 = vadd.f32 %v1270, %v1271
    %v1273 = vsel %vm1245, %v807, 0.0
    %v1274 = vadd.f32 %v1272, %v1273
    %v1275 = vsel %vm1245, %v810, 0.0
    %v1276 = vadd.f32 %v1274, %v1275
    %v1277 = vsel %vm1245, %v815, 0.0
    %v1278 = vadd.f32 %v1276, %v1277
    %v1279 = vsel %vm1245, %v818, 0.0
    %v1280 = vadd.f32 %v1278, %v1279
    %v1281 = vsel %vm1245, %v823, 0.0
    %v1282 = vadd.f32 %v1280, %v1281
    %v1283 = vsel %vm1245, %v826, 0.0
    %v1284 = vadd.f32 %v1282, %v1283
    %v1285 = vsel %vm1245, %v831, 0.0
    %v1286 = vadd.f32 %v1284, %v1285
    %v1287 = vsel %vm1245, %v834, 0.0
    %v1288 = vadd.f32 %v1286, %v1287
    %v1289 = vsel %vm1245, %v839, 0.0
    %v1290 = vadd.f32 %v1288, %v1289
    %v1291 = vsel %vm1245, %v842, 0.0
    %v1292 = vadd.f32 %v1290, %v1291
    %v1293 = vsel %vm1245, %v847, 0.0
    %v1294 = vadd.f32 %v1292, %v1293
    %v1295 = vsel %vm1245, %v850, 0.0
    %v1296 = vadd.f32 %v1294, %v1295
    %v1297 = vsel %vm1245, %v855, 0.0
    %v1298 = vadd.f32 %v1296, %v1297
    %v1299 = vsel %vm1245, %v858, 0.0
    %v1300 = vadd.f32 %v1298, %v1299
    %v1301 = vsel %vm1245, %v863, 0.0
    %v1302 = vadd.f32 %v1300, %v1301
    %v1303 = vsel %vm1245, %v866, 0.0
    %v1304 = vadd.f32 %v1302, %v1303
    %v1305 = vsel %vm1245, %v871, 0.0
    %v1306 = vadd.f32 %v1304, %v1305
    %v1307 = vsel %vm1245, %v874, 0.0
    %v1308 = vadd.f32 %v1306, %v1307
    %v1309 = vsel %vm1245, %v879, 0.0
    %v1310 = vadd.f32 %v1308, %v1309
    %v1311 = vsel %vm1245, %v882, 0.0
    %v1312 = vadd.f32 %v1310, %v1311
    %v1313 = vsel %vm1245, %v887, 0.0
    %v1314 = vadd.f32 %v1312, %v1313
    %v1315 = vsel %vm1245, %v890, 0.0
    %v1316 = vadd.f32 %v1314, %v1315
    %v1317 = vsel %vm1245, %v895, 0.0
    %v1318 = vadd.f32 %v1316, %v1317
    %v1319 = vsel %vm1245, %v898, 0.0
    %v1320 = vadd.f32 %v1318, %v1319
    %v1321 = vsel %vm1245, %v903, 0.0
    %v1322 = vadd.f32 %v1320, %v1321
    %v1323 = vsel %vm1245, %v906, 0.0
    %v1324 = vadd.f32 %v1322, %v1323
    %v1325 = vsel %vm1245, %v911, 0.0
    %v1326 = vadd.f32 %v1324, %v1325
    %v1327 = vsel %vm1245, %v914, 0.0
    %v1328 = vadd.f32 %v1326, %v1327
    %v1329 = vsel %vm1245, %v919, 0.0
    %v1330 = vadd.f32 %v1328, %v1329
    %v1331 = vsel %vm1245, %v922, 0.0
    %v1332 = vadd.f32 %v1330, %v1331
    %v1333 = vsel %vm1245, %v927, 0.0
    %v1334 = vadd.f32 %v1332, %v1333
    %v1335 = vsel %vm1245, %v930, 0.0
    %v1336 = vadd.f32 %v1334, %v1335
    %v1337 = vsel %vm1245, %v935, 0.0
    %v1338 = vadd.f32 %v1336, %v1337
    %v1339 = vsel %vm1245, %v938, 0.0
    %v1340 = vadd.f32 %v1338, %v1339
    %v1341 = vsel %vm1245, %v943, 0.0
    %v1342 = vadd.f32 %v1340, %v1341
    %v1343 = vsel %vm1245, %v946, 0.0
    %v1344 = vadd.f32 %v1342, %v1343
    %v1345 = vsel %vm1245, %v951, 0.0
    %v1346 = vadd.f32 %v1344, %v1345
    %v1347 = vsel %vm1245, %v954, 0.0
    %v1348 = vadd.f32 %v1346, %v1347
    %v1349 = vsel %vm1245, %v959, 0.0
    %v1350 = vadd.f32 %v1348, %v1349
    %v1351 = vsel %vm1245, %v962, 0.0
    %v1352 = vadd.f32 %v1350, %v1351
    %v1353 = vsel %vm1245, %v967, 0.0
    %v1354 = vadd.f32 %v1352, %v1353
    %v1355 = vsel %vm1245, %v970, 0.0
    %v1356 = vadd.f32 %v1354, %v1355
    %v1357 = vsel %vm1245, %v975, 0.0
    %v1358 = vadd.f32 %v1356, %v1357
    %v1359 = vsel %vm1245, %v978, 0.0
    %v1360 = vadd.f32 %v1358, %v1359
    %v1361 = vsel %vm1245, %v983, 0.0
    %v1362 = vadd.f32 %v1360, %v1361
    %v1363 = vsel %vm1245, %v986, 0.0
    %v1364 = vadd.f32 %v1362, %v1363
    %v1365 = vsel %vm1245, %v991, 0.0
    %v1366 = vadd.f32 %v1364, %v1365
    %v1367 = vsel %vm1245, %v994, 0.0
    %v1368 = vadd.f32 %v1366, %v1367
    %v1369 = vsel %vm1245, %v999, 0.0
    %v1370 = vadd.f32 %v1368, %v1369
    %v1371 = vsel %vm1245, %v1002, 0.0
    %v1372 = vadd.f32 %v1370, %v1371
    %v1373 = vsel %vm1245, %v1007, 0.0
    %v1374 = vadd.f32 %v1372, %v1373
    %v1375 = vsel %vm1245, %v1010, 0.0
    %v1376 = vadd.f32 %v1374, %v1375
    %v1377 = vsel %vm1245, %v1015, 0.0
    %v1378 = vadd.f32 %v1376, %v1377
    %v1379 = vsel %vm1245, %v1018, 0.0
    %v1380 = vadd.f32 %v1378, %v1379
    %v1381 = vsel %vm1245, %v1023, 0.0
    %v1382 = vadd.f32 %v1380, %v1381
    %v1383 = vsel %vm1245, %v1026, 0.0
    %v1384 = vadd.f32 %v1382, %v1383
    %v1385 = vsel %vm1245, %v1031, 0.0
    %v1386 = vadd.f32 %v1384, %v1385
    %v1387 = vsel %vm1245, %v1034, 0.0
    %v1388 = vadd.f32 %v1386, %v1387
    %v1389 = vsel %vm1245, %v1039, 0.0
    %v1390 = vadd.f32 %v1388, %v1389
    %v1391 = vsel %vm1245, %v1042, 0.0
    %v1392 = vadd.f32 %v1390, %v1391
    %v1393 = vsel %vm1245, %v1047, 0.0
    %v1394 = vadd.f32 %v1392, %v1393
    %v1395 = vsel %vm1245, %v1050, 0.0
    %v1396 = vadd.f32 %v1394, %v1395
    %v1397 = vsel %vm1245, %v1055, 0.0
    %v1398 = vadd.f32 %v1396, %v1397
    %v1399 = vsel %vm1245, %v1058, 0.0
    %v1400 = vadd.f32 %v1398, %v1399
    %v1401 = vsel %vm1245, %v1063, 0.0
    %v1402 = vadd.f32 %v1400, %v1401
    %v1403 = vsel %vm1245, %v1066, 0.0
    %v1404 = vadd.f32 %v1402, %v1403
    %v1405 = vsel %vm1245, %v1071, 0.0
    %v1406 = vadd.f32 %v1404, %v1405
    %v1407 = vsel %vm1245, %v1074, 0.0
    %v1408 = vadd.f32 %v1406, %v1407
    %v1409 = vsel %vm1245, %v1079, 0.0
    %v1410 = vadd.f32 %v1408, %v1409
    %v1411 = vsel %vm1245, %v1082, 0.0
    %v1412 = vadd.f32 %v1410, %v1411
    %v1413 = vsel %vm1245, %v1087, 0.0
    %v1414 = vadd.f32 %v1412, %v1413
    %v1415 = vsel %vm1245, %v1090, 0.0
    %v1416 = vadd.f32 %v1414, %v1415
    %v1417 = vsel %vm1245, %v1095, 0.0
    %v1418 = vadd.f32 %v1416, %v1417
    %v1419 = vsel %vm1245, %v1098, 0.0
    %v1420 = vadd.f32 %v1418, %v1419
    %v1421 = vsel %vm1245, %v1103, 0.0
    %v1422 = vadd.f32 %v1420, %v1421
    %v1423 = vsel %vm1245, %v1106, 0.0
    %v1424 = vadd.f32 %v1422, %v1423
    %v1425 = vsel %vm1245, %v1111, 0.0
    %v1426 = vadd.f32 %v1424, %v1425
    %v1427 = vsel %vm1245, %v1114, 0.0
    %v1428 = vadd.f32 %v1426, %v1427
    %v1429 = vsel %vm1245, %v1119, 0.0
    %v1430 = vadd.f32 %v1428, %v1429
    %v1431 = vsel %vm1245, %v1122, 0.0
    %v1432 = vadd.f32 %v1430, %v1431
    %v1433 = vsel %vm1245, %v1127, 0.0
    %v1434 = vadd.f32 %v1432, %v1433
    %v1435 = vsel %vm1245, %v1130, 0.0
    %v1436 = vadd.f32 %v1434, %v1435
    %v1437 = vsel %vm1245, %v1135, 0.0
    %v1438 = vadd.f32 %v1436, %v1437
    %v1439 = vsel %vm1245, %v1138, 0.0
    %v1440 = vadd.f32 %v1438, %v1439
    %v1441 = vsel %vm1245, %v1143, 0.0
    %v1442 = vadd.f32 %v1440, %v1441
    %v1443 = vsel %vm1245, %v1146, 0.0
    %v1444 = vadd.f32 %v1442, %v1443
    %v1445 = vsel %vm1245, %v1151, 0.0
    %v1446 = vadd.f32 %v1444, %v1445
    %v1447 = vsel %vm1245, %v1154, 0.0
    %v1448 = vadd.f32 %v1446, %v1447
    %v1449 = vsel %vm1245, %v1159, 0.0
    %v1450 = vadd.f32 %v1448, %v1449
    %v1451 = vsel %vm1245, %v1162, 0.0
    %v1452 = vadd.f32 %v1450, %v1451
    %v1453 = vsel %vm1245, %v1167, 0.0
    %v1454 = vadd.f32 %v1452, %v1453
    %v1455 = vsel %vm1245, %v1170, 0.0
    %v1456 = vadd.f32 %v1454, %v1455
    %v1457 = vsel %vm1245, %v1175, 0.0
    %v1458 = vadd.f32 %v1456, %v1457
    %v1459 = vsel %vm1245, %v1178, 0.0
    %v1460 = vadd.f32 %v1458, %v1459
    %v1461 = vsel %vm1245, %v1183, 0.0
    %v1462 = vadd.f32 %v1460, %v1461
    %v1463 = vsel %vm1245, %v1186, 0.0
    %v1464 = vadd.f32 %v1462, %v1463
    %v1465 = vsel %vm1245, %v1191, 0.0
    %v1466 = vadd.f32 %v1464, %v1465
    %v1467 = vsel %vm1245, %v1194, 0.0
    %v1468 = vadd.f32 %v1466, %v1467
    %v1469 = vsel %vm1245, %v1199, 0.0
    %v1470 = vadd.f32 %v1468, %v1469
    %v1471 = vsel %vm1245, %v1202, 0.0
    %v1472 = vadd.f32 %v1470, %v1471
    %v1473 = vsel %vm1245, %v1207, 0.0
    %v1474 = vadd.f32 %v1472, %v1473
    %v1475 = vsel %vm1245, %v1210, 0.0
    %v1476 = vadd.f32 %v1474, %v1475
    %v1477 = vsel %vm1245, %v1215, 0.0
    %v1478 = vadd.f32 %v1476, %v1477
    %v1479 = vsel %vm1245, %v1218, 0.0
    %v1480 = vadd.f32 %v1478, %v1479
    %v1481 = vsel %vm1245, %v1223, 0.0
    %v1482 = vadd.f32 %v1480, %v1481
    %v1483 = vsel %vm1245, %v1226, 0.0
    %v1484 = vadd.f32 %v1482, %v1483
    %v1485 = vsel %vm1245, %v1231, 0.0
    %v1486 = vadd.f32 %v1484, %v1485
    %v1487 = vsel %vm1245, %v1234, 0.0
    %v1488 = vadd.f32 %v1486, %v1487
    %v1489 = vsel %vm1245, %v1239, 0.0
    %v1490 = vadd.f32 %v1488, %v1489
    %v1491 = vsel %vm1245, %v1242, 0.0
    %v1492 = vadd.f32 %v1490, %v1491
    %v1493 = vrot.slane %v1492, 4
    %v1494 = vadd.f32 %v1492, %v1493
    %v1495 = vrot.slane %v1494, 2
    %v1496 = vadd.f32 %v1494, %v1495
    %v1497 = vrot.slane %v1496, 1
    %v1498 = vadd.f32 %v1496, %v1497
    %v1499 = vmul.f32 %v751, %v751
    %v1500 = vmul.f32 %v754, %v754
    %v1501 = vmul.f32 %v759, %v759
    %v1502 = vmul.f32 %v762, %v762
    %v1503 = vmul.f32 %v767, %v767
    %v1504 = vmul.f32 %v770, %v770
    %v1505 = vmul.f32 %v775, %v775
    %v1506 = vmul.f32 %v778, %v778
    %v1507 = vmul.f32 %v783, %v783
    %v1508 = vmul.f32 %v786, %v786
    %v1509 = vmul.f32 %v791, %v791
    %v1510 = vmul.f32 %v794, %v794
    %v1511 = vmul.f32 %v799, %v799
    %v1512 = vmul.f32 %v802, %v802
    %v1513 = vmul.f32 %v807, %v807
    %v1514 = vmul.f32 %v810, %v810
    %v1515 = vmul.f32 %v815, %v815
    %v1516 = vmul.f32 %v818, %v818
    %v1517 = vmul.f32 %v823, %v823
    %v1518 = vmul.f32 %v826, %v826
    %v1519 = vmul.f32 %v831, %v831
    %v1520 = vmul.f32 %v834, %v834
    %v1521 = vmul.f32 %v839, %v839
    %v1522 = vmul.f32 %v842, %v842
    %v1523 = vmul.f32 %v847, %v847
    %v1524 = vmul.f32 %v850, %v850
    %v1525 = vmul.f32 %v855, %v855
    %v1526 = vmul.f32 %v858, %v858
    %v1527 = vmul.f32 %v863, %v863
    %v1528 = vmul.f32 %v866, %v866
    %v1529 = vmul.f32 %v871, %v871
    %v1530 = vmul.f32 %v874, %v874
    %v1531 = vmul.f32 %v879, %v879
    %v1532 = vmul.f32 %v882, %v882
    %v1533 = vmul.f32 %v887, %v887
    %v1534 = vmul.f32 %v890, %v890
    %v1535 = vmul.f32 %v895, %v895
    %v1536 = vmul.f32 %v898, %v898
    %v1537 = vmul.f32 %v903, %v903
    %v1538 = vmul.f32 %v906, %v906
    %v1539 = vmul.f32 %v911, %v911
    %v1540 = vmul.f32 %v914, %v914
    %v1541 = vmul.f32 %v919, %v919
    %v1542 = vmul.f32 %v922, %v922
    %v1543 = vmul.f32 %v927, %v927
    %v1544 = vmul.f32 %v930, %v930
    %v1545 = vmul.f32 %v935, %v935
    %v1546 = vmul.f32 %v938, %v938
    %v1547 = vmul.f32 %v943, %v943
    %v1548 = vmul.f32 %v946, %v946
    %v1549 = vmul.f32 %v951, %v951
    %v1550 = vmul.f32 %v954, %v954
    %v1551 = vmul.f32 %v959, %v959
    %v1552 = vmul.f32 %v962, %v962
    %v1553 = vmul.f32 %v967, %v967
    %v1554 = vmul.f32 %v970, %v970
    %v1555 = vmul.f32 %v975, %v975
    %v1556 = vmul.f32 %v978, %v978
    %v1557 = vmul.f32 %v983, %v983
    %v1558 = vmul.f32 %v986, %v986
    %v1559 = vmul.f32 %v991, %v991
    %v1560 = vmul.f32 %v994, %v994
    %v1561 = vmul.f32 %v999, %v999
    %v1562 = vmul.f32 %v1002, %v1002
    %v1563 = vmul.f32 %v1007, %v1007
    %v1564 = vmul.f32 %v1010, %v1010
    %v1565 = vmul.f32 %v1015, %v1015
    %v1566 = vmul.f32 %v1018, %v1018
    %v1567 = vmul.f32 %v1023, %v1023
    %v1568 = vmul.f32 %v1026, %v1026
    %v1569 = vmul.f32 %v1031, %v1031
    %v1570 = vmul.f32 %v1034, %v1034
    %v1571 = vmul.f32 %v1039, %v1039
    %v1572 = vmul.f32 %v1042, %v1042
    %v1573 = vmul.f32 %v1047, %v1047
    %v1574 = vmul.f32 %v1050, %v1050
    %v1575 = vmul.f32 %v1055, %v1055
    %v1576 = vmul.f32 %v1058, %v1058
    %v1577 = vmul.f32 %v1063, %v1063
    %v1578 = vmul.f32 %v1066, %v1066
    %v1579 = vmul.f32 %v1071, %v1071
    %v1580 = vmul.f32 %v1074, %v1074
    %v1581 = vmul.f32 %v1079, %v1079
    %v1582 = vmul.f32 %v1082, %v1082
    %v1583 = vmul.f32 %v1087, %v1087
    %v1584 = vmul.f32 %v1090, %v1090
    %v1585 = vmul.f32 %v1095, %v1095
    %v1586 = vmul.f32 %v1098, %v1098
    %v1587 = vmul.f32 %v1103, %v1103
    %v1588 = vmul.f32 %v1106, %v1106
    %v1589 = vmul.f32 %v1111, %v1111
    %v1590 = vmul.f32 %v1114, %v1114
    %v1591 = vmul.f32 %v1119, %v1119
    %v1592 = vmul.f32 %v1122, %v1122
    %v1593 = vmul.f32 %v1127, %v1127
    %v1594 = vmul.f32 %v1130, %v1130
    %v1595 = vmul.f32 %v1135, %v1135
    %v1596 = vmul.f32 %v1138, %v1138
    %v1597 = vmul.f32 %v1143, %v1143
    %v1598 = vmul.f32 %v1146, %v1146
    %v1599 = vmul.f32 %v1151, %v1151
    %v1600 = vmul.f32 %v1154, %v1154
    %v1601 = vmul.f32 %v1159, %v1159
    %v1602 = vmul.f32 %v1162, %v1162
    %v1603 = vmul.f32 %v1167, %v1167
    %v1604 = vmul.f32 %v1170, %v1170
    %v1605 = vmul.f32 %v1175, %v1175
    %v1606 = vmul.f32 %v1178, %v1178
    %v1607 = vmul.f32 %v1183, %v1183
    %v1608 = vmul.f32 %v1186, %v1186
    %v1609 = vmul.f32 %v1191, %v1191
    %v1610 = vmul.f32 %v1194, %v1194
    %v1611 = vmul.f32 %v1199, %v1199
    %v1612 = vmul.f32 %v1202, %v1202
    %v1613 = vmul.f32 %v1207, %v1207
    %v1614 = vmul.f32 %v1210, %v1210
    %v1615 = vmul.f32 %v1215, %v1215
    %v1616 = vmul.f32 %v1218, %v1218
    %v1617 = vmul.f32 %v1223, %v1223
    %v1618 = vmul.f32 %v1226, %v1226
    %v1619 = vmul.f32 %v1231, %v1231
    %v1620 = vmul.f32 %v1234, %v1234
    %v1621 = vmul.f32 %v1239, %v1239
    %v1622 = vmul.f32 %v1242, %v1242
    %v1623 = vsel %vm1245, %v1499, 0.0
    %v1624 = vsel %vm1245, %v1500, 0.0
    %v1625 = vadd.f32 %v1623, %v1624
    %v1626 = vsel %vm1245, %v1501, 0.0
    %v1627 = vadd.f32 %v1625, %v1626
    %v1628 = vsel %vm1245, %v1502, 0.0
    %v1629 = vadd.f32 %v1627, %v1628
    %v1630 = vsel %vm1245, %v1503, 0.0
    %v1631 = vadd.f32 %v1629, %v1630
    %v1632 = vsel %vm1245, %v1504, 0.0
    %v1633 = vadd.f32 %v1631, %v1632
    %v1634 = vsel %vm1245, %v1505, 0.0
    %v1635 = vadd.f32 %v1633, %v1634
    %v1636 = vsel %vm1245, %v1506, 0.0
    %v1637 = vadd.f32 %v1635, %v1636
    %v1638 = vsel %vm1245, %v1507, 0.0
    %v1639 = vadd.f32 %v1637, %v1638
    %v1640 = vsel %vm1245, %v1508, 0.0
    %v1641 = vadd.f32 %v1639, %v1640
    %v1642 = vsel %vm1245, %v1509, 0.0
    %v1643 = vadd.f32 %v1641, %v1642
    %v1644 = vsel %vm1245, %v1510, 0.0
    %v1645 = vadd.f32 %v1643, %v1644
    %v1646 = vsel %vm1245, %v1511, 0.0
    %v1647 = vadd.f32 %v1645, %v1646
    %v1648 = vsel %vm1245, %v1512, 0.0
    %v1649 = vadd.f32 %v1647, %v1648
    %v1650 = vsel %vm1245, %v1513, 0.0
    %v1651 = vadd.f32 %v1649, %v1650
    %v1652 = vsel %vm1245, %v1514, 0.0
    %v1653 = vadd.f32 %v1651, %v1652
    %v1654 = vsel %vm1245, %v1515, 0.0
    %v1655 = vadd.f32 %v1653, %v1654
    %v1656 = vsel %vm1245, %v1516, 0.0
    %v1657 = vadd.f32 %v1655, %v1656
    %v1658 = vsel %vm1245, %v1517, 0.0
    %v1659 = vadd.f32 %v1657, %v1658
    %v1660 = vsel %vm1245, %v1518, 0.0
    %v1661 = vadd.f32 %v1659, %v1660
    %v1662 = vsel %vm1245, %v1519, 0.0
    %v1663 = vadd.f32 %v1661, %v1662
    %v1664 = vsel %vm1245, %v1520, 0.0
    %v1665 = vadd.f32 %v1663, %v1664
    %v1666 = vsel %vm1245, %v1521, 0.0
    %v1667 = vadd.f32 %v1665, %v1666
    %v1668 = vsel %vm1245, %v1522, 0.0
    %v1669 = vadd.f32 %v1667, %v1668
    %v1670 = vsel %vm1245, %v1523, 0.0
    %v1671 = vadd.f32 %v1669, %v1670
    %v1672 = vsel %vm1245, %v1524, 0.0
    %v1673 = vadd.f32 %v1671, %v1672
    %v1674 = vsel %vm1245, %v1525, 0.0
    %v1675 = vadd.f32 %v1673, %v1674
    %v1676 = vsel %vm1245, %v1526, 0.0
    %v1677 = vadd.f32 %v1675, %v1676
    %v1678 = vsel %vm1245, %v1527, 0.0
    %v1679 = vadd.f32 %v1677, %v1678
    %v1680 = vsel %vm1245, %v1528, 0.0
    %v1681 = vadd.f32 %v1679, %v1680
    %v1682 = vsel %vm1245, %v1529, 0.0
    %v1683 = vadd.f32 %v1681, %v1682
    %v1684 = vsel %vm1245, %v1530, 0.0
    %v1685 = vadd.f32 %v1683, %v1684
    %v1686 = vsel %vm1245, %v1531, 0.0
    %v1687 = vadd.f32 %v1685, %v1686
    %v1688 = vsel %vm1245, %v1532, 0.0
    %v1689 = vadd.f32 %v1687, %v1688
    %v1690 = vsel %vm1245, %v1533, 0.0
    %v1691 = vadd.f32 %v1689, %v1690
    %v1692 = vsel %vm1245, %v1534, 0.0
    %v1693 = vadd.f32 %v1691, %v1692
    %v1694 = vsel %vm1245, %v1535, 0.0
    %v1695 = vadd.f32 %v1693, %v1694
    %v1696 = vsel %vm1245, %v1536, 0.0
    %v1697 = vadd.f32 %v1695, %v1696
    %v1698 = vsel %vm1245, %v1537, 0.0
    %v1699 = vadd.f32 %v1697, %v1698
    %v1700 = vsel %vm1245, %v1538, 0.0
    %v1701 = vadd.f32 %v1699, %v1700
    %v1702 = vsel %vm1245, %v1539, 0.0
    %v1703 = vadd.f32 %v1701, %v1702
    %v1704 = vsel %vm1245, %v1540, 0.0
    %v1705 = vadd.f32 %v1703, %v1704
    %v1706 = vsel %vm1245, %v1541, 0.0
    %v1707 = vadd.f32 %v1705, %v1706
    %v1708 = vsel %vm1245, %v1542, 0.0
    %v1709 = vadd.f32 %v1707, %v1708
    %v1710 = vsel %vm1245, %v1543, 0.0
    %v1711 = vadd.f32 %v1709, %v1710
    %v1712 = vsel %vm1245, %v1544, 0.0
    %v1713 = vadd.f32 %v1711, %v1712
    %v1714 = vsel %vm1245, %v1545, 0.0
    %v1715 = vadd.f32 %v1713, %v1714
    %v1716 = vsel %vm1245, %v1546, 0.0
    %v1717 = vadd.f32 %v1715, %v1716
    %v1718 = vsel %vm1245, %v1547, 0.0
    %v1719 = vadd.f32 %v1717, %v1718
    %v1720 = vsel %vm1245, %v1548, 0.0
    %v1721 = vadd.f32 %v1719, %v1720
    %v1722 = vsel %vm1245, %v1549, 0.0
    %v1723 = vadd.f32 %v1721, %v1722
    %v1724 = vsel %vm1245, %v1550, 0.0
    %v1725 = vadd.f32 %v1723, %v1724
    %v1726 = vsel %vm1245, %v1551, 0.0
    %v1727 = vadd.f32 %v1725, %v1726
    %v1728 = vsel %vm1245, %v1552, 0.0
    %v1729 = vadd.f32 %v1727, %v1728
    %v1730 = vsel %vm1245, %v1553, 0.0
    %v1731 = vadd.f32 %v1729, %v1730
    %v1732 = vsel %vm1245, %v1554, 0.0
    %v1733 = vadd.f32 %v1731, %v1732
    %v1734 = vsel %vm1245, %v1555, 0.0
    %v1735 = vadd.f32 %v1733, %v1734
    %v1736 = vsel %vm1245, %v1556, 0.0
    %v1737 = vadd.f32 %v1735, %v1736
    %v1738 = vsel %vm1245, %v1557, 0.0
    %v1739 = vadd.f32 %v1737, %v1738
    %v1740 = vsel %vm1245, %v1558, 0.0
    %v1741 = vadd.f32 %v1739, %v1740
    %v1742 = vsel %vm1245, %v1559, 0.0
    %v1743 = vadd.f32 %v1741, %v1742
    %v1744 = vsel %vm1245, %v1560, 0.0
    %v1745 = vadd.f32 %v1743, %v1744
    %v1746 = vsel %vm1245, %v1561, 0.0
    %v1747 = vadd.f32 %v1745, %v1746
    %v1748 = vsel %vm1245, %v1562, 0.0
    %v1749 = vadd.f32 %v1747, %v1748
    %v1750 = vsel %vm1245, %v1563, 0.0
    %v1751 = vadd.f32 %v1749, %v1750
    %v1752 = vsel %vm1245, %v1564, 0.0
    %v1753 = vadd.f32 %v1751, %v1752
    %v1754 = vsel %vm1245, %v1565, 0.0
    %v1755 = vadd.f32 %v1753, %v1754
    %v1756 = vsel %vm1245, %v1566, 0.0
    %v1757 = vadd.f32 %v1755, %v1756
    %v1758 = vsel %vm1245, %v1567, 0.0
    %v1759 = vadd.f32 %v1757, %v1758
    %v1760 = vsel %vm1245, %v1568, 0.0
    %v1761 = vadd.f32 %v1759, %v1760
    %v1762 = vsel %vm1245, %v1569, 0.0
    %v1763 = vadd.f32 %v1761, %v1762
    %v1764 = vsel %vm1245, %v1570, 0.0
    %v1765 = vadd.f32 %v1763, %v1764
    %v1766 = vsel %vm1245, %v1571, 0.0
    %v1767 = vadd.f32 %v1765, %v1766
    %v1768 = vsel %vm1245, %v1572, 0.0
    %v1769 = vadd.f32 %v1767, %v1768
    %v1770 = vsel %vm1245, %v1573, 0.0
    %v1771 = vadd.f32 %v1769, %v1770
    %v1772 = vsel %vm1245, %v1574, 0.0
    %v1773 = vadd.f32 %v1771, %v1772
    %v1774 = vsel %vm1245, %v1575, 0.0
    %v1775 = vadd.f32 %v1773, %v1774
    %v1776 = vsel %vm1245, %v1576, 0.0
    %v1777 = vadd.f32 %v1775, %v1776
    %v1778 = vsel %vm1245, %v1577, 0.0
    %v1779 = vadd.f32 %v1777, %v1778
    %v1780 = vsel %vm1245, %v1578, 0.0
    %v1781 = vadd.f32 %v1779, %v1780
    %v1782 = vsel %vm1245, %v1579, 0.0
    %v1783 = vadd.f32 %v1781, %v1782
    %v1784 = vsel %vm1245, %v1580, 0.0
    %v1785 = vadd.f32 %v1783, %v1784
    %v1786 = vsel %vm1245, %v1581, 0.0
    %v1787 = vadd.f32 %v1785, %v1786
    %v1788 = vsel %vm1245, %v1582, 0.0
    %v1789 = vadd.f32 %v1787, %v1788
    %v1790 = vsel %vm1245, %v1583, 0.0
    %v1791 = vadd.f32 %v1789, %v1790
    %v1792 = vsel %vm1245, %v1584, 0.0
    %v1793 = vadd.f32 %v1791, %v1792
    %v1794 = vsel %vm1245, %v1585, 0.0
    %v1795 = vadd.f32 %v1793, %v1794
    %v1796 = vsel %vm1245, %v1586, 0.0
    %v1797 = vadd.f32 %v1795, %v1796
    %v1798 = vsel %vm1245, %v1587, 0.0
    %v1799 = vadd.f32 %v1797, %v1798
    %v1800 = vsel %vm1245, %v1588, 0.0
    %v1801 = vadd.f32 %v1799, %v1800
    %v1802 = vsel %vm1245, %v1589, 0.0
    %v1803 = vadd.f32 %v1801, %v1802
    %v1804 = vsel %vm1245, %v1590, 0.0
    %v1805 = vadd.f32 %v1803, %v1804
    %v1806 = vsel %vm1245, %v1591, 0.0
    %v1807 = vadd.f32 %v1805, %v1806
    %v1808 = vsel %vm1245, %v1592, 0.0
    %v1809 = vadd.f32 %v1807, %v1808
    %v1810 = vsel %vm1245, %v1593, 0.0
    %v1811 = vadd.f32 %v1809, %v1810
    %v1812 = vsel %vm1245, %v1594, 0.0
    %v1813 = vadd.f32 %v1811, %v1812
    %v1814 = vsel %vm1245, %v1595, 0.0
    %v1815 = vadd.f32 %v1813, %v1814
    %v1816 = vsel %vm1245, %v1596, 0.0
    %v1817 = vadd.f32 %v1815, %v1816
    %v1818 = vsel %vm1245, %v1597, 0.0
    %v1819 = vadd.f32 %v1817, %v1818
    %v1820 = vsel %vm1245, %v1598, 0.0
    %v1821 = vadd.f32 %v1819, %v1820
    %v1822 = vsel %vm1245, %v1599, 0.0
    %v1823 = vadd.f32 %v1821, %v1822
    %v1824 = vsel %vm1245, %v1600, 0.0
    %v1825 = vadd.f32 %v1823, %v1824
    %v1826 = vsel %vm1245, %v1601, 0.0
    %v1827 = vadd.f32 %v1825, %v1826
    %v1828 = vsel %vm1245, %v1602, 0.0
    %v1829 = vadd.f32 %v1827, %v1828
    %v1830 = vsel %vm1245, %v1603, 0.0
    %v1831 = vadd.f32 %v1829, %v1830
    %v1832 = vsel %vm1245, %v1604, 0.0
    %v1833 = vadd.f32 %v1831, %v1832
    %v1834 = vsel %vm1245, %v1605, 0.0
    %v1835 = vadd.f32 %v1833, %v1834
    %v1836 = vsel %vm1245, %v1606, 0.0
    %v1837 = vadd.f32 %v1835, %v1836
    %v1838 = vsel %vm1245, %v1607, 0.0
    %v1839 = vadd.f32 %v1837, %v1838
    %v1840 = vsel %vm1245, %v1608, 0.0
    %v1841 = vadd.f32 %v1839, %v1840
    %v1842 = vsel %vm1245, %v1609, 0.0
    %v1843 = vadd.f32 %v1841, %v1842
    %v1844 = vsel %vm1245, %v1610, 0.0
    %v1845 = vadd.f32 %v1843, %v1844
    %v1846 = vsel %vm1245, %v1611, 0.0
    %v1847 = vadd.f32 %v1845, %v1846
    %v1848 = vsel %vm1245, %v1612, 0.0
    %v1849 = vadd.f32 %v1847, %v1848
    %v1850 = vsel %vm1245, %v1613, 0.0
    %v1851 = vadd.f32 %v1849, %v1850
    %v1852 = vsel %vm1245, %v1614, 0.0
    %v1853 = vadd.f32 %v1851, %v1852
    %v1854 = vsel %vm1245, %v1615, 0.0
    %v1855 = vadd.f32 %v1853, %v1854
    %v1856 = vsel %vm1245, %v1616, 0.0
    %v1857 = vadd.f32 %v1855, %v1856
    %v1858 = vsel %vm1245, %v1617, 0.0
    %v1859 = vadd.f32 %v1857, %v1858
    %v1860 = vsel %vm1245, %v1618, 0.0
    %v1861 = vadd.f32 %v1859, %v1860
    %v1862 = vsel %vm1245, %v1619, 0.0
    %v1863 = vadd.f32 %v1861, %v1862
    %v1864 = vsel %vm1245, %v1620, 0.0
    %v1865 = vadd.f32 %v1863, %v1864
    %v1866 = vsel %vm1245, %v1621, 0.0
    %v1867 = vadd.f32 %v1865, %v1866
    %v1868 = vsel %vm1245, %v1622, 0.0
    %v1869 = vadd.f32 %v1867, %v1868
    %v1870 = vrot.slane %v1869, 4
    %v1871 = vadd.f32 %v1869, %v1870
    %v1872 = vrot.slane %v1871, 2
    %v1873 = vadd.f32 %v1871, %v1872
    %v1874 = vrot.slane %v1873, 1
    %v1875 = vadd.f32 %v1873, %v1874
    %v1876 = vrcp.pop 992.0
    %v1877 = vmul.f32 %v1498, %v1876
    %v1878 = vmul.f32 %v1875, %v1876
    %v1879 = vmul.f32 %v1877, %v1877
    %v1880 = vsub.f32 %v1878, %v1879
    %v1881 = vmax.f32 %v1880, 0.0
    %v1882 = vld [vmem:[%s2] sm:$0x1]
    %v1883 = vadd.f32 %v1881, 1e-05
    %v1884 = vrsqrt.pop %v1883
    %v1885 = vmul.f32 %v1882, %v1884
    %v1886 = vld [vmem:[%s3] sm:$0x1]
    %v1887 = vmul.f32 %v1877, %v1885
    %v1888 = vsub.f32 %v1886, %v1887
    %v1890 = vlaneseq
    %v1891 = vshrl.u32 %v1890, 7
    %v1892 = vsub.s32 0, %v1891
    %v1893 = vrot.slane %v1885, %v1892
    %v1895 = vmul.f32 %v751, %v1893
    %v1896 = vmul.f32 %v754, %v1893
    %v1897 = vmul.f32 %v759, %v1893
    %v1898 = vmul.f32 %v762, %v1893
    %v1899 = vmul.f32 %v767, %v1893
    %v1900 = vmul.f32 %v770, %v1893
    %v1901 = vmul.f32 %v775, %v1893
    %v1902 = vmul.f32 %v778, %v1893
    %v1903 = vmul.f32 %v783, %v1893
    %v1904 = vmul.f32 %v786, %v1893
    %v1905 = vmul.f32 %v791, %v1893
    %v1906 = vmul.f32 %v794, %v1893
    %v1907 = vmul.f32 %v799, %v1893
    %v1908 = vmul.f32 %v802, %v1893
    %v1909 = vmul.f32 %v807, %v1893
    %v1910 = vmul.f32 %v810, %v1893
    %v1911 = vmul.f32 %v815, %v1893
    %v1912 = vmul.f32 %v818, %v1893
    %v1913 = vmul.f32 %v823, %v1893
    %v1914 = vmul.f32 %v826, %v1893
    %v1915 = vmul.f32 %v831, %v1893
    %v1916 = vmul.f32 %v834, %v1893
    %v1917 = vmul.f32 %v839, %v1893
    %v1918 = vmul.f32 %v842, %v1893
    %v1919 = vmul.f32 %v847, %v1893
    %v1920 = vmul.f32 %v850, %v1893
    %v1921 = vmul.f32 %v855, %v1893
    %v1922 = vmul.f32 %v858, %v1893
    %v1923 = vmul.f32 %v863, %v1893
    %v1924 = vmul.f32 %v866, %v1893
    %v1925 = vmul.f32 %v871, %v1893
    %v1926 = vmul.f32 %v874, %v1893
    %v1927 = vmul.f32 %v879, %v1893
    %v1928 = vmul.f32 %v882, %v1893
    %v1929 = vmul.f32 %v887, %v1893
    %v1930 = vmul.f32 %v890, %v1893
    %v1931 = vmul.f32 %v895, %v1893
    %v1932 = vmul.f32 %v898, %v1893
    %v1933 = vmul.f32 %v903, %v1893
    %v1934 = vmul.f32 %v906, %v1893
    %v1935 = vmul.f32 %v911, %v1893
    %v1936 = vmul.f32 %v914, %v1893
    %v1937 = vmul.f32 %v919, %v1893
    %v1938 = vmul.f32 %v922, %v1893
    %v1939 = vmul.f32 %v927, %v1893
    %v1940 = vmul.f32 %v930, %v1893
    %v1941 = vmul.f32 %v935, %v1893
    %v1942 = vmul.f32 %v938, %v1893
    %v1943 = vmul.f32 %v943, %v1893
    %v1944 = vmul.f32 %v946, %v1893
    %v1945 = vmul.f32 %v951, %v1893
    %v1946 = vmul.f32 %v954, %v1893
    %v1947 = vmul.f32 %v959, %v1893
    %v1948 = vmul.f32 %v962, %v1893
    %v1949 = vmul.f32 %v967, %v1893
    %v1950 = vmul.f32 %v970, %v1893
    %v1951 = vmul.f32 %v975, %v1893
    %v1952 = vmul.f32 %v978, %v1893
    %v1953 = vmul.f32 %v983, %v1893
    %v1954 = vmul.f32 %v986, %v1893
    %v1955 = vmul.f32 %v991, %v1893
    %v1956 = vmul.f32 %v994, %v1893
    %v1957 = vmul.f32 %v999, %v1893
    %v1958 = vmul.f32 %v1002, %v1893
    %v1959 = vmul.f32 %v1007, %v1893
    %v1960 = vmul.f32 %v1010, %v1893
    %v1961 = vmul.f32 %v1015, %v1893
    %v1962 = vmul.f32 %v1018, %v1893
    %v1963 = vmul.f32 %v1023, %v1893
    %v1964 = vmul.f32 %v1026, %v1893
    %v1965 = vmul.f32 %v1031, %v1893
    %v1966 = vmul.f32 %v1034, %v1893
    %v1967 = vmul.f32 %v1039, %v1893
    %v1968 = vmul.f32 %v1042, %v1893
    %v1969 = vmul.f32 %v1047, %v1893
    %v1970 = vmul.f32 %v1050, %v1893
    %v1971 = vmul.f32 %v1055, %v1893
    %v1972 = vmul.f32 %v1058, %v1893
    %v1973 = vmul.f32 %v1063, %v1893
    %v1974 = vmul.f32 %v1066, %v1893
    %v1975 = vmul.f32 %v1071, %v1893
    %v1976 = vmul.f32 %v1074, %v1893
    %v1977 = vmul.f32 %v1079, %v1893
    %v1978 = vmul.f32 %v1082, %v1893
    %v1979 = vmul.f32 %v1087, %v1893
    %v1980 = vmul.f32 %v1090, %v1893
    %v1981 = vmul.f32 %v1095, %v1893
    %v1982 = vmul.f32 %v1098, %v1893
    %v1983 = vmul.f32 %v1103, %v1893
    %v1984 = vmul.f32 %v1106, %v1893
    %v1985 = vmul.f32 %v1111, %v1893
    %v1986 = vmul.f32 %v1114, %v1893
    %v1987 = vmul.f32 %v1119, %v1893
    %v1988 = vmul.f32 %v1122, %v1893
    %v1989 = vmul.f32 %v1127, %v1893
    %v1990 = vmul.f32 %v1130, %v1893
    %v1991 = vmul.f32 %v1135, %v1893
    %v1992 = vmul.f32 %v1138, %v1893
    %v1993 = vmul.f32 %v1143, %v1893
    %v1994 = vmul.f32 %v1146, %v1893
    %v1995 = vmul.f32 %v1151, %v1893
    %v1996 = vmul.f32 %v1154, %v1893
    %v1997 = vmul.f32 %v1159, %v1893
    %v1998 = vmul.f32 %v1162, %v1893
    %v1999 = vmul.f32 %v1167, %v1893
    %v2000 = vmul.f32 %v1170, %v1893
    %v2001 = vmul.f32 %v1175, %v1893
    %v2002 = vmul.f32 %v1178, %v1893
    %v2003 = vmul.f32 %v1183, %v1893
    %v2004 = vmul.f32 %v1186, %v1893
    %v2005 = vmul.f32 %v1191, %v1893
    %v2006 = vmul.f32 %v1194, %v1893
    %v2007 = vmul.f32 %v1199, %v1893
    %v2008 = vmul.f32 %v1202, %v1893
    %v2009 = vmul.f32 %v1207, %v1893
    %v2010 = vmul.f32 %v1210, %v1893
    %v2011 = vmul.f32 %v1215, %v1893
    %v2012 = vmul.f32 %v1218, %v1893
    %v2013 = vmul.f32 %v1223, %v1893
    %v2014 = vmul.f32 %v1226, %v1893
    %v2015 = vmul.f32 %v1231, %v1893
    %v2016 = vmul.f32 %v1234, %v1893
    %v2017 = vmul.f32 %v1239, %v1893
    %v2018 = vmul.f32 %v1242, %v1893
    %v2020 = vlaneseq
    %v2021 = vshrl.u32 %v2020, 7
    %v2022 = vsub.s32 0, %v2021
    %v2023 = vrot.slane %v1888, %v2022
    %v2025 = vadd.f32 %v1895, %v2023
    %v2026 = vadd.f32 %v1896, %v2023
    %v2027 = vadd.f32 %v1897, %v2023
    %v2028 = vadd.f32 %v1898, %v2023
    %v2029 = vadd.f32 %v1899, %v2023
    %v2030 = vadd.f32 %v1900, %v2023
    %v2031 = vadd.f32 %v1901, %v2023
    %v2032 = vadd.f32 %v1902, %v2023
    %v2033 = vadd.f32 %v1903, %v2023
    %v2034 = vadd.f32 %v1904, %v2023
    %v2035 = vadd.f32 %v1905, %v2023
    %v2036 = vadd.f32 %v1906, %v2023
    %v2037 = vadd.f32 %v1907, %v2023
    %v2038 = vadd.f32 %v1908, %v2023
    %v2039 = vadd.f32 %v1909, %v2023
    %v2040 = vadd.f32 %v1910, %v2023
    %v2041 = vadd.f32 %v1911, %v2023
    %v2042 = vadd.f32 %v1912, %v2023
    %v2043 = vadd.f32 %v1913, %v2023
    %v2044 = vadd.f32 %v1914, %v2023
    %v2045 = vadd.f32 %v1915, %v2023
    %v2046 = vadd.f32 %v1916, %v2023
    %v2047 = vadd.f32 %v1917, %v2023
    %v2048 = vadd.f32 %v1918, %v2023
    %v2049 = vadd.f32 %v1919, %v2023
    %v2050 = vadd.f32 %v1920, %v2023
    %v2051 = vadd.f32 %v1921, %v2023
    %v2052 = vadd.f32 %v1922, %v2023
    %v2053 = vadd.f32 %v1923, %v2023
    %v2054 = vadd.f32 %v1924, %v2023
    %v2055 = vadd.f32 %v1925, %v2023
    %v2056 = vadd.f32 %v1926, %v2023
    %v2057 = vadd.f32 %v1927, %v2023
    %v2058 = vadd.f32 %v1928, %v2023
    %v2059 = vadd.f32 %v1929, %v2023
    %v2060 = vadd.f32 %v1930, %v2023
    %v2061 = vadd.f32 %v1931, %v2023
    %v2062 = vadd.f32 %v1932, %v2023
    %v2063 = vadd.f32 %v1933, %v2023
    %v2064 = vadd.f32 %v1934, %v2023
    %v2065 = vadd.f32 %v1935, %v2023
    %v2066 = vadd.f32 %v1936, %v2023
    %v2067 = vadd.f32 %v1937, %v2023
    %v2068 = vadd.f32 %v1938, %v2023
    %v2069 = vadd.f32 %v1939, %v2023
    %v2070 = vadd.f32 %v1940, %v2023
    %v2071 = vadd.f32 %v1941, %v2023
    %v2072 = vadd.f32 %v1942, %v2023
    %v2073 = vadd.f32 %v1943, %v2023
    %v2074 = vadd.f32 %v1944, %v2023
    %v2075 = vadd.f32 %v1945, %v2023
    %v2076 = vadd.f32 %v1946, %v2023
    %v2077 = vadd.f32 %v1947, %v2023
    %v2078 = vadd.f32 %v1948, %v2023
    %v2079 = vadd.f32 %v1949, %v2023
    %v2080 = vadd.f32 %v1950, %v2023
    %v2081 = vadd.f32 %v1951, %v2023
    %v2082 = vadd.f32 %v1952, %v2023
    %v2083 = vadd.f32 %v1953, %v2023
    %v2084 = vadd.f32 %v1954, %v2023
    %v2085 = vadd.f32 %v1955, %v2023
    %v2086 = vadd.f32 %v1956, %v2023
    %v2087 = vadd.f32 %v1957, %v2023
    %v2088 = vadd.f32 %v1958, %v2023
    %v2089 = vadd.f32 %v1959, %v2023
    %v2090 = vadd.f32 %v1960, %v2023
    %v2091 = vadd.f32 %v1961, %v2023
    %v2092 = vadd.f32 %v1962, %v2023
    %v2093 = vadd.f32 %v1963, %v2023
    %v2094 = vadd.f32 %v1964, %v2023
    %v2095 = vadd.f32 %v1965, %v2023
    %v2096 = vadd.f32 %v1966, %v2023
    %v2097 = vadd.f32 %v1967, %v2023
    %v2098 = vadd.f32 %v1968, %v2023
    %v2099 = vadd.f32 %v1969, %v2023
    %v2100 = vadd.f32 %v1970, %v2023
    %v2101 = vadd.f32 %v1971, %v2023
    %v2102 = vadd.f32 %v1972, %v2023
    %v2103 = vadd.f32 %v1973, %v2023
    %v2104 = vadd.f32 %v1974, %v2023
    %v2105 = vadd.f32 %v1975, %v2023
    %v2106 = vadd.f32 %v1976, %v2023
    %v2107 = vadd.f32 %v1977, %v2023
    %v2108 = vadd.f32 %v1978, %v2023
    %v2109 = vadd.f32 %v1979, %v2023
    %v2110 = vadd.f32 %v1980, %v2023
    %v2111 = vadd.f32 %v1981, %v2023
    %v2112 = vadd.f32 %v1982, %v2023
    %v2113 = vadd.f32 %v1983, %v2023
    %v2114 = vadd.f32 %v1984, %v2023
    %v2115 = vadd.f32 %v1985, %v2023
    %v2116 = vadd.f32 %v1986, %v2023
    %v2117 = vadd.f32 %v1987, %v2023
    %v2118 = vadd.f32 %v1988, %v2023
    %v2119 = vadd.f32 %v1989, %v2023
    %v2120 = vadd.f32 %v1990, %v2023
    %v2121 = vadd.f32 %v1991, %v2023
    %v2122 = vadd.f32 %v1992, %v2023
    %v2123 = vadd.f32 %v1993, %v2023
    %v2124 = vadd.f32 %v1994, %v2023
    %v2125 = vadd.f32 %v1995, %v2023
    %v2126 = vadd.f32 %v1996, %v2023
    %v2127 = vadd.f32 %v1997, %v2023
    %v2128 = vadd.f32 %v1998, %v2023
    %v2129 = vadd.f32 %v1999, %v2023
    %v2130 = vadd.f32 %v2000, %v2023
    %v2131 = vadd.f32 %v2001, %v2023
    %v2132 = vadd.f32 %v2002, %v2023
    %v2133 = vadd.f32 %v2003, %v2023
    %v2134 = vadd.f32 %v2004, %v2023
    %v2135 = vadd.f32 %v2005, %v2023
    %v2136 = vadd.f32 %v2006, %v2023
    %v2137 = vadd.f32 %v2007, %v2023
    %v2138 = vadd.f32 %v2008, %v2023
    %v2139 = vadd.f32 %v2009, %v2023
    %v2140 = vadd.f32 %v2010, %v2023
    %v2141 = vadd.f32 %v2011, %v2023
    %v2142 = vadd.f32 %v2012, %v2023
    %v2143 = vadd.f32 %v2013, %v2023
    %v2144 = vadd.f32 %v2014, %v2023
    %v2145 = vadd.f32 %v2015, %v2023
    %v2146 = vadd.f32 %v2016, %v2023
    %v2147 = vadd.f32 %v2017, %v2023
    %v2148 = vadd.f32 %v2018, %v2023
    %v2149 = vmax.f32 %v2025, 0.0
    %v2150 = vmax.f32 %v2026, 0.0
    %v2151 = vmax.f32 %v2027, 0.0
    %v2152 = vmax.f32 %v2028, 0.0
    %v2153 = vmax.f32 %v2029, 0.0
    %v2154 = vmax.f32 %v2030, 0.0
    %v2155 = vmax.f32 %v2031, 0.0
    %v2156 = vmax.f32 %v2032, 0.0
    %v2157 = vmax.f32 %v2033, 0.0
    %v2158 = vmax.f32 %v2034, 0.0
    %v2159 = vmax.f32 %v2035, 0.0
    %v2160 = vmax.f32 %v2036, 0.0
    %v2161 = vmax.f32 %v2037, 0.0
    %v2162 = vmax.f32 %v2038, 0.0
    %v2163 = vmax.f32 %v2039, 0.0
    %v2164 = vmax.f32 %v2040, 0.0
    %v2165 = vmax.f32 %v2041, 0.0
    %v2166 = vmax.f32 %v2042, 0.0
    %v2167 = vmax.f32 %v2043, 0.0
    %v2168 = vmax.f32 %v2044, 0.0
    %v2169 = vmax.f32 %v2045, 0.0
    %v2170 = vmax.f32 %v2046, 0.0
    %v2171 = vmax.f32 %v2047, 0.0
    %v2172 = vmax.f32 %v2048, 0.0
    %v2173 = vmax.f32 %v2049, 0.0
    %v2174 = vmax.f32 %v2050, 0.0
    %v2175 = vmax.f32 %v2051, 0.0
    %v2176 = vmax.f32 %v2052, 0.0
    %v2177 = vmax.f32 %v2053, 0.0
    %v2178 = vmax.f32 %v2054, 0.0
    %v2179 = vmax.f32 %v2055, 0.0
    %v2180 = vmax.f32 %v2056, 0.0
    %v2181 = vmax.f32 %v2057, 0.0
    %v2182 = vmax.f32 %v2058, 0.0
    %v2183 = vmax.f32 %v2059, 0.0
    %v2184 = vmax.f32 %v2060, 0.0
    %v2185 = vmax.f32 %v2061, 0.0
    %v2186 = vmax.f32 %v2062, 0.0
    %v2187 = vmax.f32 %v2063, 0.0
    %v2188 = vmax.f32 %v2064, 0.0
    %v2189 = vmax.f32 %v2065, 0.0
    %v2190 = vmax.f32 %v2066, 0.0
    %v2191 = vmax.f32 %v2067, 0.0
    %v2192 = vmax.f32 %v2068, 0.0
    %v2193 = vmax.f32 %v2069, 0.0
    %v2194 = vmax.f32 %v2070, 0.0
    %v2195 = vmax.f32 %v2071, 0.0
    %v2196 = vmax.f32 %v2072, 0.0
    %v2197 = vmax.f32 %v2073, 0.0
    %v2198 = vmax.f32 %v2074, 0.0
    %v2199 = vmax.f32 %v2075, 0.0
    %v2200 = vmax.f32 %v2076, 0.0
    %v2201 = vmax.f32 %v2077, 0.0
    %v2202 = vmax.f32 %v2078, 0.0
    %v2203 = vmax.f32 %v2079, 0.0
    %v2204 = vmax.f32 %v2080, 0.0
    %v2205 = vmax.f32 %v2081, 0.0
    %v2206 = vmax.f32 %v2082, 0.0
    %v2207 = vmax.f32 %v2083, 0.0
    %v2208 = vmax.f32 %v2084, 0.0
    %v2209 = vmax.f32 %v2085, 0.0
    %v2210 = vmax.f32 %v2086, 0.0
    %v2211 = vmax.f32 %v2087, 0.0
    %v2212 = vmax.f32 %v2088, 0.0
    %v2213 = vmax.f32 %v2089, 0.0
    %v2214 = vmax.f32 %v2090, 0.0
    %v2215 = vmax.f32 %v2091, 0.0
    %v2216 = vmax.f32 %v2092, 0.0
    %v2217 = vmax.f32 %v2093, 0.0
    %v2218 = vmax.f32 %v2094, 0.0
    %v2219 = vmax.f32 %v2095, 0.0
    %v2220 = vmax.f32 %v2096, 0.0
    %v2221 = vmax.f32 %v2097, 0.0
    %v2222 = vmax.f32 %v2098, 0.0
    %v2223 = vmax.f32 %v2099, 0.0
    %v2224 = vmax.f32 %v2100, 0.0
    %v2225 = vmax.f32 %v2101, 0.0
    %v2226 = vmax.f32 %v2102, 0.0
    %v2227 = vmax.f32 %v2103, 0.0
    %v2228 = vmax.f32 %v2104, 0.0
    %v2229 = vmax.f32 %v2105, 0.0
    %v2230 = vmax.f32 %v2106, 0.0
    %v2231 = vmax.f32 %v2107, 0.0
    %v2232 = vmax.f32 %v2108, 0.0
    %v2233 = vmax.f32 %v2109, 0.0
    %v2234 = vmax.f32 %v2110, 0.0
    %v2235 = vmax.f32 %v2111, 0.0
    %v2236 = vmax.f32 %v2112, 0.0
    %v2237 = vmax.f32 %v2113, 0.0
    %v2238 = vmax.f32 %v2114, 0.0
    %v2239 = vmax.f32 %v2115, 0.0
    %v2240 = vmax.f32 %v2116, 0.0
    %v2241 = vmax.f32 %v2117, 0.0
    %v2242 = vmax.f32 %v2118, 0.0
    %v2243 = vmax.f32 %v2119, 0.0
    %v2244 = vmax.f32 %v2120, 0.0
    %v2245 = vmax.f32 %v2121, 0.0
    %v2246 = vmax.f32 %v2122, 0.0
    %v2247 = vmax.f32 %v2123, 0.0
    %v2248 = vmax.f32 %v2124, 0.0
    %v2249 = vmax.f32 %v2125, 0.0
    %v2250 = vmax.f32 %v2126, 0.0
    %v2251 = vmax.f32 %v2127, 0.0
    %v2252 = vmax.f32 %v2128, 0.0
    %v2253 = vmax.f32 %v2129, 0.0
    %v2254 = vmax.f32 %v2130, 0.0
    %v2255 = vmax.f32 %v2131, 0.0
    %v2256 = vmax.f32 %v2132, 0.0
    %v2257 = vmax.f32 %v2133, 0.0
    %v2258 = vmax.f32 %v2134, 0.0
    %v2259 = vmax.f32 %v2135, 0.0
    %v2260 = vmax.f32 %v2136, 0.0
    %v2261 = vmax.f32 %v2137, 0.0
    %v2262 = vmax.f32 %v2138, 0.0
    %v2263 = vmax.f32 %v2139, 0.0
    %v2264 = vmax.f32 %v2140, 0.0
    %v2265 = vmax.f32 %v2141, 0.0
    %v2266 = vmax.f32 %v2142, 0.0
    %v2267 = vmax.f32 %v2143, 0.0
    %v2268 = vmax.f32 %v2144, 0.0
    %v2269 = vmax.f32 %v2145, 0.0
    %v2270 = vmax.f32 %v2146, 0.0
    %v2271 = vmax.f32 %v2147, 0.0
    %v2272 = vmax.f32 %v2148, 0.0
    %2273 = vst.msk [vmem:[#allocation2] sm:$0xff] %vm1245, %v2149
    %2274 = vst.msk [vmem:[#allocation2 + $0x8] sm:$0xff] %vm1245, %v2150
    %2275 = vst.msk [vmem:[#allocation2 + $0x10] sm:$0xff] %vm1245, %v2151
    %2276 = vst.msk [vmem:[#allocation2 + $0x18] sm:$0xff] %vm1245, %v2152
    %2277 = vst.msk [vmem:[#allocation2 + $0x20] sm:$0xff] %vm1245, %v2153
    %2278 = vst.msk [vmem:[#allocation2 + $0x28] sm:$0xff] %vm1245, %v2154
    %2279 = vst.msk [vmem:[#allocation2 + $0x30] sm:$0xff] %vm1245, %v2155
    %2280 = vst.msk [vmem:[#allocation2 + $0x38] sm:$0xff] %vm1245, %v2156
    %2281 = vst.msk [vmem:[#allocation2 + $0x40] sm:$0xff] %vm1245, %v2157
    %2282 = vst.msk [vmem:[#allocation2 + $0x48] sm:$0xff] %vm1245, %v2158
    %2283 = vst.msk [vmem:[#allocation2 + $0x50] sm:$0xff] %vm1245, %v2159
    %2284 = vst.msk [vmem:[#allocation2 + $0x58] sm:$0xff] %vm1245, %v2160
    %2285 = vst.msk [vmem:[#allocation2 + $0x60] sm:$0xff] %vm1245, %v2161
    %2286 = vst.msk [vmem:[#allocation2 + $0x68] sm:$0xff] %vm1245, %v2162
    %2287 = vst.msk [vmem:[#allocation2 + $0x70] sm:$0xff] %vm1245, %v2163
    %2288 = vst.msk [vmem:[#allocation2 + $0x78] sm:$0xff] %vm1245, %v2164
    %2289 = vst.msk [vmem:[#allocation2 + $0x80] sm:$0xff] %vm1245, %v2165
    %2290 = vst.msk [vmem:[#allocation2 + $0x88] sm:$0xff] %vm1245, %v2166
    %2291 = vst.msk [vmem:[#allocation2 + $0x90] sm:$0xff] %vm1245, %v2167
    %2292 = vst.msk [vmem:[#allocation2 + $0x98] sm:$0xff] %vm1245, %v2168
    %2293 = vst.msk [vmem:[#allocation2 + $0xa0] sm:$0xff] %vm1245, %v2169
    %2294 = vst.msk [vmem:[#allocation2 + $0xa8] sm:$0xff] %vm1245, %v2170
    %2295 = vst.msk [vmem:[#allocation2 + $0xb0] sm:$0xff] %vm1245, %v2171
    %2296 = vst.msk [vmem:[#allocation2 + $0xb8] sm:$0xff] %vm1245, %v2172
    %2297 = vst.msk [vmem:[#allocation2 + $0xc0] sm:$0xff] %vm1245, %v2173
    %2298 = vst.msk [vmem:[#allocation2 + $0xc8] sm:$0xff] %vm1245, %v2174
    %2299 = vst.msk [vmem:[#allocation2 + $0xd0] sm:$0xff] %vm1245, %v2175
    %2300 = vst.msk [vmem:[#allocation2 + $0xd8] sm:$0xff] %vm1245, %v2176
    %2301 = vst.msk [vmem:[#allocation2 + $0xe0] sm:$0xff] %vm1245, %v2177
    %2302 = vst.msk [vmem:[#allocation2 + $0xe8] sm:$0xff] %vm1245, %v2178
    %2303 = vst.msk [vmem:[#allocation2 + $0xf0] sm:$0xff] %vm1245, %v2179
    %2304 = vst.msk [vmem:[#allocation2 + $0xf8] sm:$0xff] %vm1245, %v2180
    %2305 = vst.msk [vmem:[#allocation2 + $0x100] sm:$0xff] %vm1245, %v2181
    %2306 = vst.msk [vmem:[#allocation2 + $0x108] sm:$0xff] %vm1245, %v2182
    %2307 = vst.msk [vmem:[#allocation2 + $0x110] sm:$0xff] %vm1245, %v2183
    %2308 = vst.msk [vmem:[#allocation2 + $0x118] sm:$0xff] %vm1245, %v2184
    %2309 = vst.msk [vmem:[#allocation2 + $0x120] sm:$0xff] %vm1245, %v2185
    %2310 = vst.msk [vmem:[#allocation2 + $0x128] sm:$0xff] %vm1245, %v2186
    %2311 = vst.msk [vmem:[#allocation2 + $0x130] sm:$0xff] %vm1245, %v2187
    %2312 = vst.msk [vmem:[#allocation2 + $0x138] sm:$0xff] %vm1245, %v2188
    %2313 = vst.msk [vmem:[#allocation2 + $0x140] sm:$0xff] %vm1245, %v2189
    %2314 = vst.msk [vmem:[#allocation2 + $0x148] sm:$0xff] %vm1245, %v2190
    %2315 = vst.msk [vmem:[#allocation2 + $0x150] sm:$0xff] %vm1245, %v2191
    %2316 = vst.msk [vmem:[#allocation2 + $0x158] sm:$0xff] %vm1245, %v2192
    %2317 = vst.msk [vmem:[#allocation2 + $0x160] sm:$0xff] %vm1245, %v2193
    %2318 = vst.msk [vmem:[#allocation2 + $0x168] sm:$0xff] %vm1245, %v2194
    %2319 = vst.msk [vmem:[#allocation2 + $0x170] sm:$0xff] %vm1245, %v2195
    %2320 = vst.msk [vmem:[#allocation2 + $0x178] sm:$0xff] %vm1245, %v2196
    %2321 = vst.msk [vmem:[#allocation2 + $0x180] sm:$0xff] %vm1245, %v2197
    %2322 = vst.msk [vmem:[#allocation2 + $0x188] sm:$0xff] %vm1245, %v2198
    %2323 = vst.msk [vmem:[#allocation2 + $0x190] sm:$0xff] %vm1245, %v2199
    %2324 = vst.msk [vmem:[#allocation2 + $0x198] sm:$0xff] %vm1245, %v2200
    %2325 = vst.msk [vmem:[#allocation2 + $0x1a0] sm:$0xff] %vm1245, %v2201
    %2326 = vst.msk [vmem:[#allocation2 + $0x1a8] sm:$0xff] %vm1245, %v2202
    %2327 = vst.msk [vmem:[#allocation2 + $0x1b0] sm:$0xff] %vm1245, %v2203
    %2328 = vst.msk [vmem:[#allocation2 + $0x1b8] sm:$0xff] %vm1245, %v2204
    %2329 = vst.msk [vmem:[#allocation2 + $0x1c0] sm:$0xff] %vm1245, %v2205
    %2330 = vst.msk [vmem:[#allocation2 + $0x1c8] sm:$0xff] %vm1245, %v2206
    %2331 = vst.msk [vmem:[#allocation2 + $0x1d0] sm:$0xff] %vm1245, %v2207
    %2332 = vst.msk [vmem:[#allocation2 + $0x1d8] sm:$0xff] %vm1245, %v2208
    %2333 = vst.msk [vmem:[#allocation2 + $0x1e0] sm:$0xff] %vm1245, %v2209
    %2334 = vst.msk [vmem:[#allocation2 + $0x1e8] sm:$0xff] %vm1245, %v2210
    %2335 = vst.msk [vmem:[#allocation2 + $0x1f0] sm:$0xff] %vm1245, %v2211
    %2336 = vst.msk [vmem:[#allocation2 + $0x1f8] sm:$0xff] %vm1245, %v2212
    %2337 = vst.msk [vmem:[#allocation2 + $0x200] sm:$0xff] %vm1245, %v2213
    %2338 = vst.msk [vmem:[#allocation2 + $0x208] sm:$0xff] %vm1245, %v2214
    %2339 = vst.msk [vmem:[#allocation2 + $0x210] sm:$0xff] %vm1245, %v2215
    %2340 = vst.msk [vmem:[#allocation2 + $0x218] sm:$0xff] %vm1245, %v2216
    %2341 = vst.msk [vmem:[#allocation2 + $0x220] sm:$0xff] %vm1245, %v2217
    %2342 = vst.msk [vmem:[#allocation2 + $0x228] sm:$0xff] %vm1245, %v2218
    %2343 = vst.msk [vmem:[#allocation2 + $0x230] sm:$0xff] %vm1245, %v2219
    %2344 = vst.msk [vmem:[#allocation2 + $0x238] sm:$0xff] %vm1245, %v2220
    %2345 = vst.msk [vmem:[#allocation2 + $0x240] sm:$0xff] %vm1245, %v2221
    %2346 = vst.msk [vmem:[#allocation2 + $0x248] sm:$0xff] %vm1245, %v2222
    %2347 = vst.msk [vmem:[#allocation2 + $0x250] sm:$0xff] %vm1245, %v2223
    %2348 = vst.msk [vmem:[#allocation2 + $0x258] sm:$0xff] %vm1245, %v2224
    %2349 = vst.msk [vmem:[#allocation2 + $0x260] sm:$0xff] %vm1245, %v2225
    %2350 = vst.msk [vmem:[#allocation2 + $0x268] sm:$0xff] %vm1245, %v2226
    %2351 = vst.msk [vmem:[#allocation2 + $0x270] sm:$0xff] %vm1245, %v2227
    %2352 = vst.msk [vmem:[#allocation2 + $0x278] sm:$0xff] %vm1245, %v2228
    %2353 = vst.msk [vmem:[#allocation2 + $0x280] sm:$0xff] %vm1245, %v2229
    %2354 = vst.msk [vmem:[#allocation2 + $0x288] sm:$0xff] %vm1245, %v2230
    %2355 = vst.msk [vmem:[#allocation2 + $0x290] sm:$0xff] %vm1245, %v2231
    %2356 = vst.msk [vmem:[#allocation2 + $0x298] sm:$0xff] %vm1245, %v2232
    %2357 = vst.msk [vmem:[#allocation2 + $0x2a0] sm:$0xff] %vm1245, %v2233
    %2358 = vst.msk [vmem:[#allocation2 + $0x2a8] sm:$0xff] %vm1245, %v2234
    %2359 = vst.msk [vmem:[#allocation2 + $0x2b0] sm:$0xff] %vm1245, %v2235
    %2360 = vst.msk [vmem:[#allocation2 + $0x2b8] sm:$0xff] %vm1245, %v2236
    %2361 = vst.msk [vmem:[#allocation2 + $0x2c0] sm:$0xff] %vm1245, %v2237
    %2362 = vst.msk [vmem:[#allocation2 + $0x2c8] sm:$0xff] %vm1245, %v2238
    %2363 = vst.msk [vmem:[#allocation2 + $0x2d0] sm:$0xff] %vm1245, %v2239
    %2364 = vst.msk [vmem:[#allocation2 + $0x2d8] sm:$0xff] %vm1245, %v2240
    %2365 = vst.msk [vmem:[#allocation2 + $0x2e0] sm:$0xff] %vm1245, %v2241
    %2366 = vst.msk [vmem:[#allocation2 + $0x2e8] sm:$0xff] %vm1245, %v2242
    %2367 = vst.msk [vmem:[#allocation2 + $0x2f0] sm:$0xff] %vm1245, %v2243
    %2368 = vst.msk [vmem:[#allocation2 + $0x2f8] sm:$0xff] %vm1245, %v2244
    %2369 = vst.msk [vmem:[#allocation2 + $0x300] sm:$0xff] %vm1245, %v2245
    %2370 = vst.msk [vmem:[#allocation2 + $0x308] sm:$0xff] %vm1245, %v2246
    %2371 = vst.msk [vmem:[#allocation2 + $0x310] sm:$0xff] %vm1245, %v2247
    %2372 = vst.msk [vmem:[#allocation2 + $0x318] sm:$0xff] %vm1245, %v2248
    %2373 = vst.msk [vmem:[#allocation2 + $0x320] sm:$0xff] %vm1245, %v2249
    %2374 = vst.msk [vmem:[#allocation2 + $0x328] sm:$0xff] %vm1245, %v2250
    %2375 = vst.msk [vmem:[#allocation2 + $0x330] sm:$0xff] %vm1245, %v2251
    %2376 = vst.msk [vmem:[#allocation2 + $0x338] sm:$0xff] %vm1245, %v2252
    %2377 = vst.msk [vmem:[#allocation2 + $0x340] sm:$0xff] %vm1245, %v2253
    %2378 = vst.msk [vmem:[#allocation2 + $0x348] sm:$0xff] %vm1245, %v2254
    %2379 = vst.msk [vmem:[#allocation2 + $0x350] sm:$0xff] %vm1245, %v2255
    %2380 = vst.msk [vmem:[#allocation2 + $0x358] sm:$0xff] %vm1245, %v2256
    %2381 = vst.msk [vmem:[#allocation2 + $0x360] sm:$0xff] %vm1245, %v2257
    %2382 = vst.msk [vmem:[#allocation2 + $0x368] sm:$0xff] %vm1245, %v2258
    %2383 = vst.msk [vmem:[#allocation2 + $0x370] sm:$0xff] %vm1245, %v2259
    %2384 = vst.msk [vmem:[#allocation2 + $0x378] sm:$0xff] %vm1245, %v2260
    %2385 = vst.msk [vmem:[#allocation2 + $0x380] sm:$0xff] %vm1245, %v2261
    %2386 = vst.msk [vmem:[#allocation2 + $0x388] sm:$0xff] %vm1245, %v2262
    %2387 = vst.msk [vmem:[#allocation2 + $0x390] sm:$0xff] %vm1245, %v2263
    %2388 = vst.msk [vmem:[#allocation2 + $0x398] sm:$0xff] %vm1245, %v2264
    %2389 = vst.msk [vmem:[#allocation2 + $0x3a0] sm:$0xff] %vm1245, %v2265
    %2390 = vst.msk [vmem:[#allocation2 + $0x3a8] sm:$0xff] %vm1245, %v2266
    %2391 = vst.msk [vmem:[#allocation2 + $0x3b0] sm:$0xff] %vm1245, %v2267
    %2392 = vst.msk [vmem:[#allocation2 + $0x3b8] sm:$0xff] %vm1245, %v2268
    %2393 = vst.msk [vmem:[#allocation2 + $0x3c0] sm:$0xff] %vm1245, %v2269
    %2394 = vst.msk [vmem:[#allocation2 + $0x3c8] sm:$0xff] %vm1245, %v2270
    %2395 = vst.msk [vmem:[#allocation2 + $0x3d0] sm:$0xff] %vm1245, %v2271
    %2396 = vst.msk [vmem:[#allocation2 + $0x3d8] sm:$0xff] %vm1245, %v2272
    %v2397 = vld [vmem:[#allocation2] ss:$4 sm:$0xff]
    %s2398 = scalar_lea.vmem [#allocation2], 32
    %v2399 = vld [vmem:[%s2398] ss:$4 sm:$0xff]
    %s2400 = scalar_lea.vmem [#allocation2], 64
    %v2401 = vld [vmem:[%s2400] ss:$4 sm:$0xff]
    %s2402 = scalar_lea.vmem [#allocation2], 96
    %v2403 = vld [vmem:[%s2402] ss:$4 sm:$0xff]
    %s2404 = scalar_lea.vmem [#allocation2], 128
    %v2405 = vld [vmem:[%s2404] ss:$4 sm:$0xff]
    %s2406 = scalar_lea.vmem [#allocation2], 160
    %v2407 = vld [vmem:[%s2406] ss:$4 sm:$0xff]
    %s2408 = scalar_lea.vmem [#allocation2], 192
    %v2409 = vld [vmem:[%s2408] ss:$4 sm:$0xff]
    %s2410 = scalar_lea.vmem [#allocation2], 224
    %v2411 = vld [vmem:[%s2410] ss:$4 sm:$0xff]
    %s2412 = scalar_lea.vmem [#allocation2], 256
    %v2413 = vld [vmem:[%s2412] ss:$4 sm:$0xff]
    %s2414 = scalar_lea.vmem [#allocation2], 288
    %v2415 = vld [vmem:[%s2414] ss:$4 sm:$0xff]
    %s2416 = scalar_lea.vmem [#allocation2], 320
    %v2417 = vld [vmem:[%s2416] ss:$4 sm:$0xff]
    %s2418 = scalar_lea.vmem [#allocation2], 352
    %v2419 = vld [vmem:[%s2418] ss:$4 sm:$0xff]
    %s2420 = scalar_lea.vmem [#allocation2], 384
    %v2421 = vld [vmem:[%s2420] ss:$4 sm:$0xff]
    %s2422 = scalar_lea.vmem [#allocation2], 416
    %v2423 = vld [vmem:[%s2422] ss:$4 sm:$0xff]
    %s2424 = scalar_lea.vmem [#allocation2], 448
    %v2425 = vld [vmem:[%s2424] ss:$4 sm:$0xff]
    %s2426 = scalar_lea.vmem [#allocation2], 480
    %v2427 = vld [vmem:[%s2426] ss:$4 sm:$0xf]
    %s2428 = scalar_lea.vmem [#allocation2], 1
    %v2429 = vld [vmem:[%s2428] ss:$4 sm:$0xff]
    %s2430 = scalar_lea.vmem [#allocation2], 33
    %v2431 = vld [vmem:[%s2430] ss:$4 sm:$0xff]
    %s2432 = scalar_lea.vmem [#allocation2], 65
    %v2433 = vld [vmem:[%s2432] ss:$4 sm:$0xff]
    %s2434 = scalar_lea.vmem [#allocation2], 97
    %v2435 = vld [vmem:[%s2434] ss:$4 sm:$0xff]
    %s2436 = scalar_lea.vmem [#allocation2], 129
    %v2437 = vld [vmem:[%s2436] ss:$4 sm:$0xff]
    %s2438 = scalar_lea.vmem [#allocation2], 161
    %v2439 = vld [vmem:[%s2438] ss:$4 sm:$0xff]
    %s2440 = scalar_lea.vmem [#allocation2], 193
    %v2441 = vld [vmem:[%s2440] ss:$4 sm:$0xff]
    %s2442 = scalar_lea.vmem [#allocation2], 225
    %v2443 = vld [vmem:[%s2442] ss:$4 sm:$0xff]
    %s2444 = scalar_lea.vmem [#allocation2], 257
    %v2445 = vld [vmem:[%s2444] ss:$4 sm:$0xff]
    %s2446 = scalar_lea.vmem [#allocation2], 289
    %v2447 = vld [vmem:[%s2446] ss:$4 sm:$0xff]
    %s2448 = scalar_lea.vmem [#allocation2], 321
    %v2449 = vld [vmem:[%s2448] ss:$4 sm:$0xff]
    %s2450 = scalar_lea.vmem [#allocation2], 353
    %v2451 = vld [vmem:[%s2450] ss:$4 sm:$0xff]
    %s2452 = scalar_lea.vmem [#allocation2], 385
    %v2453 = vld [vmem:[%s2452] ss:$4 sm:$0xff]
    %s2454 = scalar_lea.vmem [#allocation2], 417
    %v2455 = vld [vmem:[%s2454] ss:$4 sm:$0xff]
    %s2456 = scalar_lea.vmem [#allocation2], 449
    %v2457 = vld [vmem:[%s2456] ss:$4 sm:$0xff]
    %s2458 = scalar_lea.vmem [#allocation2], 481
    %v2459 = vld [vmem:[%s2458] ss:$4 sm:$0xf]
    %v2460 = vmax.f32 %v2397, %v2429
    %v2461 = vmax.f32 %v2399, %v2431
    %v2462 = vmax.f32 %v2401, %v2433
    %v2463 = vmax.f32 %v2403, %v2435
    %v2464 = vmax.f32 %v2405, %v2437
    %v2465 = vmax.f32 %v2407, %v2439
    %v2466 = vmax.f32 %v2409, %v2441
    %v2467 = vmax.f32 %v2411, %v2443
    %v2468 = vmax.f32 %v2413, %v2445
    %v2469 = vmax.f32 %v2415, %v2447
    %v2470 = vmax.f32 %v2417, %v2449
    %v2471 = vmax.f32 %v2419, %v2451
    %v2472 = vmax.f32 %v2421, %v2453
    %v2473 = vmax.f32 %v2423, %v2455
    %v2474 = vmax.f32 %v2425, %v2457
    %v2475 = vmax.f32 %v2427, %v2459
    %s2476 = scalar_lea.vmem [#allocation2], 2
    %v2477 = vld [vmem:[%s2476] ss:$4 sm:$0xff]
    %s2478 = scalar_lea.vmem [#allocation2], 34
    %v2479 = vld [vmem:[%s2478] ss:$4 sm:$0xff]
    %s2480 = scalar_lea.vmem [#allocation2], 66
    %v2481 = vld [vmem:[%s2480] ss:$4 sm:$0xff]
    %s2482 = scalar_lea.vmem [#allocation2], 98
    %v2483 = vld [vmem:[%s2482] ss:$4 sm:$0xff]
    %s2484 = scalar_lea.vmem [#allocation2], 130
    %v2485 = vld [vmem:[%s2484] ss:$4 sm:$0xff]
    %s2486 = scalar_lea.vmem [#allocation2], 162
    %v2487 = vld [vmem:[%s2486] ss:$4 sm:$0xff]
    %s2488 = scalar_lea.vmem [#allocation2], 194
    %v2489 = vld [vmem:[%s2488] ss:$4 sm:$0xff]
    %s2490 = scalar_lea.vmem [#allocation2], 226
    %v2491 = vld [vmem:[%s2490] ss:$4 sm:$0xff]
    %s2492 = scalar_lea.vmem [#allocation2], 258
    %v2493 = vld [vmem:[%s2492] ss:$4 sm:$0xff]
    %s2494 = scalar_lea.vmem [#allocation2], 290
    %v2495 = vld [vmem:[%s2494] ss:$4 sm:$0xff]
    %s2496 = scalar_lea.vmem [#allocation2], 322
    %v2497 = vld [vmem:[%s2496] ss:$4 sm:$0xff]
    %s2498 = scalar_lea.vmem [#allocation2], 354
    %v2499 = vld [vmem:[%s2498] ss:$4 sm:$0xff]
    %s2500 = scalar_lea.vmem [#allocation2], 386
    %v2501 = vld [vmem:[%s2500] ss:$4 sm:$0xff]
    %s2502 = scalar_lea.vmem [#allocation2], 418
    %v2503 = vld [vmem:[%s2502] ss:$4 sm:$0xff]
    %s2504 = scalar_lea.vmem [#allocation2], 450
    %v2505 = vld [vmem:[%s2504] ss:$4 sm:$0xff]
    %s2506 = scalar_lea.vmem [#allocation2], 482
    %v2507 = vld [vmem:[%s2506] ss:$4 sm:$0xf]
    %v2508 = vmax.f32 %v2460, %v2477
    %v2509 = vmax.f32 %v2461, %v2479
    %v2510 = vmax.f32 %v2462, %v2481
    %v2511 = vmax.f32 %v2463, %v2483
    %v2512 = vmax.f32 %v2464, %v2485
    %v2513 = vmax.f32 %v2465, %v2487
    %v2514 = vmax.f32 %v2466, %v2489
    %v2515 = vmax.f32 %v2467, %v2491
    %v2516 = vmax.f32 %v2468, %v2493
    %v2517 = vmax.f32 %v2469, %v2495
    %v2518 = vmax.f32 %v2470, %v2497
    %v2519 = vmax.f32 %v2471, %v2499
    %v2520 = vmax.f32 %v2472, %v2501
    %v2521 = vmax.f32 %v2473, %v2503
    %v2522 = vmax.f32 %v2474, %v2505
    %v2523 = vmax.f32 %v2475, %v2507
    %s2524 = scalar_lea.vmem [#allocation2], 3
    %v2525 = vld [vmem:[%s2524] ss:$4 sm:$0xff]
    %s2526 = scalar_lea.vmem [#allocation2], 35
    %v2527 = vld [vmem:[%s2526] ss:$4 sm:$0xff]
    %s2528 = scalar_lea.vmem [#allocation2], 67
    %v2529 = vld [vmem:[%s2528] ss:$4 sm:$0xff]
    %s2530 = scalar_lea.vmem [#allocation2], 99
    %v2531 = vld [vmem:[%s2530] ss:$4 sm:$0xff]
    %s2532 = scalar_lea.vmem [#allocation2], 131
    %v2533 = vld [vmem:[%s2532] ss:$4 sm:$0xff]
    %s2534 = scalar_lea.vmem [#allocation2], 163
    %v2535 = vld [vmem:[%s2534] ss:$4 sm:$0xff]
    %s2536 = scalar_lea.vmem [#allocation2], 195
    %v2537 = vld [vmem:[%s2536] ss:$4 sm:$0xff]
    %s2538 = scalar_lea.vmem [#allocation2], 227
    %v2539 = vld [vmem:[%s2538] ss:$4 sm:$0xff]
    %s2540 = scalar_lea.vmem [#allocation2], 259
    %v2541 = vld [vmem:[%s2540] ss:$4 sm:$0xff]
    %s2542 = scalar_lea.vmem [#allocation2], 291
    %v2543 = vld [vmem:[%s2542] ss:$4 sm:$0xff]
    %s2544 = scalar_lea.vmem [#allocation2], 323
    %v2545 = vld [vmem:[%s2544] ss:$4 sm:$0xff]
    %s2546 = scalar_lea.vmem [#allocation2], 355
    %v2547 = vld [vmem:[%s2546] ss:$4 sm:$0xff]
    %s2548 = scalar_lea.vmem [#allocation2], 387
    %v2549 = vld [vmem:[%s2548] ss:$4 sm:$0xff]
    %s2550 = scalar_lea.vmem [#allocation2], 419
    %v2551 = vld [vmem:[%s2550] ss:$4 sm:$0xff]
    %s2552 = scalar_lea.vmem [#allocation2], 451
    %v2553 = vld [vmem:[%s2552] ss:$4 sm:$0xff]
    %s2554 = scalar_lea.vmem [#allocation2], 483
    %v2555 = vld [vmem:[%s2554] ss:$4 sm:$0xf]
    %v2556 = vmax.f32 %v2508, %v2525
    %v2557 = vmax.f32 %v2509, %v2527
    %v2558 = vmax.f32 %v2510, %v2529
    %v2559 = vmax.f32 %v2511, %v2531
    %v2560 = vmax.f32 %v2512, %v2533
    %v2561 = vmax.f32 %v2513, %v2535
    %v2562 = vmax.f32 %v2514, %v2537
    %v2563 = vmax.f32 %v2515, %v2539
    %v2564 = vmax.f32 %v2516, %v2541
    %v2565 = vmax.f32 %v2517, %v2543
    %v2566 = vmax.f32 %v2518, %v2545
    %v2567 = vmax.f32 %v2519, %v2547
    %v2568 = vmax.f32 %v2520, %v2549
    %v2569 = vmax.f32 %v2521, %v2551
    %v2570 = vmax.f32 %v2522, %v2553
    %v2571 = vmax.f32 %v2523, %v2555
    %v2572 = vpack.c.bf16 %v2557, %v2556
    %v2573 = vpack.c.bf16 %v2559, %v2558
    %v2574 = vpack.c.bf16 %v2561, %v2560
    %v2575 = vpack.c.bf16 %v2563, %v2562
    %v2576 = vpack.c.bf16 %v2565, %v2564
    %v2577 = vpack.c.bf16 %v2567, %v2566
    %v2578 = vpack.c.bf16 %v2569, %v2568
    %v2579 = vpack.c.bf16 %v2571, %v2570
    %v2588 = vunpack.c.l.b16 %v2572
    %v2589 = vunpack.c.h.b16 %v2572
    %v2590 = vunpack.c.l.b16 %v2573
    %v2591 = vunpack.c.h.b16 %v2573
    %v2592 = vunpack.c.l.b16 %v2574
    %v2593 = vunpack.c.h.b16 %v2574
    %v2594 = vunpack.c.l.b16 %v2575
    %v2595 = vunpack.c.h.b16 %v2575
    %v2596 = vunpack.c.l.b16 %v2576
    %v2597 = vunpack.c.h.b16 %v2576
    %v2598 = vunpack.c.l.b16 %v2577
    %v2599 = vunpack.c.h.b16 %v2577
    %v2600 = vunpack.c.l.b16 %v2578
    %v2601 = vunpack.c.h.b16 %v2578
    %v2602 = vunpack.c.l.b16 %v2579
    %v2603 = vunpack.c.h.b16 %v2579
    %v2604 = vpack.c.b16 %v2588, %v2588
    %v2605 = vpack.c.b16 %v2589, %v2589
    %v2606 = vpack.c.b16 %v2590, %v2590
    %v2607 = vpack.c.b16 %v2591, %v2591
    %v2608 = vpack.c.b16 %v2592, %v2592
    %v2609 = vpack.c.b16 %v2593, %v2593
    %v2610 = vpack.c.b16 %v2594, %v2594
    %v2611 = vpack.c.b16 %v2595, %v2595
    %v2612 = vpack.c.b16 %v2596, %v2596
    %v2613 = vpack.c.b16 %v2597, %v2597
    %v2614 = vpack.c.b16 %v2598, %v2598
    %v2615 = vpack.c.b16 %v2599, %v2599
    %v2616 = vpack.c.b16 %v2600, %v2600
    %v2617 = vpack.c.b16 %v2601, %v2601
    %v2618 = vpack.c.b16 %v2602, %v2602
    %v2619 = vpack.c.b16 %v2603, %v2603
    %vm2636 = vcmask 257024
    %2637 = vst.msk [vmem:[#allocation3] sm:$0xf] %vm2636, %v2604
    %2638 = vst.msk [vmem:[#allocation3 + $0x4] sm:$0xf] %vm2636, %v2605
    %2639 = vst.msk [vmem:[#allocation3 + $0x8] sm:$0xf] %vm2636, %v2606
    %2640 = vst.msk [vmem:[#allocation3 + $0xc] sm:$0xf] %vm2636, %v2607
    %2641 = vst.msk [vmem:[#allocation3 + $0x10] sm:$0xf] %vm2636, %v2608
    %2642 = vst.msk [vmem:[#allocation3 + $0x14] sm:$0xf] %vm2636, %v2609
    %2643 = vst.msk [vmem:[#allocation3 + $0x18] sm:$0xf] %vm2636, %v2610
    %2644 = vst.msk [vmem:[#allocation3 + $0x1c] sm:$0xf] %vm2636, %v2611
    %2645 = vst.msk [vmem:[#allocation3 + $0x20] sm:$0xf] %vm2636, %v2612
    %2646 = vst.msk [vmem:[#allocation3 + $0x24] sm:$0xf] %vm2636, %v2613
    %2647 = vst.msk [vmem:[#allocation3 + $0x28] sm:$0xf] %vm2636, %v2614
    %2648 = vst.msk [vmem:[#allocation3 + $0x2c] sm:$0xf] %vm2636, %v2615
    %2649 = vst.msk [vmem:[#allocation3 + $0x30] sm:$0xf] %vm2636, %v2616
    %2650 = vst.msk [vmem:[#allocation3 + $0x34] sm:$0xf] %vm2636, %v2617
    %2651 = vst.msk [vmem:[#allocation3 + $0x38] sm:$0xf] %vm2636, %v2618
    %vm2652 = vcmask 254976
    %2653 = vst.msk [vmem:[#allocation3 + $0x3c] sm:$0x3] %vm2652, %v2619
    %s2654 = scalar_lea.vmem [#allocation2], 496
    %v2655 = vld [vmem:[%s2654] ss:$4 sm:$0xff]
    %s2656 = scalar_lea.vmem [#allocation2], 528
    %v2657 = vld [vmem:[%s2656] ss:$4 sm:$0xff]
    %s2658 = scalar_lea.vmem [#allocation2], 560
    %v2659 = vld [vmem:[%s2658] ss:$4 sm:$0xff]
    %s2660 = scalar_lea.vmem [#allocation2], 592
    %v2661 = vld [vmem:[%s2660] ss:$4 sm:$0xff]
    %s2662 = scalar_lea.vmem [#allocation2], 624
    %v2663 = vld [vmem:[%s2662] ss:$4 sm:$0xff]
    %s2664 = scalar_lea.vmem [#allocation2], 656
    %v2665 = vld [vmem:[%s2664] ss:$4 sm:$0xff]
    %s2666 = scalar_lea.vmem [#allocation2], 688
    %v2667 = vld [vmem:[%s2666] ss:$4 sm:$0xff]
    %s2668 = scalar_lea.vmem [#allocation2], 720
    %v2669 = vld [vmem:[%s2668] ss:$4 sm:$0xff]
    %s2670 = scalar_lea.vmem [#allocation2], 752
    %v2671 = vld [vmem:[%s2670] ss:$4 sm:$0xff]
    %s2672 = scalar_lea.vmem [#allocation2], 784
    %v2673 = vld [vmem:[%s2672] ss:$4 sm:$0xff]
    %s2674 = scalar_lea.vmem [#allocation2], 816
    %v2675 = vld [vmem:[%s2674] ss:$4 sm:$0xff]
    %s2676 = scalar_lea.vmem [#allocation2], 848
    %v2677 = vld [vmem:[%s2676] ss:$4 sm:$0xff]
    %s2678 = scalar_lea.vmem [#allocation2], 880
    %v2679 = vld [vmem:[%s2678] ss:$4 sm:$0xff]
    %s2680 = scalar_lea.vmem [#allocation2], 912
    %v2681 = vld [vmem:[%s2680] ss:$4 sm:$0xff]
    %s2682 = scalar_lea.vmem [#allocation2], 944
    %v2683 = vld [vmem:[%s2682] ss:$4 sm:$0xff]
    %s2684 = scalar_lea.vmem [#allocation2], 976
    %v2685 = vld [vmem:[%s2684] ss:$4 sm:$0xf]
    %s2686 = scalar_lea.vmem [#allocation2], 497
    %v2687 = vld [vmem:[%s2686] ss:$4 sm:$0xff]
    %s2688 = scalar_lea.vmem [#allocation2], 529
    %v2689 = vld [vmem:[%s2688] ss:$4 sm:$0xff]
    %s2690 = scalar_lea.vmem [#allocation2], 561
    %v2691 = vld [vmem:[%s2690] ss:$4 sm:$0xff]
    %s2692 = scalar_lea.vmem [#allocation2], 593
    %v2693 = vld [vmem:[%s2692] ss:$4 sm:$0xff]
    %s2694 = scalar_lea.vmem [#allocation2], 625
    %v2695 = vld [vmem:[%s2694] ss:$4 sm:$0xff]
    %s2696 = scalar_lea.vmem [#allocation2], 657
    %v2697 = vld [vmem:[%s2696] ss:$4 sm:$0xff]
    %s2698 = scalar_lea.vmem [#allocation2], 689
    %v2699 = vld [vmem:[%s2698] ss:$4 sm:$0xff]
    %s2700 = scalar_lea.vmem [#allocation2], 721
    %v2701 = vld [vmem:[%s2700] ss:$4 sm:$0xff]
    %s2702 = scalar_lea.vmem [#allocation2], 753
    %v2703 = vld [vmem:[%s2702] ss:$4 sm:$0xff]
    %s2704 = scalar_lea.vmem [#allocation2], 785
    %v2705 = vld [vmem:[%s2704] ss:$4 sm:$0xff]
    %s2706 = scalar_lea.vmem [#allocation2], 817
    %v2707 = vld [vmem:[%s2706] ss:$4 sm:$0xff]
    %s2708 = scalar_lea.vmem [#allocation2], 849
    %v2709 = vld [vmem:[%s2708] ss:$4 sm:$0xff]
    %s2710 = scalar_lea.vmem [#allocation2], 881
    %v2711 = vld [vmem:[%s2710] ss:$4 sm:$0xff]
    %s2712 = scalar_lea.vmem [#allocation2], 913
    %v2713 = vld [vmem:[%s2712] ss:$4 sm:$0xff]
    %s2714 = scalar_lea.vmem [#allocation2], 945
    %v2715 = vld [vmem:[%s2714] ss:$4 sm:$0xff]
    %s2716 = scalar_lea.vmem [#allocation2], 977
    %v2717 = vld [vmem:[%s2716] ss:$4 sm:$0xf]
    %v2718 = vmax.f32 %v2655, %v2687
    %v2719 = vmax.f32 %v2657, %v2689
    %v2720 = vmax.f32 %v2659, %v2691
    %v2721 = vmax.f32 %v2661, %v2693
    %v2722 = vmax.f32 %v2663, %v2695
    %v2723 = vmax.f32 %v2665, %v2697
    %v2724 = vmax.f32 %v2667, %v2699
    %v2725 = vmax.f32 %v2669, %v2701
    %v2726 = vmax.f32 %v2671, %v2703
    %v2727 = vmax.f32 %v2673, %v2705
    %v2728 = vmax.f32 %v2675, %v2707
    %v2729 = vmax.f32 %v2677, %v2709
    %v2730 = vmax.f32 %v2679, %v2711
    %v2731 = vmax.f32 %v2681, %v2713
    %v2732 = vmax.f32 %v2683, %v2715
    %v2733 = vmax.f32 %v2685, %v2717
    %s2734 = scalar_lea.vmem [#allocation2], 498
    %v2735 = vld [vmem:[%s2734] ss:$4 sm:$0xff]
    %s2736 = scalar_lea.vmem [#allocation2], 530
    %v2737 = vld [vmem:[%s2736] ss:$4 sm:$0xff]
    %s2738 = scalar_lea.vmem [#allocation2], 562
    %v2739 = vld [vmem:[%s2738] ss:$4 sm:$0xff]
    %s2740 = scalar_lea.vmem [#allocation2], 594
    %v2741 = vld [vmem:[%s2740] ss:$4 sm:$0xff]
    %s2742 = scalar_lea.vmem [#allocation2], 626
    %v2743 = vld [vmem:[%s2742] ss:$4 sm:$0xff]
    %s2744 = scalar_lea.vmem [#allocation2], 658
    %v2745 = vld [vmem:[%s2744] ss:$4 sm:$0xff]
    %s2746 = scalar_lea.vmem [#allocation2], 690
    %v2747 = vld [vmem:[%s2746] ss:$4 sm:$0xff]
    %s2748 = scalar_lea.vmem [#allocation2], 722
    %v2749 = vld [vmem:[%s2748] ss:$4 sm:$0xff]
    %s2750 = scalar_lea.vmem [#allocation2], 754
    %v2751 = vld [vmem:[%s2750] ss:$4 sm:$0xff]
    %s2752 = scalar_lea.vmem [#allocation2], 786
    %v2753 = vld [vmem:[%s2752] ss:$4 sm:$0xff]
    %s2754 = scalar_lea.vmem [#allocation2], 818
    %v2755 = vld [vmem:[%s2754] ss:$4 sm:$0xff]
    %s2756 = scalar_lea.vmem [#allocation2], 850
    %v2757 = vld [vmem:[%s2756] ss:$4 sm:$0xff]
    %s2758 = scalar_lea.vmem [#allocation2], 882
    %v2759 = vld [vmem:[%s2758] ss:$4 sm:$0xff]
    %s2760 = scalar_lea.vmem [#allocation2], 914
    %v2761 = vld [vmem:[%s2760] ss:$4 sm:$0xff]
    %s2762 = scalar_lea.vmem [#allocation2], 946
    %v2763 = vld [vmem:[%s2762] ss:$4 sm:$0xff]
    %s2764 = scalar_lea.vmem [#allocation2], 978
    %v2765 = vld [vmem:[%s2764] ss:$4 sm:$0xf]
    %v2766 = vmax.f32 %v2718, %v2735
    %v2767 = vmax.f32 %v2719, %v2737
    %v2768 = vmax.f32 %v2720, %v2739
    %v2769 = vmax.f32 %v2721, %v2741
    %v2770 = vmax.f32 %v2722, %v2743
    %v2771 = vmax.f32 %v2723, %v2745
    %v2772 = vmax.f32 %v2724, %v2747
    %v2773 = vmax.f32 %v2725, %v2749
    %v2774 = vmax.f32 %v2726, %v2751
    %v2775 = vmax.f32 %v2727, %v2753
    %v2776 = vmax.f32 %v2728, %v2755
    %v2777 = vmax.f32 %v2729, %v2757
    %v2778 = vmax.f32 %v2730, %v2759
    %v2779 = vmax.f32 %v2731, %v2761
    %v2780 = vmax.f32 %v2732, %v2763
    %v2781 = vmax.f32 %v2733, %v2765
    %s2782 = scalar_lea.vmem [#allocation2], 499
    %v2783 = vld [vmem:[%s2782] ss:$4 sm:$0xff]
    %s2784 = scalar_lea.vmem [#allocation2], 531
    %v2785 = vld [vmem:[%s2784] ss:$4 sm:$0xff]
    %s2786 = scalar_lea.vmem [#allocation2], 563
    %v2787 = vld [vmem:[%s2786] ss:$4 sm:$0xff]
    %s2788 = scalar_lea.vmem [#allocation2], 595
    %v2789 = vld [vmem:[%s2788] ss:$4 sm:$0xff]
    %s2790 = scalar_lea.vmem [#allocation2], 627
    %v2791 = vld [vmem:[%s2790] ss:$4 sm:$0xff]
    %s2792 = scalar_lea.vmem [#allocation2], 659
    %v2793 = vld [vmem:[%s2792] ss:$4 sm:$0xff]
    %s2794 = scalar_lea.vmem [#allocation2], 691
    %v2795 = vld [vmem:[%s2794] ss:$4 sm:$0xff]
    %s2796 = scalar_lea.vmem [#allocation2], 723
    %v2797 = vld [vmem:[%s2796] ss:$4 sm:$0xff]
    %s2798 = scalar_lea.vmem [#allocation2], 755
    %v2799 = vld [vmem:[%s2798] ss:$4 sm:$0xff]
    %s2800 = scalar_lea.vmem [#allocation2], 787
    %v2801 = vld [vmem:[%s2800] ss:$4 sm:$0xff]
    %s2802 = scalar_lea.vmem [#allocation2], 819
    %v2803 = vld [vmem:[%s2802] ss:$4 sm:$0xff]
    %s2804 = scalar_lea.vmem [#allocation2], 851
    %v2805 = vld [vmem:[%s2804] ss:$4 sm:$0xff]
    %s2806 = scalar_lea.vmem [#allocation2], 883
    %v2807 = vld [vmem:[%s2806] ss:$4 sm:$0xff]
    %s2808 = scalar_lea.vmem [#allocation2], 915
    %v2809 = vld [vmem:[%s2808] ss:$4 sm:$0xff]
    %s2810 = scalar_lea.vmem [#allocation2], 947
    %v2811 = vld [vmem:[%s2810] ss:$4 sm:$0xff]
    %s2812 = scalar_lea.vmem [#allocation2], 979
    %v2813 = vld [vmem:[%s2812] ss:$4 sm:$0xf]
    %v2814 = vmax.f32 %v2766, %v2783
    %v2815 = vmax.f32 %v2767, %v2785
    %v2816 = vmax.f32 %v2768, %v2787
    %v2817 = vmax.f32 %v2769, %v2789
    %v2818 = vmax.f32 %v2770, %v2791
    %v2819 = vmax.f32 %v2771, %v2793
    %v2820 = vmax.f32 %v2772, %v2795
    %v2821 = vmax.f32 %v2773, %v2797
    %v2822 = vmax.f32 %v2774, %v2799
    %v2823 = vmax.f32 %v2775, %v2801
    %v2824 = vmax.f32 %v2776, %v2803
    %v2825 = vmax.f32 %v2777, %v2805
    %v2826 = vmax.f32 %v2778, %v2807
    %v2827 = vmax.f32 %v2779, %v2809
    %v2828 = vmax.f32 %v2780, %v2811
    %v2829 = vmax.f32 %v2781, %v2813
    %v2830 = vpack.c.bf16 %v2815, %v2814
    %v2831 = vpack.c.bf16 %v2817, %v2816
    %v2832 = vpack.c.bf16 %v2819, %v2818
    %v2833 = vpack.c.bf16 %v2821, %v2820
    %v2834 = vpack.c.bf16 %v2823, %v2822
    %v2835 = vpack.c.bf16 %v2825, %v2824
    %v2836 = vpack.c.bf16 %v2827, %v2826
    %v2837 = vpack.c.bf16 %v2829, %v2828
    %v2846 = vunpack.c.l.b16 %v2830
    %v2847 = vunpack.c.h.b16 %v2830
    %v2848 = vunpack.c.l.b16 %v2831
    %v2849 = vunpack.c.h.b16 %v2831
    %v2850 = vunpack.c.l.b16 %v2832
    %v2851 = vunpack.c.h.b16 %v2832
    %v2852 = vunpack.c.l.b16 %v2833
    %v2853 = vunpack.c.h.b16 %v2833
    %v2854 = vunpack.c.l.b16 %v2834
    %v2855 = vunpack.c.h.b16 %v2834
    %v2856 = vunpack.c.l.b16 %v2835
    %v2857 = vunpack.c.h.b16 %v2835
    %v2858 = vunpack.c.l.b16 %v2836
    %v2859 = vunpack.c.h.b16 %v2836
    %v2860 = vunpack.c.l.b16 %v2837
    %v2861 = vunpack.c.h.b16 %v2837
    %v2862 = vpack.c.b16 %v2846, %v2846
    %v2863 = vpack.c.b16 %v2847, %v2847
    %v2864 = vpack.c.b16 %v2848, %v2848
    %v2865 = vpack.c.b16 %v2849, %v2849
    %v2866 = vpack.c.b16 %v2850, %v2850
    %v2867 = vpack.c.b16 %v2851, %v2851
    %v2868 = vpack.c.b16 %v2852, %v2852
    %v2869 = vpack.c.b16 %v2853, %v2853
    %v2870 = vpack.c.b16 %v2854, %v2854
    %v2871 = vpack.c.b16 %v2855, %v2855
    %v2872 = vpack.c.b16 %v2856, %v2856
    %v2873 = vpack.c.b16 %v2857, %v2857
    %v2874 = vpack.c.b16 %v2858, %v2858
    %v2875 = vpack.c.b16 %v2859, %v2859
    %v2876 = vpack.c.b16 %v2860, %v2860
    %v2877 = vpack.c.b16 %v2861, %v2861
    %s2894 = scalar_lea.vmem [#allocation3], 64
    %2895 = vst.msk [vmem:[%s2894] sm:$0xf] %vm2636, %v2862
    %2896 = vst.msk [vmem:[%s2894 + $0x4] sm:$0xf] %vm2636, %v2863
    %2897 = vst.msk [vmem:[%s2894 + $0x8] sm:$0xf] %vm2636, %v2864
    %2898 = vst.msk [vmem:[%s2894 + $0xc] sm:$0xf] %vm2636, %v2865
    %2899 = vst.msk [vmem:[%s2894 + $0x10] sm:$0xf] %vm2636, %v2866
    %2900 = vst.msk [vmem:[%s2894 + $0x14] sm:$0xf] %vm2636, %v2867
    %2901 = vst.msk [vmem:[%s2894 + $0x18] sm:$0xf] %vm2636, %v2868
    %2902 = vst.msk [vmem:[%s2894 + $0x1c] sm:$0xf] %vm2636, %v2869
    %2903 = vst.msk [vmem:[%s2894 + $0x20] sm:$0xf] %vm2636, %v2870
    %2904 = vst.msk [vmem:[%s2894 + $0x24] sm:$0xf] %vm2636, %v2871
    %2905 = vst.msk [vmem:[%s2894 + $0x28] sm:$0xf] %vm2636, %v2872
    %2906 = vst.msk [vmem:[%s2894 + $0x2c] sm:$0xf] %vm2636, %v2873
    %2907 = vst.msk [vmem:[%s2894 + $0x30] sm:$0xf] %vm2636, %v2874
    %2908 = vst.msk [vmem:[%s2894 + $0x34] sm:$0xf] %vm2636, %v2875
    %2909 = vst.msk [vmem:[%s2894 + $0x38] sm:$0xf] %vm2636, %v2876
    %2910 = vst.msk [vmem:[%s2894 + $0x3c] sm:$0x3] %vm2652, %v2877
    %v2911 = vld [vmem:[#allocation3] sm:$0xf]
    %v2912 = vld [vmem:[#allocation3 + $0x4] sm:$0xf]
    %v2913 = vld [vmem:[#allocation3 + $0x8] sm:$0xf]
    %v2914 = vld [vmem:[#allocation3 + $0xc] sm:$0xf]
    %v2915 = vld [vmem:[#allocation3 + $0x10] sm:$0xf]
    %v2916 = vld [vmem:[#allocation3 + $0x14] sm:$0xf]
    %v2917 = vld [vmem:[#allocation3 + $0x18] sm:$0xf]
    %v2918 = vld [vmem:[#allocation3 + $0x1c] sm:$0xf]
    %v2919 = vld [vmem:[#allocation3 + $0x20] sm:$0xf]
    %v2920 = vld [vmem:[#allocation3 + $0x24] sm:$0xf]
    %v2921 = vld [vmem:[#allocation3 + $0x28] sm:$0xf]
    %v2922 = vld [vmem:[#allocation3 + $0x2c] sm:$0xf]
    %v2923 = vld [vmem:[#allocation3 + $0x30] sm:$0xf]
    %v2924 = vld [vmem:[#allocation3 + $0x34] sm:$0xf]
    %v2925 = vld [vmem:[#allocation3 + $0x38] sm:$0xf]
    %v2926 = vld [vmem:[#allocation3 + $0x3c] sm:$0x1]
    %2927 = vst.msk [vmem:[#allocation4] sm:$0xf] %vm2636, %v2911
    %2928 = vst.msk [vmem:[#allocation4 + $0x8] sm:$0xf] %vm2636, %v2912
    %2929 = vst.msk [vmem:[#allocation4 + $0x10] sm:$0xf] %vm2636, %v2913
    %2930 = vst.msk [vmem:[#allocation4 + $0x18] sm:$0xf] %vm2636, %v2914
    %2931 = vst.msk [vmem:[#allocation4 + $0x20] sm:$0xf] %vm2636, %v2915
    %2932 = vst.msk [vmem:[#allocation4 + $0x28] sm:$0xf] %vm2636, %v2916
    %2933 = vst.msk [vmem:[#allocation4 + $0x30] sm:$0xf] %vm2636, %v2917
    %2934 = vst.msk [vmem:[#allocation4 + $0x38] sm:$0xf] %vm2636, %v2918
    %2935 = vst.msk [vmem:[#allocation4 + $0x40] sm:$0xf] %vm2636, %v2919
    %2936 = vst.msk [vmem:[#allocation4 + $0x48] sm:$0xf] %vm2636, %v2920
    %2937 = vst.msk [vmem:[#allocation4 + $0x50] sm:$0xf] %vm2636, %v2921
    %2938 = vst.msk [vmem:[#allocation4 + $0x58] sm:$0xf] %vm2636, %v2922
    %2939 = vst.msk [vmem:[#allocation4 + $0x60] sm:$0xf] %vm2636, %v2923
    %2940 = vst.msk [vmem:[#allocation4 + $0x68] sm:$0xf] %vm2636, %v2924
    %2941 = vst.msk [vmem:[#allocation4 + $0x70] sm:$0xf] %vm2636, %v2925
    %vm2942 = vcmask 253952
    %2943 = vst.msk [vmem:[#allocation4 + $0x78] sm:$0x1] %vm2942, %v2926
    %v2944 = vld [vmem:[#allocation3] sm:$0xf]
    %v2945 = vld [vmem:[#allocation3 + $0x4] sm:$0xf]
    %v2946 = vld [vmem:[#allocation3 + $0x8] sm:$0xf]
    %v2947 = vld [vmem:[#allocation3 + $0xc] sm:$0xf]
    %v2948 = vld [vmem:[#allocation3 + $0x10] sm:$0xf]
    %v2949 = vld [vmem:[#allocation3 + $0x14] sm:$0xf]
    %v2950 = vld [vmem:[#allocation3 + $0x18] sm:$0xf]
    %v2951 = vld [vmem:[#allocation3 + $0x1c] sm:$0xf]
    %v2952 = vld [vmem:[#allocation3 + $0x20] sm:$0xf]
    %v2953 = vld [vmem:[#allocation3 + $0x24] sm:$0xf]
    %v2954 = vld [vmem:[#allocation3 + $0x28] sm:$0xf]
    %v2955 = vld [vmem:[#allocation3 + $0x2c] sm:$0xf]
    %v2956 = vld [vmem:[#allocation3 + $0x30] sm:$0xf]
    %v2957 = vld [vmem:[#allocation3 + $0x34] sm:$0xf]
    %v2958 = vld [vmem:[#allocation3 + $0x38] sm:$0xf]
    %v2959 = vld [vmem:[#allocation3 + $0x3c] sm:$0x3]
    %vm2960 = vsmask.f32 3328
    %vm2961 = vsmask.f32 7440
    %vm2962 = vmor %vm2960, %vm2961
    %v2964 = vshrl.u32 %v2944, 16
    %v2966 = vrot.slane %v2964, 4
    %v2967 = vshll.u32 %v2944, 16
    %v2969 = vrot.slane %v2967, 5
    %v2970 = vor.u32 %v2966, %v2969
    %v2971 = vrot.slane %v2970, 4
    %v2973 = vshll.u32 %v2945, 16
    %v2975 = vrot.slane %v2973, 5
    %v2976 = vsel %vm2962, %v2971, %v2975
    %v2977 = vshrl.u32 %v2945, 16
    %v2979 = vrot.slane %v2977, 4
    %v2980 = vor.u32 %v2979, %v2975
    %v2981 = vrot.slane %v2980, 4
    %v2983 = vshll.u32 %v2946, 16
    %v2985 = vrot.slane %v2983, 5
    %v2986 = vsel %vm2962, %v2981, %v2985
    %v2987 = vshrl.u32 %v2946, 16
    %v2989 = vrot.slane %v2987, 4
    %v2990 = vor.u32 %v2989, %v2985
    %v2991 = vrot.slane %v2990, 4
    %v2993 = vshll.u32 %v2947, 16
    %v2995 = vrot.slane %v2993, 5
    %v2996 = vsel %vm2962, %v2991, %v2995
    %v2997 = vshrl.u32 %v2947, 16
    %v2999 = vrot.slane %v2997, 4
    %v3000 = vor.u32 %v2999, %v2995
    %v3001 = vrot.slane %v3000, 4
    %v3003 = vshll.u32 %v2948, 16
    %v3005 = vrot.slane %v3003, 5
    %v3006 = vsel %vm2962, %v3001, %v3005
    %v3007 = vshrl.u32 %v2948, 16
    %v3009 = vrot.slane %v3007, 4
    %v3010 = vor.u32 %v3009, %v3005
    %v3011 = vrot.slane %v3010, 4
    %v3013 = vshll.u32 %v2949, 16
    %v3015 = vrot.slane %v3013, 5
    %v3016 = vsel %vm2962, %v3011, %v3015
    %v3017 = vshrl.u32 %v2949, 16
    %v3019 = vrot.slane %v3017, 4
    %v3020 = vor.u32 %v3019, %v3015
    %v3021 = vrot.slane %v3020, 4
    %v3023 = vshll.u32 %v2950, 16
    %v3025 = vrot.slane %v3023, 5
    %v3026 = vsel %vm2962, %v3021, %v3025
    %v3027 = vshrl.u32 %v2950, 16
    %v3029 = vrot.slane %v3027, 4
    %v3030 = vor.u32 %v3029, %v3025
    %v3031 = vrot.slane %v3030, 4
    %v3033 = vshll.u32 %v2951, 16
    %v3035 = vrot.slane %v3033, 5
    %v3036 = vsel %vm2962, %v3031, %v3035
    %v3037 = vshrl.u32 %v2951, 16
    %v3039 = vrot.slane %v3037, 4
    %v3040 = vor.u32 %v3039, %v3035
    %v3041 = vrot.slane %v3040, 4
    %v3043 = vshll.u32 %v2952, 16
    %v3045 = vrot.slane %v3043, 5
    %v3046 = vsel %vm2962, %v3041, %v3045
    %v3047 = vshrl.u32 %v2952, 16
    %v3049 = vrot.slane %v3047, 4
    %v3050 = vor.u32 %v3049, %v3045
    %v3051 = vrot.slane %v3050, 4
    %v3053 = vshll.u32 %v2953, 16
    %v3055 = vrot.slane %v3053, 5
    %v3056 = vsel %vm2962, %v3051, %v3055
    %v3057 = vshrl.u32 %v2953, 16
    %v3059 = vrot.slane %v3057, 4
    %v3060 = vor.u32 %v3059, %v3055
    %v3061 = vrot.slane %v3060, 4
    %v3063 = vshll.u32 %v2954, 16
    %v3065 = vrot.slane %v3063, 5
    %v3066 = vsel %vm2962, %v3061, %v3065
    %v3067 = vshrl.u32 %v2954, 16
    %v3069 = vrot.slane %v3067, 4
    %v3070 = vor.u32 %v3069, %v3065
    %v3071 = vrot.slane %v3070, 4
    %v3073 = vshll.u32 %v2955, 16
    %v3075 = vrot.slane %v3073, 5
    %v3076 = vsel %vm2962, %v3071, %v3075
    %v3077 = vshrl.u32 %v2955, 16
    %v3079 = vrot.slane %v3077, 4
    %v3080 = vor.u32 %v3079, %v3075
    %v3081 = vrot.slane %v3080, 4
    %v3083 = vshll.u32 %v2956, 16
    %v3085 = vrot.slane %v3083, 5
    %v3086 = vsel %vm2962, %v3081, %v3085
    %v3087 = vshrl.u32 %v2956, 16
    %v3089 = vrot.slane %v3087, 4
    %v3090 = vor.u32 %v3089, %v3085
    %v3091 = vrot.slane %v3090, 4
    %v3093 = vshll.u32 %v2957, 16
    %v3095 = vrot.slane %v3093, 5
    %v3096 = vsel %vm2962, %v3091, %v3095
    %v3097 = vshrl.u32 %v2957, 16
    %v3099 = vrot.slane %v3097, 4
    %v3100 = vor.u32 %v3099, %v3095
    %v3101 = vrot.slane %v3100, 4
    %v3103 = vshll.u32 %v2958, 16
    %v3105 = vrot.slane %v3103, 5
    %v3106 = vsel %vm2962, %v3101, %v3105
    %v3107 = vshrl.u32 %v2958, 16
    %v3109 = vrot.slane %v3107, 4
    %v3110 = vor.u32 %v3109, %v3105
    %v3111 = vrot.slane %v3110, 4
    %v3113 = vshll.u32 %v2959, 16
    %v3115 = vrot.slane %v3113, 5
    %v3116 = vsel %vm2962, %v3111, %v3115
    %v3117 = vshrl.u32 %v2959, 16
    %v3119 = vrot.slane %v3117, 4
    %v3120 = vor.u32 %v3119, %v3115
    %v3121 = vrot.slane %v3120, 4
    %3122 = vrot.lane.b32.xlu0 %v2976, 32
    %v3123 = vpop.permute.xlu0 %3122
    %3124 = vrot.lane.b32.xlu0 %v2986, 32
    %v3125 = vpop.permute.xlu0 %3124
    %3126 = vrot.lane.b32.xlu0 %v2996, 32
    %v3127 = vpop.permute.xlu0 %3126
    %3128 = vrot.lane.b32.xlu0 %v3006, 32
    %v3129 = vpop.permute.xlu0 %3128
    %3130 = vrot.lane.b32.xlu0 %v3016, 32
    %v3131 = vpop.permute.xlu0 %3130
    %3132 = vrot.lane.b32.xlu0 %v3026, 32
    %v3133 = vpop.permute.xlu0 %3132
    %3134 = vrot.lane.b32.xlu0 %v3036, 32
    %v3135 = vpop.permute.xlu0 %3134
    %3136 = vrot.lane.b32.xlu0 %v3046, 32
    %v3137 = vpop.permute.xlu0 %3136
    %3138 = vrot.lane.b32.xlu0 %v3056, 32
    %v3139 = vpop.permute.xlu0 %3138
    %3140 = vrot.lane.b32.xlu0 %v3066, 32
    %v3141 = vpop.permute.xlu0 %3140
    %3142 = vrot.lane.b32.xlu0 %v3076, 32
    %v3143 = vpop.permute.xlu0 %3142
    %3144 = vrot.lane.b32.xlu0 %v3086, 32
    %v3145 = vpop.permute.xlu0 %3144
    %3146 = vrot.lane.b32.xlu0 %v3096, 32
    %v3147 = vpop.permute.xlu0 %3146
    %3148 = vrot.lane.b32.xlu0 %v3106, 32
    %v3149 = vpop.permute.xlu0 %3148
    %3150 = vrot.lane.b32.xlu0 %v3116, 32
    %v3151 = vpop.permute.xlu0 %3150
    %3152 = vrot.lane.b32.xlu0 %v3121, 32
    %v3153 = vpop.permute.xlu0 %3152
    %vm3170 = vcmask 519424
    %3171 = vst.msk [vmem:[#allocation4] sm:$0xf] %vm3170, %v3123
    %3172 = vst.msk [vmem:[#allocation4 + $0x8] sm:$0xf] %vm3170, %v3125
    %3173 = vst.msk [vmem:[#allocation4 + $0x10] sm:$0xf] %vm3170, %v3127
    %3174 = vst.msk [vmem:[#allocation4 + $0x18] sm:$0xf] %vm3170, %v3129
    %3175 = vst.msk [vmem:[#allocation4 + $0x20] sm:$0xf] %vm3170, %v3131
    %3176 = vst.msk [vmem:[#allocation4 + $0x28] sm:$0xf] %vm3170, %v3133
    %3177 = vst.msk [vmem:[#allocation4 + $0x30] sm:$0xf] %vm3170, %v3135
    %3178 = vst.msk [vmem:[#allocation4 + $0x38] sm:$0xf] %vm3170, %v3137
    %3179 = vst.msk [vmem:[#allocation4 + $0x40] sm:$0xf] %vm3170, %v3139
    %3180 = vst.msk [vmem:[#allocation4 + $0x48] sm:$0xf] %vm3170, %v3141
    %3181 = vst.msk [vmem:[#allocation4 + $0x50] sm:$0xf] %vm3170, %v3143
    %3182 = vst.msk [vmem:[#allocation4 + $0x58] sm:$0xf] %vm3170, %v3145
    %3183 = vst.msk [vmem:[#allocation4 + $0x60] sm:$0xf] %vm3170, %v3147
    %3184 = vst.msk [vmem:[#allocation4 + $0x68] sm:$0xf] %vm3170, %v3149
    %3185 = vst.msk [vmem:[#allocation4 + $0x70] sm:$0xf] %vm3170, %v3151
    %vm3186 = vcmask 516352
    %3187 = vst.msk [vmem:[#allocation4 + $0x78] sm:$0x1] %vm3186, %v3153
    %v3188 = vld [vmem:[#allocation3] sm:$0xe]
    %v3189 = vld [vmem:[#allocation3 + $0x4] sm:$0xf]
    %v3190 = vld [vmem:[#allocation3 + $0x8] sm:$0xf]
    %v3191 = vld [vmem:[#allocation3 + $0xc] sm:$0xf]
    %v3192 = vld [vmem:[#allocation3 + $0x10] sm:$0xf]
    %v3193 = vld [vmem:[#allocation3 + $0x14] sm:$0xf]
    %v3194 = vld [vmem:[#allocation3 + $0x18] sm:$0xf]
    %v3195 = vld [vmem:[#allocation3 + $0x1c] sm:$0xf]
    %v3196 = vld [vmem:[#allocation3 + $0x20] sm:$0xf]
    %v3197 = vld [vmem:[#allocation3 + $0x24] sm:$0xf]
    %v3198 = vld [vmem:[#allocation3 + $0x28] sm:$0xf]
    %v3199 = vld [vmem:[#allocation3 + $0x2c] sm:$0xf]
    %v3200 = vld [vmem:[#allocation3 + $0x30] sm:$0xf]
    %v3201 = vld [vmem:[#allocation3 + $0x34] sm:$0xf]
    %v3202 = vld [vmem:[#allocation3 + $0x38] sm:$0xf]
    %v3203 = vld [vmem:[#allocation3 + $0x3c] sm:$0x3]
    %vm3220 = vcmask 1042432
    %vm3221 = vcmask 1046532
    %vm3222 = vmor %vm3220, %vm3221
    %v3223 = vrot.slane %v3188, 5
    %v3224 = vrot.slane %v3223, 4
    %v3225 = vrot.slane %v3189, 5
    %v3226 = vsel %vm3222, %v3224, %v3225
    %v3227 = vrot.slane %v3225, 4
    %v3228 = vrot.slane %v3190, 5
    %v3229 = vsel %vm3222, %v3227, %v3228
    %v3230 = vrot.slane %v3228, 4
    %v3231 = vrot.slane %v3191, 5
    %v3232 = vsel %vm3222, %v3230, %v3231
    %v3233 = vrot.slane %v3231, 4
    %v3234 = vrot.slane %v3192, 5
    %v3235 = vsel %vm3222, %v3233, %v3234
    %v3236 = vrot.slane %v3234, 4
    %v3237 = vrot.slane %v3193, 5
    %v3238 = vsel %vm3222, %v3236, %v3237
    %v3239 = vrot.slane %v3237, 4
    %v3240 = vrot.slane %v3194, 5
    %v3241 = vsel %vm3222, %v3239, %v3240
    %v3242 = vrot.slane %v3240, 4
    %v3243 = vrot.slane %v3195, 5
    %v3244 = vsel %vm3222, %v3242, %v3243
    %v3245 = vrot.slane %v3243, 4
    %v3246 = vrot.slane %v3196, 5
    %v3247 = vsel %vm3222, %v3245, %v3246
    %v3248 = vrot.slane %v3246, 4
    %v3249 = vrot.slane %v3197, 5
    %v3250 = vsel %vm3222, %v3248, %v3249
    %v3251 = vrot.slane %v3249, 4
    %v3252 = vrot.slane %v3198, 5
    %v3253 = vsel %vm3222, %v3251, %v3252
    %v3254 = vrot.slane %v3252, 4
    %v3255 = vrot.slane %v3199, 5
    %v3256 = vsel %vm3222, %v3254, %v3255
    %v3257 = vrot.slane %v3255, 4
    %v3258 = vrot.slane %v3200, 5
    %v3259 = vsel %vm3222, %v3257, %v3258
    %v3260 = vrot.slane %v3258, 4
    %v3261 = vrot.slane %v3201, 5
    %v3262 = vsel %vm3222, %v3260, %v3261
    %v3263 = vrot.slane %v3261, 4
    %v3264 = vrot.slane %v3202, 5
    %v3265 = vsel %vm3222, %v3263, %v3264
    %v3266 = vrot.slane %v3264, 4
    %v3267 = vrot.slane %v3203, 5
    %v3268 = vsel %vm3222, %v3266, %v3267
    %v3269 = vrot.slane %v3267, 4
    %3270 = vrot.lane.b32.xlu0 %v3226, 64
    %v3271 = vpop.permute.xlu0 %3270
    %3272 = vrot.lane.b32.xlu0 %v3229, 64
    %v3273 = vpop.permute.xlu0 %3272
    %3274 = vrot.lane.b32.xlu0 %v3232, 64
    %v3275 = vpop.permute.xlu0 %3274
    %3276 = vrot.lane.b32.xlu0 %v3235, 64
    %v3277 = vpop.permute.xlu0 %3276
    %3278 = vrot.lane.b32.xlu0 %v3238, 64
    %v3279 = vpop.permute.xlu0 %3278
    %3280 = vrot.lane.b32.xlu0 %v3241, 64
    %v3281 = vpop.permute.xlu0 %3280
    %3282 = vrot.lane.b32.xlu0 %v3244, 64
    %v3283 = vpop.permute.xlu0 %3282
    %3284 = vrot.lane.b32.xlu0 %v3247, 64
    %v3285 = vpop.permute.xlu0 %3284
    %3286 = vrot.lane.b32.xlu0 %v3250, 64
    %v3287 = vpop.permute.xlu0 %3286
    %3288 = vrot.lane.b32.xlu0 %v3253, 64
    %v3289 = vpop.permute.xlu0 %3288
    %3290 = vrot.lane.b32.xlu0 %v3256, 64
    %v3291 = vpop.permute.xlu0 %3290
    %3292 = vrot.lane.b32.xlu0 %v3259, 64
    %v3293 = vpop.permute.xlu0 %3292
    %3294 = vrot.lane.b32.xlu0 %v3262, 64
    %v3295 = vpop.permute.xlu0 %3294
    %3296 = vrot.lane.b32.xlu0 %v3265, 64
    %v3297 = vpop.permute.xlu0 %3296
    %3298 = vrot.lane.b32.xlu0 %v3268, 64
    %v3299 = vpop.permute.xlu0 %3298
    %3300 = vrot.lane.b32.xlu0 %v3269, 64
    %v3301 = vpop.permute.xlu0 %3300
    %vm3318 = vcmask 781824
    %3319 = vst.msk [vmem:[#allocation4] sm:$0xf] %vm3318, %v3271
    %3320 = vst.msk [vmem:[#allocation4 + $0x8] sm:$0xf] %vm3318, %v3273
    %3321 = vst.msk [vmem:[#allocation4 + $0x10] sm:$0xf] %vm3318, %v3275
    %3322 = vst.msk [vmem:[#allocation4 + $0x18] sm:$0xf] %vm3318, %v3277
    %3323 = vst.msk [vmem:[#allocation4 + $0x20] sm:$0xf] %vm3318, %v3279
    %3324 = vst.msk [vmem:[#allocation4 + $0x28] sm:$0xf] %vm3318, %v3281
    %3325 = vst.msk [vmem:[#allocation4 + $0x30] sm:$0xf] %vm3318, %v3283
    %3326 = vst.msk [vmem:[#allocation4 + $0x38] sm:$0xf] %vm3318, %v3285
    %3327 = vst.msk [vmem:[#allocation4 + $0x40] sm:$0xf] %vm3318, %v3287
    %3328 = vst.msk [vmem:[#allocation4 + $0x48] sm:$0xf] %vm3318, %v3289
    %3329 = vst.msk [vmem:[#allocation4 + $0x50] sm:$0xf] %vm3318, %v3291
    %3330 = vst.msk [vmem:[#allocation4 + $0x58] sm:$0xf] %vm3318, %v3293
    %3331 = vst.msk [vmem:[#allocation4 + $0x60] sm:$0xf] %vm3318, %v3295
    %3332 = vst.msk [vmem:[#allocation4 + $0x68] sm:$0xf] %vm3318, %v3297
    %3333 = vst.msk [vmem:[#allocation4 + $0x70] sm:$0xf] %vm3318, %v3299
    %vm3334 = vcmask 778752
    %3335 = vst.msk [vmem:[#allocation4 + $0x78] sm:$0x1] %vm3334, %v3301
    %v3336 = vld [vmem:[%s2894] sm:$0xf]
    %v3337 = vld [vmem:[%s2894 + $0x4] sm:$0xf]
    %v3338 = vld [vmem:[%s2894 + $0x8] sm:$0xf]
    %v3339 = vld [vmem:[%s2894 + $0xc] sm:$0xf]
    %v3340 = vld [vmem:[%s2894 + $0x10] sm:$0xf]
    %v3341 = vld [vmem:[%s2894 + $0x14] sm:$0xf]
    %v3342 = vld [vmem:[%s2894 + $0x18] sm:$0xf]
    %v3343 = vld [vmem:[%s2894 + $0x1c] sm:$0xf]
    %v3344 = vld [vmem:[%s2894 + $0x20] sm:$0xf]
    %v3345 = vld [vmem:[%s2894 + $0x24] sm:$0xf]
    %v3346 = vld [vmem:[%s2894 + $0x28] sm:$0xf]
    %v3347 = vld [vmem:[%s2894 + $0x2c] sm:$0xf]
    %v3348 = vld [vmem:[%s2894 + $0x30] sm:$0xf]
    %v3349 = vld [vmem:[%s2894 + $0x34] sm:$0xf]
    %v3350 = vld [vmem:[%s2894 + $0x38] sm:$0xf]
    %v3351 = vld [vmem:[%s2894 + $0x3c] sm:$0x1]
    %vm3368 = vcmask 1040384
    %vm3369 = vcmask 1044484
    %vm3370 = vmor %vm3368, %vm3369
    %v3371 = vrot.slane %v3336, 7
    %v3372 = vrot.slane %v3371, 4
    %v3373 = vrot.slane %v3337, 7
    %v3374 = vsel %vm3370, %v3372, %v3373
    %v3375 = vrot.slane %v3373, 4
    %v3376 = vrot.slane %v3338, 7
    %v3377 = vsel %vm3370, %v3375, %v3376
    %v3378 = vrot.slane %v3376, 4
    %v3379 = vrot.slane %v3339, 7
    %v3380 = vsel %vm3370, %v3378, %v3379
    %v3381 = vrot.slane %v3379, 4
    %v3382 = vrot.slane %v3340, 7
    %v3383 = vsel %vm3370, %v3381, %v3382
    %v3384 = vrot.slane %v3382, 4
    %v3385 = vrot.slane %v3341, 7
    %v3386 = vsel %vm3370, %v3384, %v3385
    %v3387 = vrot.slane %v3385, 4
    %v3388 = vrot.slane %v3342, 7
    %v3389 = vsel %vm3370, %v3387, %v3388
    %v3390 = vrot.slane %v3388, 4
    %v3391 = vrot.slane %v3343, 7
    %v3392 = vsel %vm3370, %v3390, %v3391
    %v3393 = vrot.slane %v3391, 4
    %v3394 = vrot.slane %v3344, 7
    %v3395 = vsel %vm3370, %v3393, %v3394
    %v3396 = vrot.slane %v3394, 4
    %v3397 = vrot.slane %v3345, 7
    %v3398 = vsel %vm3370, %v3396, %v3397
    %v3399 = vrot.slane %v3397, 4
    %v3400 = vrot.slane %v3346, 7
    %v3401 = vsel %vm3370, %v3399, %v3400
    %v3402 = vrot.slane %v3400, 4
    %v3403 = vrot.slane %v3347, 7
    %v3404 = vsel %vm3370, %v3402, %v3403
    %v3405 = vrot.slane %v3403, 4
    %v3406 = vrot.slane %v3348, 7
    %v3407 = vsel %vm3370, %v3405, %v3406
    %v3408 = vrot.slane %v3406, 4
    %v3409 = vrot.slane %v3349, 7
    %v3410 = vsel %vm3370, %v3408, %v3409
    %v3411 = vrot.slane %v3409, 4
    %v3412 = vrot.slane %v3350, 7
    %v3413 = vsel %vm3370, %v3411, %v3412
    %v3414 = vrot.slane %v3412, 4
    %v3415 = vrot.slane %v3351, 7
    %v3416 = vsel %vm3370, %v3414, %v3415
    %vm3433 = vcmask 257025
    %3434 = vst.msk [vmem:[#allocation4 + $0x78] sm:$0xe] %vm3433, %v3371
    %3435 = vst.msk [vmem:[#allocation4 + $0x80] sm:$0xf] %vm2636, %v3374
    %3436 = vst.msk [vmem:[#allocation4 + $0x88] sm:$0xf] %vm2636, %v3377
    %3437 = vst.msk [vmem:[#allocation4 + $0x90] sm:$0xf] %vm2636, %v3380
    %3438 = vst.msk [vmem:[#allocation4 + $0x98] sm:$0xf] %vm2636, %v3383
    %3439 = vst.msk [vmem:[#allocation4 + $0xa0] sm:$0xf] %vm2636, %v3386
    %3440 = vst.msk [vmem:[#allocation4 + $0xa8] sm:$0xf] %vm2636, %v3389
    %3441 = vst.msk [vmem:[#allocation4 + $0xb0] sm:$0xf] %vm2636, %v3392
    %3442 = vst.msk [vmem:[#allocation4 + $0xb8] sm:$0xf] %vm2636, %v3395
    %3443 = vst.msk [vmem:[#allocation4 + $0xc0] sm:$0xf] %vm2636, %v3398
    %3444 = vst.msk [vmem:[#allocation4 + $0xc8] sm:$0xf] %vm2636, %v3401
    %3445 = vst.msk [vmem:[#allocation4 + $0xd0] sm:$0xf] %vm2636, %v3404
    %3446 = vst.msk [vmem:[#allocation4 + $0xd8] sm:$0xf] %vm2636, %v3407
    %3447 = vst.msk [vmem:[#allocation4 + $0xe0] sm:$0xf] %vm2636, %v3410
    %3448 = vst.msk [vmem:[#allocation4 + $0xe8] sm:$0xf] %vm2636, %v3413
    %3449 = vst.msk [vmem:[#allocation4 + $0xf0] sm:$0x3] %vm2652, %v3416
    %v3450 = vld [vmem:[%s2894] sm:$0xf]
    %v3451 = vld [vmem:[%s2894 + $0x4] sm:$0xf]
    %v3452 = vld [vmem:[%s2894 + $0x8] sm:$0xf]
    %v3453 = vld [vmem:[%s2894 + $0xc] sm:$0xf]
    %v3454 = vld [vmem:[%s2894 + $0x10] sm:$0xf]
    %v3455 = vld [vmem:[%s2894 + $0x14] sm:$0xf]
    %v3456 = vld [vmem:[%s2894 + $0x18] sm:$0xf]
    %v3457 = vld [vmem:[%s2894 + $0x1c] sm:$0xf]
    %v3458 = vld [vmem:[%s2894 + $0x20] sm:$0xf]
    %v3459 = vld [vmem:[%s2894 + $0x24] sm:$0xf]
    %v3460 = vld [vmem:[%s2894 + $0x28] sm:$0xf]
    %v3461 = vld [vmem:[%s2894 + $0x2c] sm:$0xf]
    %v3462 = vld [vmem:[%s2894 + $0x30] sm:$0xf]
    %v3463 = vld [vmem:[%s2894 + $0x34] sm:$0xf]
    %v3464 = vld [vmem:[%s2894 + $0x38] sm:$0xf]
    %v3465 = vld [vmem:[%s2894 + $0x3c] sm:$0x3]
    %vm3466 = vsmask.f32 256
    %vm3467 = vsmask.f32 4368
    %vm3468 = vmor %vm3466, %vm3467
    %v3470 = vshrl.u32 %v3450, 16
    %v3472 = vrot.slane %v3470, 7
    %v3473 = vshll.u32 %v3450, 16
    %v3475 = vor.u32 %v3472, %v3473
    %v3476 = vrot.slane %v3472, 4
    %v3478 = vshrl.u32 %v3451, 16
    %v3480 = vrot.slane %v3478, 7
    %v3481 = vshll.u32 %v3451, 16
    %v3483 = vor.u32 %v3480, %v3481
    %v3484 = vsel %vm3468, %v3476, %v3483
    %v3485 = vrot.slane %v3480, 4
    %v3487 = vshrl.u32 %v3452, 16
    %v3489 = vrot.slane %v3487, 7
    %v3490 = vshll.u32 %v3452, 16
    %v3492 = vor.u32 %v3489, %v3490
    %v3493 = vsel %vm3468, %v3485, %v3492
    %v3494 = vrot.slane %v3489, 4
    %v3496 = vshrl.u32 %v3453, 16
    %v3498 = vrot.slane %v3496, 7
    %v3499 = vshll.u32 %v3453, 16
    %v3501 = vor.u32 %v3498, %v3499
    %v3502 = vsel %vm3468, %v3494, %v3501
    %v3503 = vrot.slane %v3498, 4
    %v3505 = vshrl.u32 %v3454, 16
    %v3507 = vrot.slane %v3505, 7
    %v3508 = vshll.u32 %v3454, 16
    %v3510 = vor.u32 %v3507, %v3508
    %v3511 = vsel %vm3468, %v3503, %v3510
    %v3512 = vrot.slane %v3507, 4
    %v3514 = vshrl.u32 %v3455, 16
    %v3516 = vrot.slane %v3514, 7
    %v3517 = vshll.u32 %v3455, 16
    %v3519 = vor.u32 %v3516, %v3517
    %v3520 = vsel %vm3468, %v3512, %v3519
    %v3521 = vrot.slane %v3516, 4
    %v3523 = vshrl.u32 %v3456, 16
    %v3525 = vrot.slane %v3523, 7
    %v3526 = vshll.u32 %v3456, 16
    %v3528 = vor.u32 %v3525, %v3526
    %v3529 = vsel %vm3468, %v3521, %v3528
    %v3530 = vrot.slane %v3525, 4
    %v3532 = vshrl.u32 %v3457, 16
    %v3534 = vrot.slane %v3532, 7
    %v3535 = vshll.u32 %v3457, 16
    %v3537 = vor.u32 %v3534, %v3535
    %v3538 = vsel %vm3468, %v3530, %v3537
    %v3539 = vrot.slane %v3534, 4
    %v3541 = vshrl.u32 %v3458, 16
    %v3543 = vrot.slane %v3541, 7
    %v3544 = vshll.u32 %v3458, 16
    %v3546 = vor.u32 %v3543, %v3544
    %v3547 = vsel %vm3468, %v3539, %v3546
    %v3548 = vrot.slane %v3543, 4
    %v3550 = vshrl.u32 %v3459, 16
    %v3552 = vrot.slane %v3550, 7
    %v3553 = vshll.u32 %v3459, 16
    %v3555 = vor.u32 %v3552, %v3553
    %v3556 = vsel %vm3468, %v3548, %v3555
    %v3557 = vrot.slane %v3552, 4
    %v3559 = vshrl.u32 %v3460, 16
    %v3561 = vrot.slane %v3559, 7
    %v3562 = vshll.u32 %v3460, 16
    %v3564 = vor.u32 %v3561, %v3562
    %v3565 = vsel %vm3468, %v3557, %v3564
    %v3566 = vrot.slane %v3561, 4
    %v3568 = vshrl.u32 %v3461, 16
    %v3570 = vrot.slane %v3568, 7
    %v3571 = vshll.u32 %v3461, 16
    %v3573 = vor.u32 %v3570, %v3571
    %v3574 = vsel %vm3468, %v3566, %v3573
    %v3575 = vrot.slane %v3570, 4
    %v3577 = vshrl.u32 %v3462, 16
    %v3579 = vrot.slane %v3577, 7
    %v3580 = vshll.u32 %v3462, 16
    %v3582 = vor.u32 %v3579, %v3580
    %v3583 = vsel %vm3468, %v3575, %v3582
    %v3584 = vrot.slane %v3579, 4
    %v3586 = vshrl.u32 %v3463, 16
    %v3588 = vrot.slane %v3586, 7
    %v3589 = vshll.u32 %v3463, 16
    %v3591 = vor.u32 %v3588, %v3589
    %v3592 = vsel %vm3468, %v3584, %v3591
    %v3593 = vrot.slane %v3588, 4
    %v3595 = vshrl.u32 %v3464, 16
    %v3597 = vrot.slane %v3595, 7
    %v3598 = vshll.u32 %v3464, 16
    %v3600 = vor.u32 %v3597, %v3598
    %v3601 = vsel %vm3468, %v3593, %v3600
    %v3602 = vrot.slane %v3597, 4
    %v3604 = vshrl.u32 %v3465, 16
    %v3606 = vrot.slane %v3604, 7
    %v3607 = vshll.u32 %v3465, 16
    %v3609 = vor.u32 %v3606, %v3607
    %v3610 = vsel %vm3468, %v3602, %v3609
    %3611 = vrot.lane.b32.xlu0 %v3475, 32
    %v3612 = vpop.permute.xlu0 %3611
    %3613 = vrot.lane.b32.xlu0 %v3484, 32
    %v3614 = vpop.permute.xlu0 %3613
    %3615 = vrot.lane.b32.xlu0 %v3493, 32
    %v3616 = vpop.permute.xlu0 %3615
    %3617 = vrot.lane.b32.xlu0 %v3502, 32
    %v3618 = vpop.permute.xlu0 %3617
    %3619 = vrot.lane.b32.xlu0 %v3511, 32
    %v3620 = vpop.permute.xlu0 %3619
    %3621 = vrot.lane.b32.xlu0 %v3520, 32
    %v3622 = vpop.permute.xlu0 %3621
    %3623 = vrot.lane.b32.xlu0 %v3529, 32
    %v3624 = vpop.permute.xlu0 %3623
    %3625 = vrot.lane.b32.xlu0 %v3538, 32
    %v3626 = vpop.permute.xlu0 %3625
    %3627 = vrot.lane.b32.xlu0 %v3547, 32
    %v3628 = vpop.permute.xlu0 %3627
    %3629 = vrot.lane.b32.xlu0 %v3556, 32
    %v3630 = vpop.permute.xlu0 %3629
    %3631 = vrot.lane.b32.xlu0 %v3565, 32
    %v3632 = vpop.permute.xlu0 %3631
    %3633 = vrot.lane.b32.xlu0 %v3574, 32
    %v3634 = vpop.permute.xlu0 %3633
    %3635 = vrot.lane.b32.xlu0 %v3583, 32
    %v3636 = vpop.permute.xlu0 %3635
    %3637 = vrot.lane.b32.xlu0 %v3592, 32
    %v3638 = vpop.permute.xlu0 %3637
    %3639 = vrot.lane.b32.xlu0 %v3601, 32
    %v3640 = vpop.permute.xlu0 %3639
    %3641 = vrot.lane.b32.xlu0 %v3610, 32
    %v3642 = vpop.permute.xlu0 %3641
    %vm3659 = vcmask 519425
    %3660 = vst.msk [vmem:[#allocation4 + $0x78] sm:$0xe] %vm3659, %v3612
    %3661 = vst.msk [vmem:[#allocation4 + $0x80] sm:$0xf] %vm3170, %v3614
    %3662 = vst.msk [vmem:[#allocation4 + $0x88] sm:$0xf] %vm3170, %v3616
    %3663 = vst.msk [vmem:[#allocation4 + $0x90] sm:$0xf] %vm3170, %v3618
    %3664 = vst.msk [vmem:[#allocation4 + $0x98] sm:$0xf] %vm3170, %v3620
    %3665 = vst.msk [vmem:[#allocation4 + $0xa0] sm:$0xf] %vm3170, %v3622
    %3666 = vst.msk [vmem:[#allocation4 + $0xa8] sm:$0xf] %vm3170, %v3624
    %3667 = vst.msk [vmem:[#allocation4 + $0xb0] sm:$0xf] %vm3170, %v3626
    %3668 = vst.msk [vmem:[#allocation4 + $0xb8] sm:$0xf] %vm3170, %v3628
    %3669 = vst.msk [vmem:[#allocation4 + $0xc0] sm:$0xf] %vm3170, %v3630
    %3670 = vst.msk [vmem:[#allocation4 + $0xc8] sm:$0xf] %vm3170, %v3632
    %3671 = vst.msk [vmem:[#allocation4 + $0xd0] sm:$0xf] %vm3170, %v3634
    %3672 = vst.msk [vmem:[#allocation4 + $0xd8] sm:$0xf] %vm3170, %v3636
    %3673 = vst.msk [vmem:[#allocation4 + $0xe0] sm:$0xf] %vm3170, %v3638
    %3674 = vst.msk [vmem:[#allocation4 + $0xe8] sm:$0xf] %vm3170, %v3640
    %vm3675 = vcmask 517376
    %3676 = vst.msk [vmem:[#allocation4 + $0xf0] sm:$0x3] %vm3675, %v3642
    %v3677 = vld [vmem:[%s2894] sm:$0xe]
    %v3678 = vld [vmem:[%s2894 + $0x4] sm:$0xf]
    %v3679 = vld [vmem:[%s2894 + $0x8] sm:$0xf]
    %v3680 = vld [vmem:[%s2894 + $0xc] sm:$0xf]
    %v3681 = vld [vmem:[%s2894 + $0x10] sm:$0xf]
    %v3682 = vld [vmem:[%s2894 + $0x14] sm:$0xf]
    %v3683 = vld [vmem:[%s2894 + $0x18] sm:$0xf]
    %v3684 = vld [vmem:[%s2894 + $0x1c] sm:$0xf]
    %v3685 = vld [vmem:[%s2894 + $0x20] sm:$0xf]
    %v3686 = vld [vmem:[%s2894 + $0x24] sm:$0xf]
    %v3687 = vld [vmem:[%s2894 + $0x28] sm:$0xf]
    %v3688 = vld [vmem:[%s2894 + $0x2c] sm:$0xf]
    %v3689 = vld [vmem:[%s2894 + $0x30] sm:$0xf]
    %v3690 = vld [vmem:[%s2894 + $0x34] sm:$0xf]
    %v3691 = vld [vmem:[%s2894 + $0x38] sm:$0xf]
    %v3692 = vld [vmem:[%s2894 + $0x3c] sm:$0x3]
    %3709 = vrot.lane.b32.xlu0 %v3677, 64
    %v3710 = vpop.permute.xlu0 %3709
    %3711 = vrot.lane.b32.xlu0 %v3678, 64
    %v3712 = vpop.permute.xlu0 %3711
    %3713 = vrot.lane.b32.xlu0 %v3679, 64
    %v3714 = vpop.permute.xlu0 %3713
    %3715 = vrot.lane.b32.xlu0 %v3680, 64
    %v3716 = vpop.permute.xlu0 %3715
    %3717 = vrot.lane.b32.xlu0 %v3681, 64
    %v3718 = vpop.permute.xlu0 %3717
    %3719 = vrot.lane.b32.xlu0 %v3682, 64
    %v3720 = vpop.permute.xlu0 %3719
    %3721 = vrot.lane.b32.xlu0 %v3683, 64
    %v3722 = vpop.permute.xlu0 %3721
    %3723 = vrot.lane.b32.xlu0 %v3684, 64
    %v3724 = vpop.permute.xlu0 %3723
    %3725 = vrot.lane.b32.xlu0 %v3685, 64
    %v3726 = vpop.permute.xlu0 %3725
    %3727 = vrot.lane.b32.xlu0 %v3686, 64
    %v3728 = vpop.permute.xlu0 %3727
    %3729 = vrot.lane.b32.xlu0 %v3687, 64
    %v3730 = vpop.permute.xlu0 %3729
    %3731 = vrot.lane.b32.xlu0 %v3688, 64
    %v3732 = vpop.permute.xlu0 %3731
    %3733 = vrot.lane.b32.xlu0 %v3689, 64
    %v3734 = vpop.permute.xlu0 %3733
    %3735 = vrot.lane.b32.xlu0 %v3690, 64
    %v3736 = vpop.permute.xlu0 %3735
    %3737 = vrot.lane.b32.xlu0 %v3691, 64
    %v3738 = vpop.permute.xlu0 %3737
    %3739 = vrot.lane.b32.xlu0 %v3692, 64
    %v3740 = vpop.permute.xlu0 %3739
    %vm3757 = vcmask 781825
    %3758 = vst.msk [vmem:[#allocation4 + $0x78] sm:$0xe] %vm3757, %v3710
    %3759 = vst.msk [vmem:[#allocation4 + $0x80] sm:$0xf] %vm3318, %v3712
    %3760 = vst.msk [vmem:[#allocation4 + $0x88] sm:$0xf] %vm3318, %v3714
    %3761 = vst.msk [vmem:[#allocation4 + $0x90] sm:$0xf] %vm3318, %v3716
    %3762 = vst.msk [vmem:[#allocation4 + $0x98] sm:$0xf] %vm3318, %v3718
    %3763 = vst.msk [vmem:[#allocation4 + $0xa0] sm:$0xf] %vm3318, %v3720
    %3764 = vst.msk [vmem:[#allocation4 + $0xa8] sm:$0xf] %vm3318, %v3722
    %3765 = vst.msk [vmem:[#allocation4 + $0xb0] sm:$0xf] %vm3318, %v3724
    %3766 = vst.msk [vmem:[#allocation4 + $0xb8] sm:$0xf] %vm3318, %v3726
    %3767 = vst.msk [vmem:[#allocation4 + $0xc0] sm:$0xf] %vm3318, %v3728
    %3768 = vst.msk [vmem:[#allocation4 + $0xc8] sm:$0xf] %vm3318, %v3730
    %3769 = vst.msk [vmem:[#allocation4 + $0xd0] sm:$0xf] %vm3318, %v3732
    %3770 = vst.msk [vmem:[#allocation4 + $0xd8] sm:$0xf] %vm3318, %v3734
    %3771 = vst.msk [vmem:[#allocation4 + $0xe0] sm:$0xf] %vm3318, %v3736
    %3772 = vst.msk [vmem:[#allocation4 + $0xe8] sm:$0xf] %vm3318, %v3738
    %vm3773 = vcmask 779776
    %3774 = vst.msk [vmem:[#allocation4 + $0xf0] sm:$0x3] %vm3773, %v3740
    %v3775 = vld [vmem:[#allocation4] sm:$0xf]
    %v3776 = vld [vmem:[#allocation4 + $0x8] sm:$0xf]
    %v3777 = vld [vmem:[#allocation4 + $0x10] sm:$0xf]
    %v3778 = vld [vmem:[#allocation4 + $0x18] sm:$0xf]
    %v3779 = vld [vmem:[#allocation4 + $0x20] sm:$0xf]
    %v3780 = vld [vmem:[#allocation4 + $0x28] sm:$0xf]
    %v3781 = vld [vmem:[#allocation4 + $0x30] sm:$0xf]
    %v3782 = vld [vmem:[#allocation4 + $0x38] sm:$0xf]
    %v3783 = vld [vmem:[#allocation4 + $0x40] sm:$0xf]
    %v3784 = vld [vmem:[#allocation4 + $0x48] sm:$0xf]
    %v3785 = vld [vmem:[#allocation4 + $0x50] sm:$0xf]
    %v3786 = vld [vmem:[#allocation4 + $0x58] sm:$0xf]
    %v3787 = vld [vmem:[#allocation4 + $0x60] sm:$0xf]
    %v3788 = vld [vmem:[#allocation4 + $0x68] sm:$0xf]
    %v3789 = vld [vmem:[#allocation4 + $0x70] sm:$0xf]
    %v3790 = vld [vmem:[#allocation4 + $0x78] sm:$0xf]
    %v3791 = vld [vmem:[#allocation4 + $0x80] sm:$0xf]
    %v3792 = vld [vmem:[#allocation4 + $0x88] sm:$0xf]
    %v3793 = vld [vmem:[#allocation4 + $0x90] sm:$0xf]
    %v3794 = vld [vmem:[#allocation4 + $0x98] sm:$0xf]
    %v3795 = vld [vmem:[#allocation4 + $0xa0] sm:$0xf]
    %v3796 = vld [vmem:[#allocation4 + $0xa8] sm:$0xf]
    %v3797 = vld [vmem:[#allocation4 + $0xb0] sm:$0xf]
    %v3798 = vld [vmem:[#allocation4 + $0xb8] sm:$0xf]
    %v3799 = vld [vmem:[#allocation4 + $0xc0] sm:$0xf]
    %v3800 = vld [vmem:[#allocation4 + $0xc8] sm:$0xf]
    %v3801 = vld [vmem:[#allocation4 + $0xd0] sm:$0xf]
    %v3802 = vld [vmem:[#allocation4 + $0xd8] sm:$0xf]
    %v3803 = vld [vmem:[#allocation4 + $0xe0] sm:$0xf]
    %v3804 = vld [vmem:[#allocation4 + $0xe8] sm:$0xf]
    %v3805 = vld [vmem:[#allocation4 + $0xf0] sm:$0x3]
    %v3806 = vld [vmem:[%s4] sm:$0xf]
    %v3807 = vld [vmem:[%s4 + $0x4] sm:$0xf]
    %v3808 = vld [vmem:[%s4 + $0x8] sm:$0xf]
    %v3809 = vld [vmem:[%s4 + $0xc] sm:$0xf]
    %v3810 = vld [vmem:[%s4 + $0x10] sm:$0xf]
    %v3811 = vld [vmem:[%s4 + $0x14] sm:$0xf]
    %v3812 = vld [vmem:[%s4 + $0x18] sm:$0xf]
    %v3813 = vld [vmem:[%s4 + $0x1c] sm:$0xf]
    %v3814 = vld [vmem:[%s4 + $0x20] sm:$0xf]
    %v3815 = vld [vmem:[%s4 + $0x24] sm:$0xf]
    %v3816 = vld [vmem:[%s4 + $0x28] sm:$0xf]
    %v3817 = vld [vmem:[%s4 + $0x2c] sm:$0xf]
    %v3849 = vunpack.c.l.b16 %v3775
    %v3850 = vunpack.c.l.b16 %v3776
    %v3851 = vunpack.c.l.b16 %v3777
    %v3852 = vunpack.c.l.b16 %v3778
    %v3853 = vunpack.c.l.b16 %v3779
    %v3854 = vunpack.c.l.b16 %v3780
    %v3855 = vunpack.c.l.b16 %v3781
    %v3856 = vunpack.c.l.b16 %v3782
    %v3857 = vunpack.c.l.b16 %v3783
    %v3858 = vunpack.c.l.b16 %v3784
    %v3859 = vunpack.c.l.b16 %v3785
    %v3860 = vunpack.c.l.b16 %v3786
    %v3861 = vunpack.c.l.b16 %v3787
    %v3862 = vunpack.c.l.b16 %v3788
    %v3863 = vunpack.c.l.b16 %v3789
    %v3864 = vunpack.c.l.b16 %v3790
    %v3865 = vunpack.c.l.b16 %v3791
    %v3866 = vunpack.c.l.b16 %v3792
    %v3867 = vunpack.c.l.b16 %v3793
    %v3868 = vunpack.c.l.b16 %v3794
    %v3869 = vunpack.c.l.b16 %v3795
    %v3870 = vunpack.c.l.b16 %v3796
    %v3871 = vunpack.c.l.b16 %v3797
    %v3872 = vunpack.c.l.b16 %v3798
    %v3873 = vunpack.c.l.b16 %v3799
    %v3874 = vunpack.c.l.b16 %v3800
    %v3875 = vunpack.c.l.b16 %v3801
    %v3876 = vunpack.c.l.b16 %v3802
    %v3877 = vunpack.c.l.b16 %v3803
    %v3878 = vunpack.c.l.b16 %v3804
    %v3879 = vunpack.c.l.b16 %v3805
    %v3880 = vpack.c.b16 %v3850, %v3849
    %v3881 = vpack.c.b16 %v3852, %v3851
    %v3882 = vpack.c.b16 %v3854, %v3853
    %v3883 = vpack.c.b16 %v3856, %v3855
    %v3884 = vpack.c.b16 %v3858, %v3857
    %v3885 = vpack.c.b16 %v3860, %v3859
    %v3886 = vpack.c.b16 %v3862, %v3861
    %v3887 = vpack.c.b16 %v3864, %v3863
    %v3888 = vpack.c.b16 %v3866, %v3865
    %v3889 = vpack.c.b16 %v3868, %v3867
    %v3890 = vpack.c.b16 %v3870, %v3869
    %v3891 = vpack.c.b16 %v3872, %v3871
    %v3892 = vpack.c.b16 %v3874, %v3873
    %v3893 = vpack.c.b16 %v3876, %v3875
    %v3894 = vpack.c.b16 %v3878, %v3877
    %v3895 = vpack.c.b16 %v3879, %v3879
    %v3908 = vunpack.c.l.b16 %v3806
    %v3909 = vunpack.c.l.b16 %v3807
    %v3910 = vunpack.c.l.b16 %v3808
    %v3911 = vunpack.c.l.b16 %v3809
    %v3912 = vunpack.c.l.b16 %v3810
    %v3913 = vunpack.c.l.b16 %v3811
    %v3914 = vunpack.c.l.b16 %v3812
    %v3915 = vunpack.c.l.b16 %v3813
    %v3916 = vunpack.c.l.b16 %v3814
    %v3917 = vunpack.c.l.b16 %v3815
    %v3918 = vunpack.c.l.b16 %v3816
    %v3919 = vunpack.c.l.b16 %v3817
    %v3920 = vpack.c.b16 %v3909, %v3908
    %v3921 = vpack.c.b16 %v3911, %v3910
    %v3922 = vpack.c.b16 %v3913, %v3912
    %v3923 = vpack.c.b16 %v3915, %v3914
    %v3924 = vpack.c.b16 %v3917, %v3916
    %v3925 = vpack.c.b16 %v3919, %v3918
    %vm3932 = vcmask 785408
    %v3934 = vsel %vm3932, %v3880, 0
    %v3937 = vsel %vm3932, %v3881, 0
    %v3940 = vsel %vm3932, %v3882, 0
    %v3943 = vsel %vm3932, %v3883, 0
    %v3946 = vsel %vm3932, %v3884, 0
    %v3949 = vsel %vm3932, %v3885, 0
    %v3952 = vsel %vm3932, %v3886, 0
    %v3955 = vsel %vm3932, %v3887, 0
    %v3958 = vsel %vm3932, %v3888, 0
    %v3961 = vsel %vm3932, %v3889, 0
    %v3964 = vsel %vm3932, %v3890, 0
    %v3967 = vsel %vm3932, %v3891, 0
    %v3970 = vsel %vm3932, %v3892, 0
    %v3973 = vsel %vm3932, %v3893, 0
    %v3976 = vsel %vm3932, %v3894, 0
    %v3979 = vsel %vm3932, %v3895, 0
    %3981 = vmatprep.subr.bf16.mxu0 0
    %3982 = vmatpush1.bf16.msra.mxu0 %v3920
    %3983 = vmatprep.subr.bf16.mxu0 0
    %3984 = vmatpush1.bf16.msra.mxu0 %v3921
    %3985 = vmatprep.subr.bf16.mxu0 0
    %3986 = vmatpush1.bf16.msra.mxu0 %v3922
    %3987 = vmatprep.subr.bf16.mxu0 0
    %3988 = vmatpush1.bf16.msra.mxu0 %v3923
    %3989 = vmatprep.subr.bf16.mxu0 0
    %3990 = vmatpush1.bf16.msra.mxu0 %v3924
    %3991 = vmatprep.subr.bf16.mxu0 0
    %3992 = vmatpush1.bf16.msra.mxu0 %v3925
    %3993 = vmatprep.subr.bf16.mxu0 0
    %3994 = vmatpush1.bf16.msra.mxu0 0
    %3995 = vmatprep.subr.bf16.mxu0 0
    %3996 = vmatpush1.bf16.msra.mxu0 0
    %3997 = vmatprep.subr.bf16.mxu0 0
    %3998 = vmatpush1.bf16.msra.mxu0 0
    %3999 = vmatprep.subr.bf16.mxu0 0
    %4000 = vmatpush1.bf16.msra.mxu0 0
    %4001 = vmatprep.subr.bf16.mxu0 0
    %4002 = vmatpush1.bf16.msra.mxu0 0
    %4003 = vmatprep.subr.bf16.mxu0 0
    %4004 = vmatpush1.bf16.msra.mxu0 0
    %4005 = vmatprep.subr.bf16.mxu0 0
    %4006 = vmatpush1.bf16.msra.mxu0 0
    %4007 = vmatprep.subr.bf16.mxu0 0
    %4008 = vmatpush1.bf16.msra.mxu0 0
    %4009 = vmatprep.subr.bf16.mxu0 0
    %4010 = vmatpush1.bf16.msra.mxu0 0
    %4011 = vmatprep.subr.bf16.mxu0 0
    %4012 = vmatpush1.bf16.msra.mxu0 0
    %4013 = vmatprep.mubr.bf16.mxu0 0
    %4014 = vmatmul.mubr.bf16.gmra.mrb[0].mxu0 %v3934
    %v4015 = vpop.f32.mrb[0].mxu0
    %v4016 = vadd.f32 0.0, %v4015
    %v4017 = vpop.f32.mrb[0].mxu0
    %v4018 = vpop.f32.mrb[0].mxu0
    %v4019 = vadd.f32 0.0, %v4018
    %v4020 = vpop.f32.mrb[0].mxu0
    %4021 = vmatprep.mubr.bf16.mxu0 0
    %4022 = vmatmul.mubr.bf16.gmra.mrb[0].mxu0 %v3937
    %v4023 = vpop.f32.mrb[0].mxu0
    %v4024 = vadd.f32 0.0, %v4023
    %v4025 = vpop.f32.mrb[0].mxu0
    %v4026 = vpop.f32.mrb[0].mxu0
    %v4027 = vadd.f32 0.0, %v4026
    %v4028 = vpop.f32.mrb[0].mxu0
    %4029 = vmatprep.mubr.bf16.mxu0 0
    %4030 = vmatmul.mubr.bf16.gmra.mrb[0].mxu0 %v3940
    %v4031 = vpop.f32.mrb[0].mxu0
    %v4032 = vadd.f32 0.0, %v4031
    %v4033 = vpop.f32.mrb[0].mxu0
    %v4034 = vpop.f32.mrb[0].mxu0
    %v4035 = vadd.f32 0.0, %v4034
    %v4036 = vpop.f32.mrb[0].mxu0
    %4037 = vmatprep.mubr.bf16.mxu0 0
    %4038 = vmatmul.mubr.bf16.gmra.mrb[0].mxu0 %v3943
    %v4039 = vpop.f32.mrb[0].mxu0
    %v4040 = vadd.f32 0.0, %v4039
    %v4041 = vpop.f32.mrb[0].mxu0
    %v4042 = vpop.f32.mrb[0].mxu0
    %v4043 = vadd.f32 0.0, %v4042
    %v4044 = vpop.f32.mrb[0].mxu0
    %4045 = vmatprep.mubr.bf16.mxu0 0
    %4046 = vmatmul.mubr.bf16.gmra.mrb[0].mxu0 %v3946
    %v4047 = vpop.f32.mrb[0].mxu0
    %v4048 = vadd.f32 0.0, %v4047
    %v4049 = vpop.f32.mrb[0].mxu0
    %v4050 = vpop.f32.mrb[0].mxu0
    %v4051 = vadd.f32 0.0, %v4050
    %v4052 = vpop.f32.mrb[0].mxu0
    %4053 = vmatprep.mubr.bf16.mxu0 0
    %4054 = vmatmul.mubr.bf16.gmra.mrb[0].mxu0 %v3949
    %v4055 = vpop.f32.mrb[0].mxu0
    %v4056 = vadd.f32 0.0, %v4055
    %v4057 = vpop.f32.mrb[0].mxu0
    %v4058 = vpop.f32.mrb[0].mxu0
    %v4059 = vadd.f32 0.0, %v4058
    %v4060 = vpop.f32.mrb[0].mxu0
    %4061 = vmatprep.mubr.bf16.mxu0 0
    %4062 = vmatmul.mubr.bf16.gmra.mrb[0].mxu0 %v3952
    %v4063 = vpop.f32.mrb[0].mxu0
    %v4064 = vadd.f32 0.0, %v4063
    %v4065 = vpop.f32.mrb[0].mxu0
    %v4066 = vpop.f32.mrb[0].mxu0
    %v4067 = vadd.f32 0.0, %v4066
    %v4068 = vpop.f32.mrb[0].mxu0
    %4069 = vmatprep.mubr.bf16.mxu0 0
    %4070 = vmatmul.mubr.bf16.gmra.mrb[0].mxu0 %v3955
    %v4071 = vpop.f32.mrb[0].mxu0
    %v4072 = vadd.f32 0.0, %v4071
    %v4073 = vpop.f32.mrb[0].mxu0
    %v4074 = vpop.f32.mrb[0].mxu0
    %v4075 = vadd.f32 0.0, %v4074
    %v4076 = vpop.f32.mrb[0].mxu0
    %4077 = vmatprep.mubr.bf16.mxu0 0
    %4078 = vmatmul.mubr.bf16.gmra.mrb[0].mxu0 %v3958
    %v4079 = vpop.f32.mrb[0].mxu0
    %v4080 = vadd.f32 0.0, %v4079
    %v4081 = vpop.f32.mrb[0].mxu0
    %v4082 = vpop.f32.mrb[0].mxu0
    %v4083 = vadd.f32 0.0, %v4082
    %v4084 = vpop.f32.mrb[0].mxu0
    %4085 = vmatprep.mubr.bf16.mxu0 0
    %4086 = vmatmul.mubr.bf16.gmra.mrb[0].mxu0 %v3961
    %v4087 = vpop.f32.mrb[0].mxu0
    %v4088 = vadd.f32 0.0, %v4087
    %v4089 = vpop.f32.mrb[0].mxu0
    %v4090 = vpop.f32.mrb[0].mxu0
    %v4091 = vadd.f32 0.0, %v4090
    %v4092 = vpop.f32.mrb[0].mxu0
    %4093 = vmatprep.mubr.bf16.mxu0 0
    %4094 = vmatmul.mubr.bf16.gmra.mrb[0].mxu0 %v3964
    %v4095 = vpop.f32.mrb[0].mxu0
    %v4096 = vadd.f32 0.0, %v4095
    %v4097 = vpop.f32.mrb[0].mxu0
    %v4098 = vpop.f32.mrb[0].mxu0
    %v4099 = vadd.f32 0.0, %v4098
    %v4100 = vpop.f32.mrb[0].mxu0
    %4101 = vmatprep.mubr.bf16.mxu0 0
    %4102 = vmatmul.mubr.bf16.gmra.mrb[0].mxu0 %v3967
    %v4103 = vpop.f32.mrb[0].mxu0
    %v4104 = vadd.f32 0.0, %v4103
    %v4105 = vpop.f32.mrb[0].mxu0
    %v4106 = vpop.f32.mrb[0].mxu0
    %v4107 = vadd.f32 0.0, %v4106
    %v4108 = vpop.f32.mrb[0].mxu0
    %4109 = vmatprep.mubr.bf16.mxu0 0
    %4110 = vmatmul.mubr.bf16.gmra.mrb[0].mxu0 %v3970
    %v4111 = vpop.f32.mrb[0].mxu0
    %v4112 = vadd.f32 0.0, %v4111
    %v4113 = vpop.f32.mrb[0].mxu0
    %v4114 = vpop.f32.mrb[0].mxu0
    %v4115 = vadd.f32 0.0, %v4114
    %v4116 = vpop.f32.mrb[0].mxu0
    %4117 = vmatprep.mubr.bf16.mxu0 0
    %4118 = vmatmul.mubr.bf16.gmra.mrb[0].mxu0 %v3973
    %v4119 = vpop.f32.mrb[0].mxu0
    %v4120 = vadd.f32 0.0, %v4119
    %v4121 = vpop.f32.mrb[0].mxu0
    %v4122 = vpop.f32.mrb[0].mxu0
    %v4123 = vadd.f32 0.0, %v4122
    %v4124 = vpop.f32.mrb[0].mxu0
    %4125 = vmatprep.mubr.bf16.mxu0 0
    %4126 = vmatmul.mubr.bf16.gmra.mrb[0].mxu0 %v3976
    %v4127 = vpop.f32.mrb[0].mxu0
    %v4128 = vadd.f32 0.0, %v4127
    %v4129 = vpop.f32.mrb[0].mxu0
    %v4130 = vpop.f32.mrb[0].mxu0
    %v4131 = vadd.f32 0.0, %v4130
    %v4132 = vpop.f32.mrb[0].mxu0
    %4133 = vmatprep.mubr.bf16.mxu0 0
    %4134 = vmatmul.mubr.bf16.gmra.mrb[0].mxu0 %v3979
    %v4135 = vpop.f32.mrb[0].mxu0
    %v4136 = vadd.f32 0.0, %v4135
    %v4137 = vpop.f32.mrb[0].mxu0
    %v4138 = vpop.f32.mrb[0].mxu0
    %v4139 = vpop.f32.mrb[0].mxu0
    %4140 = vdwg.mxu0
    %v4141 = vsel %vm1245, %v4016, 0.0
    %v4142 = vsel %vm1245, %v4019, 0.0
    %v4143 = vadd.f32 %v4141, %v4142
    %v4144 = vsel %vm1245, %v4024, 0.0
    %v4145 = vadd.f32 %v4143, %v4144
    %v4146 = vsel %vm1245, %v4027, 0.0
    %v4147 = vadd.f32 %v4145, %v4146
    %v4148 = vsel %vm1245, %v4032, 0.0
    %v4149 = vadd.f32 %v4147, %v4148
    %v4150 = vsel %vm1245, %v4035, 0.0
    %v4151 = vadd.f32 %v4149, %v4150
    %v4152 = vsel %vm1245, %v4040, 0.0
    %v4153 = vadd.f32 %v4151, %v4152
    %v4154 = vsel %vm1245, %v4043, 0.0
    %v4155 = vadd.f32 %v4153, %v4154
    %v4156 = vsel %vm1245, %v4048, 0.0
    %v4157 = vadd.f32 %v4155, %v4156
    %v4158 = vsel %vm1245, %v4051, 0.0
    %v4159 = vadd.f32 %v4157, %v4158
    %v4160 = vsel %vm1245, %v4056, 0.0
    %v4161 = vadd.f32 %v4159, %v4160
    %v4162 = vsel %vm1245, %v4059, 0.0
    %v4163 = vadd.f32 %v4161, %v4162
    %v4164 = vsel %vm1245, %v4064, 0.0
    %v4165 = vadd.f32 %v4163, %v4164
    %v4166 = vsel %vm1245, %v4067, 0.0
    %v4167 = vadd.f32 %v4165, %v4166
    %v4168 = vsel %vm1245, %v4072, 0.0
    %v4169 = vadd.f32 %v4167, %v4168
    %v4170 = vsel %vm1245, %v4075, 0.0
    %v4171 = vadd.f32 %v4169, %v4170
    %v4172 = vsel %vm1245, %v4080, 0.0
    %v4173 = vadd.f32 %v4171, %v4172
    %v4174 = vsel %vm1245, %v4083, 0.0
    %v4175 = vadd.f32 %v4173, %v4174
    %v4176 = vsel %vm1245, %v4088, 0.0
    %v4177 = vadd.f32 %v4175, %v4176
    %v4178 = vsel %vm1245, %v4091, 0.0
    %v4179 = vadd.f32 %v4177, %v4178
    %v4180 = vsel %vm1245, %v4096, 0.0
    %v4181 = vadd.f32 %v4179, %v4180
    %v4182 = vsel %vm1245, %v4099, 0.0
    %v4183 = vadd.f32 %v4181, %v4182
    %v4184 = vsel %vm1245, %v4104, 0.0
    %v4185 = vadd.f32 %v4183, %v4184
    %v4186 = vsel %vm1245, %v4107, 0.0
    %v4187 = vadd.f32 %v4185, %v4186
    %v4188 = vsel %vm1245, %v4112, 0.0
    %v4189 = vadd.f32 %v4187, %v4188
    %v4190 = vsel %vm1245, %v4115, 0.0
    %v4191 = vadd.f32 %v4189, %v4190
    %v4192 = vsel %vm1245, %v4120, 0.0
    %v4193 = vadd.f32 %v4191, %v4192
    %v4194 = vsel %vm1245, %v4123, 0.0
    %v4195 = vadd.f32 %v4193, %v4194
    %v4196 = vsel %vm1245, %v4128, 0.0
    %v4197 = vadd.f32 %v4195, %v4196
    %v4198 = vsel %vm1245, %v4131, 0.0
    %v4199 = vadd.f32 %v4197, %v4198
    %v4200 = vsel %vm2636, %v4136, 0.0
    %v4201 = vadd.f32 %v4199, %v4200
    %v4202 = vrot.slane %v4201, 4
    %v4203 = vadd.f32 %v4201, %v4202
    %v4204 = vrot.slane %v4203, 2
    %v4205 = vadd.f32 %v4203, %v4204
    %v4206 = vrot.slane %v4205, 1
    %v4207 = vadd.f32 %v4205, %v4206
    %v4208 = vmul.f32 %v4016, %v4016
    %v4209 = vmul.f32 %v4019, %v4019
    %v4210 = vmul.f32 %v4024, %v4024
    %v4211 = vmul.f32 %v4027, %v4027
    %v4212 = vmul.f32 %v4032, %v4032
    %v4213 = vmul.f32 %v4035, %v4035
    %v4214 = vmul.f32 %v4040, %v4040
    %v4215 = vmul.f32 %v4043, %v4043
    %v4216 = vmul.f32 %v4048, %v4048
    %v4217 = vmul.f32 %v4051, %v4051
    %v4218 = vmul.f32 %v4056, %v4056
    %v4219 = vmul.f32 %v4059, %v4059
    %v4220 = vmul.f32 %v4064, %v4064
    %v4221 = vmul.f32 %v4067, %v4067
    %v4222 = vmul.f32 %v4072, %v4072
    %v4223 = vmul.f32 %v4075, %v4075
    %v4224 = vmul.f32 %v4080, %v4080
    %v4225 = vmul.f32 %v4083, %v4083
    %v4226 = vmul.f32 %v4088, %v4088
    %v4227 = vmul.f32 %v4091, %v4091
    %v4228 = vmul.f32 %v4096, %v4096
    %v4229 = vmul.f32 %v4099, %v4099
    %v4230 = vmul.f32 %v4104, %v4104
    %v4231 = vmul.f32 %v4107, %v4107
    %v4232 = vmul.f32 %v4112, %v4112
    %v4233 = vmul.f32 %v4115, %v4115
    %v4234 = vmul.f32 %v4120, %v4120
    %v4235 = vmul.f32 %v4123, %v4123
    %v4236 = vmul.f32 %v4128, %v4128
    %v4237 = vmul.f32 %v4131, %v4131
    %v4238 = vmul.f32 %v4136, %v4136
    %v4239 = vsel %vm1245, %v4208, 0.0
    %v4240 = vsel %vm1245, %v4209, 0.0
    %v4241 = vadd.f32 %v4239, %v4240
    %v4242 = vsel %vm1245, %v4210, 0.0
    %v4243 = vadd.f32 %v4241, %v4242
    %v4244 = vsel %vm1245, %v4211, 0.0
    %v4245 = vadd.f32 %v4243, %v4244
    %v4246 = vsel %vm1245, %v4212, 0.0
    %v4247 = vadd.f32 %v4245, %v4246
    %v4248 = vsel %vm1245, %v4213, 0.0
    %v4249 = vadd.f32 %v4247, %v4248
    %v4250 = vsel %vm1245, %v4214, 0.0
    %v4251 = vadd.f32 %v4249, %v4250
    %v4252 = vsel %vm1245, %v4215, 0.0
    %v4253 = vadd.f32 %v4251, %v4252
    %v4254 = vsel %vm1245, %v4216, 0.0
    %v4255 = vadd.f32 %v4253, %v4254
    %v4256 = vsel %vm1245, %v4217, 0.0
    %v4257 = vadd.f32 %v4255, %v4256
    %v4258 = vsel %vm1245, %v4218, 0.0
    %v4259 = vadd.f32 %v4257, %v4258
    %v4260 = vsel %vm1245, %v4219, 0.0
    %v4261 = vadd.f32 %v4259, %v4260
    %v4262 = vsel %vm1245, %v4220, 0.0
    %v4263 = vadd.f32 %v4261, %v4262
    %v4264 = vsel %vm1245, %v4221, 0.0
    %v4265 = vadd.f32 %v4263, %v4264
    %v4266 = vsel %vm1245, %v4222, 0.0
    %v4267 = vadd.f32 %v4265, %v4266
    %v4268 = vsel %vm1245, %v4223, 0.0
    %v4269 = vadd.f32 %v4267, %v4268
    %v4270 = vsel %vm1245, %v4224, 0.0
    %v4271 = vadd.f32 %v4269, %v4270
    %v4272 = vsel %vm1245, %v4225, 0.0
    %v4273 = vadd.f32 %v4271, %v4272
    %v4274 = vsel %vm1245, %v4226, 0.0
    %v4275 = vadd.f32 %v4273, %v4274
    %v4276 = vsel %vm1245, %v4227, 0.0
    %v4277 = vadd.f32 %v4275, %v4276
    %v4278 = vsel %vm1245, %v4228, 0.0
    %v4279 = vadd.f32 %v4277, %v4278
    %v4280 = vsel %vm1245, %v4229, 0.0
    %v4281 = vadd.f32 %v4279, %v4280
    %v4282 = vsel %vm1245, %v4230, 0.0
    %v4283 = vadd.f32 %v4281, %v4282
    %v4284 = vsel %vm1245, %v4231, 0.0
    %v4285 = vadd.f32 %v4283, %v4284
    %v4286 = vsel %vm1245, %v4232, 0.0
    %v4287 = vadd.f32 %v4285, %v4286
    %v4288 = vsel %vm1245, %v4233, 0.0
    %v4289 = vadd.f32 %v4287, %v4288
    %v4290 = vsel %vm1245, %v4234, 0.0
    %v4291 = vadd.f32 %v4289, %v4290
    %v4292 = vsel %vm1245, %v4235, 0.0
    %v4293 = vadd.f32 %v4291, %v4292
    %v4294 = vsel %vm1245, %v4236, 0.0
    %v4295 = vadd.f32 %v4293, %v4294
    %v4296 = vsel %vm1245, %v4237, 0.0
    %v4297 = vadd.f32 %v4295, %v4296
    %v4298 = vsel %vm2636, %v4238, 0.0
    %v4299 = vadd.f32 %v4297, %v4298
    %v4300 = vrot.slane %v4299, 4
    %v4301 = vadd.f32 %v4299, %v4300
    %v4302 = vrot.slane %v4301, 2
    %v4303 = vadd.f32 %v4301, %v4302
    %v4304 = vrot.slane %v4303, 1
    %v4305 = vadd.f32 %v4303, %v4304
    %v4306 = vrcp.pop 244.0
    %v4307 = vmul.f32 %v4207, %v4306
    %v4308 = vmul.f32 %v4305, %v4306
    %v4309 = vmul.f32 %v4307, %v4307
    %v4310 = vsub.f32 %v4308, %v4309
    %v4311 = vmax.f32 %v4310, 0.0
    %v4312 = vld [vmem:[%s5] sm:$0x1]
    %v4313 = vadd.f32 %v4311, 1e-05
    %v4314 = vrsqrt.pop %v4313
    %v4315 = vmul.f32 %v4312, %v4314
    %v4316 = vld [vmem:[%s6] sm:$0x1]
    %v4317 = vmul.f32 %v4307, %v4315
    %v4318 = vsub.f32 %v4316, %v4317
    %v4320 = vlaneseq
    %v4321 = vshrl.u32 %v4320, 7
    %v4322 = vsub.s32 0, %v4321
    %v4323 = vrot.slane %v4315, %v4322
    %v4325 = vmul.f32 %v4016, %v4323
    %v4326 = vmul.f32 %v4019, %v4323
    %v4327 = vmul.f32 %v4024, %v4323
    %v4328 = vmul.f32 %v4027, %v4323
    %v4329 = vmul.f32 %v4032, %v4323
    %v4330 = vmul.f32 %v4035, %v4323
    %v4331 = vmul.f32 %v4040, %v4323
    %v4332 = vmul.f32 %v4043, %v4323
    %v4333 = vmul.f32 %v4048, %v4323
    %v4334 = vmul.f32 %v4051, %v4323
    %v4335 = vmul.f32 %v4056, %v4323
    %v4336 = vmul.f32 %v4059, %v4323
    %v4337 = vmul.f32 %v4064, %v4323
    %v4338 = vmul.f32 %v4067, %v4323
    %v4339 = vmul.f32 %v4072, %v4323
    %v4340 = vmul.f32 %v4075, %v4323
    %v4341 = vmul.f32 %v4080, %v4323
    %v4342 = vmul.f32 %v4083, %v4323
    %v4343 = vmul.f32 %v4088, %v4323
    %v4344 = vmul.f32 %v4091, %v4323
    %v4345 = vmul.f32 %v4096, %v4323
    %v4346 = vmul.f32 %v4099, %v4323
    %v4347 = vmul.f32 %v4104, %v4323
    %v4348 = vmul.f32 %v4107, %v4323
    %v4349 = vmul.f32 %v4112, %v4323
    %v4350 = vmul.f32 %v4115, %v4323
    %v4351 = vmul.f32 %v4120, %v4323
    %v4352 = vmul.f32 %v4123, %v4323
    %v4353 = vmul.f32 %v4128, %v4323
    %v4354 = vmul.f32 %v4131, %v4323
    %v4355 = vmul.f32 %v4136, %v4323
    %v4357 = vlaneseq
    %v4358 = vshrl.u32 %v4357, 7
    %v4359 = vsub.s32 0, %v4358
    %v4360 = vrot.slane %v4318, %v4359
    %v4362 = vadd.f32 %v4325, %v4360
    %v4363 = vadd.f32 %v4326, %v4360
    %v4364 = vadd.f32 %v4327, %v4360
    %v4365 = vadd.f32 %v4328, %v4360
    %v4366 = vadd.f32 %v4329, %v4360
    %v4367 = vadd.f32 %v4330, %v4360
    %v4368 = vadd.f32 %v4331, %v4360
    %v4369 = vadd.f32 %v4332, %v4360
    %v4370 = vadd.f32 %v4333, %v4360
    %v4371 = vadd.f32 %v4334, %v4360
    %v4372 = vadd.f32 %v4335, %v4360
    %v4373 = vadd.f32 %v4336, %v4360
    %v4374 = vadd.f32 %v4337, %v4360
    %v4375 = vadd.f32 %v4338, %v4360
    %v4376 = vadd.f32 %v4339, %v4360
    %v4377 = vadd.f32 %v4340, %v4360
    %v4378 = vadd.f32 %v4341, %v4360
    %v4379 = vadd.f32 %v4342, %v4360
    %v4380 = vadd.f32 %v4343, %v4360
    %v4381 = vadd.f32 %v4344, %v4360
    %v4382 = vadd.f32 %v4345, %v4360
    %v4383 = vadd.f32 %v4346, %v4360
    %v4384 = vadd.f32 %v4347, %v4360
    %v4385 = vadd.f32 %v4348, %v4360
    %v4386 = vadd.f32 %v4349, %v4360
    %v4387 = vadd.f32 %v4350, %v4360
    %v4388 = vadd.f32 %v4351, %v4360
    %v4389 = vadd.f32 %v4352, %v4360
    %v4390 = vadd.f32 %v4353, %v4360
    %v4391 = vadd.f32 %v4354, %v4360
    %v4392 = vadd.f32 %v4355, %v4360
    %v4393 = vmax.f32 %v4362, 0.0
    %v4394 = vmax.f32 %v4363, 0.0
    %v4395 = vmax.f32 %v4364, 0.0
    %v4396 = vmax.f32 %v4365, 0.0
    %v4397 = vmax.f32 %v4366, 0.0
    %v4398 = vmax.f32 %v4367, 0.0
    %v4399 = vmax.f32 %v4368, 0.0
    %v4400 = vmax.f32 %v4369, 0.0
    %v4401 = vmax.f32 %v4370, 0.0
    %v4402 = vmax.f32 %v4371, 0.0
    %v4403 = vmax.f32 %v4372, 0.0
    %v4404 = vmax.f32 %v4373, 0.0
    %v4405 = vmax.f32 %v4374, 0.0
    %v4406 = vmax.f32 %v4375, 0.0
    %v4407 = vmax.f32 %v4376, 0.0
    %v4408 = vmax.f32 %v4377, 0.0
    %v4409 = vmax.f32 %v4378, 0.0
    %v4410 = vmax.f32 %v4379, 0.0
    %v4411 = vmax.f32 %v4380, 0.0
    %v4412 = vmax.f32 %v4381, 0.0
    %v4413 = vmax.f32 %v4382, 0.0
    %v4414 = vmax.f32 %v4383, 0.0
    %v4415 = vmax.f32 %v4384, 0.0
    %v4416 = vmax.f32 %v4385, 0.0
    %v4417 = vmax.f32 %v4386, 0.0
    %v4418 = vmax.f32 %v4387, 0.0
    %v4419 = vmax.f32 %v4388, 0.0
    %v4420 = vmax.f32 %v4389, 0.0
    %v4421 = vmax.f32 %v4390, 0.0
    %v4422 = vmax.f32 %v4391, 0.0
    %v4423 = vmax.f32 %v4392, 0.0
    %4424 = vst.msk [vmem:[#allocation5] sm:$0xff] %vm1245, %v4393
    %4425 = vst.msk [vmem:[#allocation5 + $0x8] sm:$0xff] %vm1245, %v4394
    %4426 = vst.msk [vmem:[#allocation5 + $0x10] sm:$0xff] %vm1245, %v4395
    %4427 = vst.msk [vmem:[#allocation5 + $0x18] sm:$0xff] %vm1245, %v4396
    %4428 = vst.msk [vmem:[#allocation5 + $0x20] sm:$0xff] %vm1245, %v4397
    %4429 = vst.msk [vmem:[#allocation5 + $0x28] sm:$0xff] %vm1245, %v4398
    %4430 = vst.msk [vmem:[#allocation5 + $0x30] sm:$0xff] %vm1245, %v4399
    %4431 = vst.msk [vmem:[#allocation5 + $0x38] sm:$0xff] %vm1245, %v4400
    %4432 = vst.msk [vmem:[#allocation5 + $0x40] sm:$0xff] %vm1245, %v4401
    %4433 = vst.msk [vmem:[#allocation5 + $0x48] sm:$0xff] %vm1245, %v4402
    %4434 = vst.msk [vmem:[#allocation5 + $0x50] sm:$0xff] %vm1245, %v4403
    %4435 = vst.msk [vmem:[#allocation5 + $0x58] sm:$0xff] %vm1245, %v4404
    %4436 = vst.msk [vmem:[#allocation5 + $0x60] sm:$0xff] %vm1245, %v4405
    %4437 = vst.msk [vmem:[#allocation5 + $0x68] sm:$0xff] %vm1245, %v4406
    %4438 = vst.msk [vmem:[#allocation5 + $0x70] sm:$0xff] %vm1245, %v4407
    %4439 = vst.msk [vmem:[#allocation5 + $0x78] sm:$0xff] %vm1245, %v4408
    %4440 = vst.msk [vmem:[#allocation5 + $0x80] sm:$0xff] %vm1245, %v4409
    %4441 = vst.msk [vmem:[#allocation5 + $0x88] sm:$0xff] %vm1245, %v4410
    %4442 = vst.msk [vmem:[#allocation5 + $0x90] sm:$0xff] %vm1245, %v4411
    %4443 = vst.msk [vmem:[#allocation5 + $0x98] sm:$0xff] %vm1245, %v4412
    %4444 = vst.msk [vmem:[#allocation5 + $0xa0] sm:$0xff] %vm1245, %v4413
    %4445 = vst.msk [vmem:[#allocation5 + $0xa8] sm:$0xff] %vm1245, %v4414
    %4446 = vst.msk [vmem:[#allocation5 + $0xb0] sm:$0xff] %vm1245, %v4415
    %4447 = vst.msk [vmem:[#allocation5 + $0xb8] sm:$0xff] %vm1245, %v4416
    %4448 = vst.msk [vmem:[#allocation5 + $0xc0] sm:$0xff] %vm1245, %v4417
    %4449 = vst.msk [vmem:[#allocation5 + $0xc8] sm:$0xff] %vm1245, %v4418
    %4450 = vst.msk [vmem:[#allocation5 + $0xd0] sm:$0xff] %vm1245, %v4419
    %4451 = vst.msk [vmem:[#allocation5 + $0xd8] sm:$0xff] %vm1245, %v4420
    %4452 = vst.msk [vmem:[#allocation5 + $0xe0] sm:$0xff] %vm1245, %v4421
    %4453 = vst.msk [vmem:[#allocation5 + $0xe8] sm:$0xff] %vm1245, %v4422
    %4454 = vst.msk [vmem:[#allocation5 + $0xf0] sm:$0xf] %vm2636, %v4423
    %v4455 = vld [vmem:[#allocation5] ss:$4 sm:$0xff]
    %s4456 = scalar_lea.vmem [#allocation5], 32
    %v4457 = vld [vmem:[%s4456] ss:$4 sm:$0xff]
    %s4458 = scalar_lea.vmem [#allocation5], 64
    %v4459 = vld [vmem:[%s4458] ss:$4 sm:$0xff]
    %s4460 = scalar_lea.vmem [#allocation5], 96
    %v4461 = vld [vmem:[%s4460] ss:$4 sm:$0x3f]
    %s4462 = scalar_lea.vmem [#allocation5], 1
    %v4463 = vld [vmem:[%s4462] ss:$4 sm:$0xff]
    %s4464 = scalar_lea.vmem [#allocation5], 33
    %v4465 = vld [vmem:[%s4464] ss:$4 sm:$0xff]
    %s4466 = scalar_lea.vmem [#allocation5], 65
    %v4467 = vld [vmem:[%s4466] ss:$4 sm:$0xff]
    %s4468 = scalar_lea.vmem [#allocation5], 97
    %v4469 = vld [vmem:[%s4468] ss:$4 sm:$0x3f]
    %v4470 = vmax.f32 %v4455, %v4463
    %v4471 = vmax.f32 %v4457, %v4465
    %v4472 = vmax.f32 %v4459, %v4467
    %v4473 = vmax.f32 %v4461, %v4469
    %s4474 = scalar_lea.vmem [#allocation5], 2
    %v4475 = vld [vmem:[%s4474] ss:$4 sm:$0xff]
    %s4476 = scalar_lea.vmem [#allocation5], 34
    %v4477 = vld [vmem:[%s4476] ss:$4 sm:$0xff]
    %s4478 = scalar_lea.vmem [#allocation5], 66
    %v4479 = vld [vmem:[%s4478] ss:$4 sm:$0xff]
    %s4480 = scalar_lea.vmem [#allocation5], 98
    %v4481 = vld [vmem:[%s4480] ss:$4 sm:$0x3f]
    %v4482 = vmax.f32 %v4470, %v4475
    %v4483 = vmax.f32 %v4471, %v4477
    %v4484 = vmax.f32 %v4472, %v4479
    %v4485 = vmax.f32 %v4473, %v4481
    %s4486 = scalar_lea.vmem [#allocation5], 3
    %v4487 = vld [vmem:[%s4486] ss:$4 sm:$0xff]
    %s4488 = scalar_lea.vmem [#allocation5], 35
    %v4489 = vld [vmem:[%s4488] ss:$4 sm:$0xff]
    %s4490 = scalar_lea.vmem [#allocation5], 67
    %v4491 = vld [vmem:[%s4490] ss:$4 sm:$0xff]
    %s4492 = scalar_lea.vmem [#allocation5], 99
    %v4493 = vld [vmem:[%s4492] ss:$4 sm:$0x3f]
    %v4494 = vmax.f32 %v4482, %v4487
    %v4495 = vmax.f32 %v4483, %v4489
    %v4496 = vmax.f32 %v4484, %v4491
    %v4497 = vmax.f32 %v4485, %v4493
    %v4498 = vpack.c.bf16 %v4495, %v4494
    %v4499 = vpack.c.bf16 %v4497, %v4496
    %v4502 = vunpack.c.l.b16 %v4498
    %v4503 = vunpack.c.h.b16 %v4498
    %v4504 = vunpack.c.l.b16 %v4499
    %v4505 = vunpack.c.h.b16 %v4499
    %v4506 = vpack.c.b16 %v4502, %v4502
    %v4507 = vpack.c.b16 %v4503, %v4503
    %v4508 = vpack.c.b16 %v4504, %v4504
    %v4509 = vpack.c.b16 %v4505, %v4505
    %4514 = vst.msk [vmem:[#allocation6] sm:$0xf] %vm2636, %v4506
    %4515 = vst.msk [vmem:[#allocation6 + $0x4] sm:$0xf] %vm2636, %v4507
    %4516 = vst.msk [vmem:[#allocation6 + $0x8] sm:$0xf] %vm2636, %v4508
    %vm4517 = vcmask 256000
    %4518 = vst.msk [vmem:[#allocation6 + $0xc] sm:$0x7] %vm4517, %v4509
    %s4519 = scalar_lea.vmem [#allocation5], 122
    %v4520 = vld [vmem:[%s4519] ss:$4 sm:$0xff]
    %s4521 = scalar_lea.vmem [#allocation5], 154
    %v4522 = vld [vmem:[%s4521] ss:$4 sm:$0xff]
    %s4523 = scalar_lea.vmem [#allocation5], 186
    %v4524 = vld [vmem:[%s4523] ss:$4 sm:$0xff]
    %s4525 = scalar_lea.vmem [#allocation5], 218
    %v4526 = vld [vmem:[%s4525] ss:$4 sm:$0x3f]
    %s4527 = scalar_lea.vmem [#allocation5], 123
    %v4528 = vld [vmem:[%s4527] ss:$4 sm:$0xff]
    %s4529 = scalar_lea.vmem [#allocation5], 155
    %v4530 = vld [vmem:[%s4529] ss:$4 sm:$0xff]
    %s4531 = scalar_lea.vmem [#allocation5], 187
    %v4532 = vld [vmem:[%s4531] ss:$4 sm:$0xff]
    %s4533 = scalar_lea.vmem [#allocation5], 219
    %v4534 = vld [vmem:[%s4533] ss:$4 sm:$0x3f]
    %v4535 = vmax.f32 %v4520, %v4528
    %v4536 = vmax.f32 %v4522, %v4530
    %v4537 = vmax.f32 %v4524, %v4532
    %v4538 = vmax.f32 %v4526, %v4534
    %s4539 = scalar_lea.vmem [#allocation5], 124
    %v4540 = vld [vmem:[%s4539] ss:$4 sm:$0xff]
    %s4541 = scalar_lea.vmem [#allocation5], 156
    %v4542 = vld [vmem:[%s4541] ss:$4 sm:$0xff]
    %s4543 = scalar_lea.vmem [#allocation5], 188
    %v4544 = vld [vmem:[%s4543] ss:$4 sm:$0xff]
    %s4545 = scalar_lea.vmem [#allocation5], 220
    %v4546 = vld [vmem:[%s4545] ss:$4 sm:$0x3f]
    %v4547 = vmax.f32 %v4535, %v4540
    %v4548 = vmax.f32 %v4536, %v4542
    %v4549 = vmax.f32 %v4537, %v4544
    %v4550 = vmax.f32 %v4538, %v4546
    %s4551 = scalar_lea.vmem [#allocation5], 125
    %v4552 = vld [vmem:[%s4551] ss:$4 sm:$0xff]
    %s4553 = scalar_lea.vmem [#allocation5], 157
    %v4554 = vld [vmem:[%s4553] ss:$4 sm:$0xff]
    %s4555 = scalar_lea.vmem [#allocation5], 189
    %v4556 = vld [vmem:[%s4555] ss:$4 sm:$0xff]
    %s4557 = scalar_lea.vmem [#allocation5], 221
    %v4558 = vld [vmem:[%s4557] ss:$4 sm:$0x3f]
    %v4559 = vmax.f32 %v4547, %v4552
    %v4560 = vmax.f32 %v4548, %v4554
    %v4561 = vmax.f32 %v4549, %v4556
    %v4562 = vmax.f32 %v4550, %v4558
    %v4563 = vpack.c.bf16 %v4560, %v4559
    %v4564 = vpack.c.bf16 %v4562, %v4561
    %v4567 = vunpack.c.l.b16 %v4563
    %v4568 = vunpack.c.h.b16 %v4563
    %v4569 = vunpack.c.l.b16 %v4564
    %v4570 = vunpack.c.h.b16 %v4564
    %v4571 = vpack.c.b16 %v4567, %v4567
    %v4572 = vpack.c.b16 %v4568, %v4568
    %v4573 = vpack.c.b16 %v4569, %v4569
    %v4574 = vpack.c.b16 %v4570, %v4570
    %s4579 = scalar_lea.vmem [#allocation6], 16
    %4580 = vst.msk [vmem:[%s4579] sm:$0xf] %vm2636, %v4571
    %4581 = vst.msk [vmem:[%s4579 + $0x4] sm:$0xf] %vm2636, %v4572
    %4582 = vst.msk [vmem:[%s4579 + $0x8] sm:$0xf] %vm2636, %v4573
    %4583 = vst.msk [vmem:[%s4579 + $0xc] sm:$0x7] %vm4517, %v4574
    %v4584 = vld [vmem:[#allocation6] sm:$0xf]
    %v4585 = vld [vmem:[#allocation6 + $0x4] sm:$0xf]
    %v4586 = vld [vmem:[#allocation6 + $0x8] sm:$0xf]
    %v4587 = vld [vmem:[#allocation6 + $0xc] sm:$0x3]
    %4588 = vst.msk [vmem:[#allocation4] sm:$0xf] %vm2636, %v4584
    %4589 = vst.msk [vmem:[#allocation4 + $0x8] sm:$0xf] %vm2636, %v4585
    %4590 = vst.msk [vmem:[#allocation4 + $0x10] sm:$0xf] %vm2636, %v4586
    %4591 = vst.msk [vmem:[#allocation4 + $0x18] sm:$0x3] %vm2652, %v4587
    %v4592 = vld [vmem:[#allocation6] sm:$0xf]
    %v4593 = vld [vmem:[#allocation6 + $0x4] sm:$0xf]
    %v4594 = vld [vmem:[#allocation6 + $0x8] sm:$0xf]
    %v4595 = vld [vmem:[#allocation6 + $0xc] sm:$0x7]
    %v4597 = vshrl.u32 %v4592, 16
    %v4599 = vrot.slane %v4597, 4
    %v4600 = vshll.u32 %v4592, 16
    %v4602 = vrot.slane %v4600, 5
    %v4603 = vor.u32 %v4599, %v4602
    %v4604 = vrot.slane %v4603, 4
    %v4606 = vshll.u32 %v4593, 16
    %v4608 = vrot.slane %v4606, 5
    %v4609 = vsel %vm2962, %v4604, %v4608
    %v4610 = vshrl.u32 %v4593, 16
    %v4612 = vrot.slane %v4610, 4
    %v4613 = vor.u32 %v4612, %v4608
    %v4614 = vrot.slane %v4613, 4
    %v4616 = vshll.u32 %v4594, 16
    %v4618 = vrot.slane %v4616, 5
    %v4619 = vsel %vm2962, %v4614, %v4618
    %v4620 = vshrl.u32 %v4594, 16
    %v4622 = vrot.slane %v4620, 4
    %v4623 = vor.u32 %v4622, %v4618
    %v4624 = vrot.slane %v4623, 4
    %v4626 = vshll.u32 %v4595, 16
    %v4628 = vrot.slane %v4626, 5
    %v4629 = vsel %vm2962, %v4624, %v4628
    %v4630 = vshrl.u32 %v4595, 16
    %v4632 = vrot.slane %v4630, 4
    %v4633 = vor.u32 %v4632, %v4628
    %v4634 = vrot.slane %v4633, 4
    %4635 = vrot.lane.b32.xlu0 %v4609, 32
    %v4636 = vpop.permute.xlu0 %4635
    %4637 = vrot.lane.b32.xlu0 %v4619, 32
    %v4638 = vpop.permute.xlu0 %4637
    %4639 = vrot.lane.b32.xlu0 %v4629, 32
    %v4640 = vpop.permute.xlu0 %4639
    %4641 = vrot.lane.b32.xlu0 %v4634, 32
    %v4642 = vpop.permute.xlu0 %4641
    %4647 = vst.msk [vmem:[#allocation4] sm:$0xf] %vm3170, %v4636
    %4648 = vst.msk [vmem:[#allocation4 + $0x8] sm:$0xf] %vm3170, %v4638
    %4649 = vst.msk [vmem:[#allocation4 + $0x10] sm:$0xf] %vm3170, %v4640
    %4650 = vst.msk [vmem:[#allocation4 + $0x18] sm:$0x3] %vm3675, %v4642
    %v4651 = vld [vmem:[#allocation6] sm:$0xe]
    %v4652 = vld [vmem:[#allocation6 + $0x4] sm:$0xf]
    %v4653 = vld [vmem:[#allocation6 + $0x8] sm:$0xf]
    %v4654 = vld [vmem:[#allocation6 + $0xc] sm:$0x7]
    %v4659 = vrot.slane %v4651, 5
    %v4660 = vrot.slane %v4659, 4
    %v4661 = vrot.slane %v4652, 5
    %v4662 = vsel %vm3222, %v4660, %v4661
    %v4663 = vrot.slane %v4661, 4
    %v4664 = vrot.slane %v4653, 5
    %v4665 = vsel %vm3222, %v4663, %v4664
    %v4666 = vrot.slane %v4664, 4
    %v4667 = vrot.slane %v4654, 5
    %v4668 = vsel %vm3222, %v4666, %v4667
    %v4669 = vrot.slane %v4667, 4
    %4670 = vrot.lane.b32.xlu0 %v4662, 64
    %v4671 = vpop.permute.xlu0 %4670
    %4672 = vrot.lane.b32.xlu0 %v4665, 64
    %v4673 = vpop.permute.xlu0 %4672
    %4674 = vrot.lane.b32.xlu0 %v4668, 64
    %v4675 = vpop.permute.xlu0 %4674
    %4676 = vrot.lane.b32.xlu0 %v4669, 64
    %v4677 = vpop.permute.xlu0 %4676
    %4682 = vst.msk [vmem:[#allocation4] sm:$0xf] %vm3318, %v4671
    %4683 = vst.msk [vmem:[#allocation4 + $0x8] sm:$0xf] %vm3318, %v4673
    %4684 = vst.msk [vmem:[#allocation4 + $0x10] sm:$0xf] %vm3318, %v4675
    %4685 = vst.msk [vmem:[#allocation4 + $0x18] sm:$0x3] %vm3773, %v4677
    %v4686 = vld [vmem:[%s4579] sm:$0xf]
    %v4687 = vld [vmem:[%s4579 + $0x4] sm:$0xf]
    %v4688 = vld [vmem:[%s4579 + $0x8] sm:$0xf]
    %v4689 = vld [vmem:[%s4579 + $0xc] sm:$0x3]
    %vm4694 = vcmask 1041408
    %vm4695 = vcmask 1045508
    %vm4696 = vmor %vm4694, %vm4695
    %v4697 = vrot.slane %v4686, 6
    %v4698 = vrot.slane %v4697, 4
    %v4699 = vrot.slane %v4687, 6
    %v4700 = vsel %vm4696, %v4698, %v4699
    %v4701 = vrot.slane %v4699, 4
    %v4702 = vrot.slane %v4688, 6
    %v4703 = vsel %vm4696, %v4701, %v4702
    %v4704 = vrot.slane %v4702, 4
    %v4705 = vrot.slane %v4689, 6
    %v4706 = vsel %vm4696, %v4704, %v4705
    %vm4711 = vcmask 257026
    %4712 = vst.msk [vmem:[#allocation4 + $0x18] sm:$0xc] %vm4711, %v4697
    %4713 = vst.msk [vmem:[#allocation4 + $0x20] sm:$0xf] %vm2636, %v4700
    %4714 = vst.msk [vmem:[#allocation4 + $0x28] sm:$0xf] %vm2636, %v4703
    %4715 = vst.msk [vmem:[#allocation4 + $0x30] sm:$0xf] %vm2636, %v4706
    %v4716 = vld [vmem:[%s4579] sm:$0xf]
    %v4717 = vld [vmem:[%s4579 + $0x4] sm:$0xf]
    %v4718 = vld [vmem:[%s4579 + $0x8] sm:$0xf]
    %v4719 = vld [vmem:[%s4579 + $0xc] sm:$0x7]
    %vm4720 = vsmask.f32 1280
    %vm4721 = vsmask.f32 5392
    %vm4722 = vmor %vm4720, %vm4721
    %v4724 = vshrl.u32 %v4716, 16
    %v4726 = vrot.slane %v4724, 6
    %v4727 = vshll.u32 %v4716, 16
    %v4729 = vrot.slane %v4727, 7
    %v4730 = vor.u32 %v4726, %v4729
    %v4731 = vrot.slane %v4730, 4
    %v4733 = vshrl.u32 %v4717, 16
    %v4735 = vrot.slane %v4733, 6
    %v4736 = vshll.u32 %v4717, 16
    %v4738 = vrot.slane %v4736, 7
    %v4739 = vor.u32 %v4735, %v4738
    %v4740 = vsel %vm4722, %v4731, %v4739
    %v4741 = vrot.slane %v4739, 4
    %v4743 = vshrl.u32 %v4718, 16
    %v4745 = vrot.slane %v4743, 6
    %v4746 = vshll.u32 %v4718, 16
    %v4748 = vrot.slane %v4746, 7
    %v4749 = vor.u32 %v4745, %v4748
    %v4750 = vsel %vm4722, %v4741, %v4749
    %v4751 = vrot.slane %v4749, 4
    %v4753 = vshrl.u32 %v4719, 16
    %v4755 = vrot.slane %v4753, 6
    %v4756 = vshll.u32 %v4719, 16
    %v4758 = vrot.slane %v4756, 7
    %v4759 = vor.u32 %v4755, %v4758
    %v4760 = vsel %vm4722, %v4751, %v4759
    %4761 = vrot.lane.b32.xlu0 %v4730, 32
    %v4762 = vpop.permute.xlu0 %4761
    %4763 = vrot.lane.b32.xlu0 %v4740, 32
    %v4764 = vpop.permute.xlu0 %4763
    %4765 = vrot.lane.b32.xlu0 %v4750, 32
    %v4766 = vpop.permute.xlu0 %4765
    %4767 = vrot.lane.b32.xlu0 %v4760, 32
    %v4768 = vpop.permute.xlu0 %4767
    %vm4773 = vcmask 519426
    %4774 = vst.msk [vmem:[#allocation4 + $0x18] sm:$0xc] %vm4773, %v4762
    %4775 = vst.msk [vmem:[#allocation4 + $0x20] sm:$0xf] %vm3170, %v4764
    %4776 = vst.msk [vmem:[#allocation4 + $0x28] sm:$0xf] %vm3170, %v4766
    %4777 = vst.msk [vmem:[#allocation4 + $0x30] sm:$0xf] %vm3170, %v4768
    %v4778 = vld [vmem:[%s4579] sm:$0xe]
    %v4779 = vld [vmem:[%s4579 + $0x4] sm:$0xf]
    %v4780 = vld [vmem:[%s4579 + $0x8] sm:$0xf]
    %v4781 = vld [vmem:[%s4579 + $0xc] sm:$0x7]
    %v4786 = vrot.slane %v4778, 7
    %v4787 = vrot.slane %v4786, 4
    %v4788 = vrot.slane %v4779, 7
    %v4789 = vsel %vm3370, %v4787, %v4788
    %v4790 = vrot.slane %v4788, 4
    %v4791 = vrot.slane %v4780, 7
    %v4792 = vsel %vm3370, %v4790, %v4791
    %v4793 = vrot.slane %v4791, 4
    %v4794 = vrot.slane %v4781, 7
    %v4795 = vsel %vm3370, %v4793, %v4794
    %4796 = vrot.lane.b32.xlu0 %v4786, 64
    %v4797 = vpop.permute.xlu0 %4796
    %4798 = vrot.lane.b32.xlu0 %v4789, 64
    %v4799 = vpop.permute.xlu0 %4798
    %4800 = vrot.lane.b32.xlu0 %v4792, 64
    %v4801 = vpop.permute.xlu0 %4800
    %4802 = vrot.lane.b32.xlu0 %v4795, 64
    %v4803 = vpop.permute.xlu0 %4802
    %vm4808 = vcmask 781826
    %4809 = vst.msk [vmem:[#allocation4 + $0x18] sm:$0xc] %vm4808, %v4797
    %4810 = vst.msk [vmem:[#allocation4 + $0x20] sm:$0xf] %vm3318, %v4799
    %4811 = vst.msk [vmem:[#allocation4 + $0x28] sm:$0xf] %vm3318, %v4801
    %4812 = vst.msk [vmem:[#allocation4 + $0x30] sm:$0xf] %vm3318, %v4803
    %v4813 = vld [vmem:[#allocation4] sm:$0xf]
    %v4814 = vld [vmem:[#allocation4 + $0x8] sm:$0xf]
    %v4815 = vld [vmem:[#allocation4 + $0x10] sm:$0xf]
    %v4816 = vld [vmem:[#allocation4 + $0x18] sm:$0xf]
    %v4817 = vld [vmem:[#allocation4 + $0x20] sm:$0xf]
    %v4818 = vld [vmem:[#allocation4 + $0x28] sm:$0xf]
    %v4819 = vld [vmem:[#allocation4 + $0x30] sm:$0xf]
    %v4820 = vld [vmem:[%s7] sm:$0xf]
    %v4821 = vld [vmem:[%s7 + $0x4] sm:$0xf]
    %v4822 = vld [vmem:[%s7 + $0x8] sm:$0xf]
    %v4823 = vld [vmem:[%s7 + $0xc] sm:$0xf]
    %v4824 = vld [vmem:[%s7 + $0x10] sm:$0xf]
    %v4825 = vld [vmem:[%s7 + $0x14] sm:$0xf]
    %v4826 = vld [vmem:[%s7 + $0x18] sm:$0xf]
    %v4827 = vld [vmem:[%s7 + $0x1c] sm:$0xf]
    %v4828 = vld [vmem:[%s7 + $0x20] sm:$0xf]
    %v4829 = vld [vmem:[%s7 + $0x24] sm:$0xf]
    %v4830 = vld [vmem:[%s7 + $0x28] sm:$0xf]
    %v4831 = vld [vmem:[%s7 + $0x2c] sm:$0xf]
    %v4839 = vunpack.c.l.b16 %v4813
    %v4840 = vunpack.c.l.b16 %v4814
    %v4841 = vunpack.c.l.b16 %v4815
    %v4842 = vunpack.c.l.b16 %v4816
    %v4843 = vunpack.c.l.b16 %v4817
    %v4844 = vunpack.c.l.b16 %v4818
    %v4845 = vunpack.c.l.b16 %v4819
    %v4846 = vpack.c.b16 %v4840, %v4839
    %v4847 = vpack.c.b16 %v4842, %v4841
    %v4848 = vpack.c.b16 %v4844, %v4843
    %v4849 = vpack.c.b16 %v4845, %v4845
    %v4862 = vunpack.c.l.b16 %v4820
    %v4863 = vunpack.c.l.b16 %v4821
    %v4864 = vunpack.c.l.b16 %v4822
    %v4865 = vunpack.c.l.b16 %v4823
    %v4866 = vunpack.c.l.b16 %v4824
    %v4867 = vunpack.c.l.b16 %v4825
    %v4868 = vunpack.c.l.b16 %v4826
    %v4869 = vunpack.c.l.b16 %v4827
    %v4870 = vunpack.c.l.b16 %v4828
    %v4871 = vunpack.c.l.b16 %v4829
    %v4872 = vunpack.c.l.b16 %v4830
    %v4873 = vunpack.c.l.b16 %v4831
    %v4874 = vpack.c.b16 %v4863, %v4862
    %v4875 = vpack.c.b16 %v4865, %v4864
    %v4876 = vpack.c.b16 %v4867, %v4866
    %v4877 = vpack.c.b16 %v4869, %v4868
    %v4878 = vpack.c.b16 %v4871, %v4870
    %v4879 = vpack.c.b16 %v4873, %v4872
    %v4887 = vsel %vm3932, %v4846, 0
    %v4890 = vsel %vm3932, %v4847, 0
    %v4893 = vsel %vm3932, %v4848, 0
    %v4896 = vsel %vm3932, %v4849, 0
    %4898 = vmatprep.subr.bf16.mxu0 0
    %4899 = vmatpush1.bf16.msra.mxu0 %v4874
    %4900 = vmatprep.subr.bf16.mxu0 0
    %4901 = vmatpush1.bf16.msra.mxu0 %v4875
    %4902 = vmatprep.subr.bf16.mxu0 0
    %4903 = vmatpush1.bf16.msra.mxu0 %v4876
    %4904 = vmatprep.subr.bf16.mxu0 0
    %4905 = vmatpush1.bf16.msra.mxu0 %v4877
    %4906 = vmatprep.subr.bf16.mxu0 0
    %4907 = vmatpush1.bf16.msra.mxu0 %v4878
    %4908 = vmatprep.subr.bf16.mxu0 0
    %4909 = vmatpush1.bf16.msra.mxu0 %v4879
    %4910 = vmatprep.subr.bf16.mxu0 0
    %4911 = vmatpush1.bf16.msra.mxu0 0
    %4912 = vmatprep.subr.bf16.mxu0 0
    %4913 = vmatpush1.bf16.msra.mxu0 0
    %4914 = vmatprep.subr.bf16.mxu0 0
    %4915 = vmatpush1.bf16.msra.mxu0 0
    %4916 = vmatprep.subr.bf16.mxu0 0
    %4917 = vmatpush1.bf16.msra.mxu0 0
    %4918 = vmatprep.subr.bf16.mxu0 0
    %4919 = vmatpush1.bf16.msra.mxu0 0
    %4920 = vmatprep.subr.bf16.mxu0 0
    %4921 = vmatpush1.bf16.msra.mxu0 0
    %4922 = vmatprep.subr.bf16.mxu0 0
    %4923 = vmatpush1.bf16.msra.mxu0 0
    %4924 = vmatprep.subr.bf16.mxu0 0
    %4925 = vmatpush1.bf16.msra.mxu0 0
    %4926 = vmatprep.subr.bf16.mxu0 0
    %4927 = vmatpush1.bf16.msra.mxu0 0
    %4928 = vmatprep.subr.bf16.mxu0 0
    %4929 = vmatpush1.bf16.msra.mxu0 0
    %4930 = vmatprep.mubr.bf16.mxu0 0
    %4931 = vmatmul.mubr.bf16.gmra.mrb[0].mxu0 %v4887
    %v4932 = vpop.f32.mrb[0].mxu0
    %v4933 = vadd.f32 0.0, %v4932
    %v4934 = vpop.f32.mrb[0].mxu0
    %v4935 = vpop.f32.mrb[0].mxu0
    %v4936 = vadd.f32 0.0, %v4935
    %v4937 = vpop.f32.mrb[0].mxu0
    %4938 = vmatprep.mubr.bf16.mxu0 0
    %4939 = vmatmul.mubr.bf16.gmra.mrb[0].mxu0 %v4890
    %v4940 = vpop.f32.mrb[0].mxu0
    %v4941 = vadd.f32 0.0, %v4940
    %v4942 = vpop.f32.mrb[0].mxu0
    %v4943 = vpop.f32.mrb[0].mxu0
    %v4944 = vadd.f32 0.0, %v4943
    %v4945 = vpop.f32.mrb[0].mxu0
    %4946 = vmatprep.mubr.bf16.mxu0 0
    %4947 = vmatmul.mubr.bf16.gmra.mrb[0].mxu0 %v4893
    %v4948 = vpop.f32.mrb[0].mxu0
    %v4949 = vadd.f32 0.0, %v4948
    %v4950 = vpop.f32.mrb[0].mxu0
    %v4951 = vpop.f32.mrb[0].mxu0
    %v4952 = vadd.f32 0.0, %v4951
    %v4953 = vpop.f32.mrb[0].mxu0
    %4954 = vmatprep.mubr.bf16.mxu0 0
    %4955 = vmatmul.mubr.bf16.gmra.mrb[0].mxu0 %v4896
    %v4956 = vpop.f32.mrb[0].mxu0
    %v4957 = vadd.f32 0.0, %v4956
    %v4958 = vpop.f32.mrb[0].mxu0
    %v4959 = vpop.f32.mrb[0].mxu0
    %v4960 = vpop.f32.mrb[0].mxu0
    %4961 = vdwg.mxu0
    %vm4962 = vcmask 523264
    %v4963 = vsel %vm4962, %v4933, 0.0
    %v4964 = vsel %vm4962, %v4936, 0.0
    %v4965 = vadd.f32 %v4963, %v4964
    %v4966 = vsel %vm4962, %v4941, 0.0
    %v4967 = vadd.f32 %v4965, %v4966
    %v4968 = vsel %vm4962, %v4944, 0.0
    %v4969 = vadd.f32 %v4967, %v4968
    %v4970 = vsel %vm4962, %v4949, 0.0
    %v4971 = vadd.f32 %v4969, %v4970
    %v4972 = vsel %vm4962, %v4952, 0.0
    %v4973 = vadd.f32 %v4971, %v4972
    %v4974 = vsel %vm4962, %v4957, 0.0
    %v4975 = vadd.f32 %v4973, %v4974
    %v4976 = vrot.slane %v4975, 4
    %v4977 = vadd.f32 %v4975, %v4976
    %v4978 = vrot.slane %v4977, 2
    %v4979 = vadd.f32 %v4977, %v4978
    %v4980 = vrot.slane %v4979, 1
    %v4981 = vadd.f32 %v4979, %v4980
    %v4982 = vmul.f32 %v4933, %v4933
    %v4983 = vmul.f32 %v4936, %v4936
    %v4984 = vmul.f32 %v4941, %v4941
    %v4985 = vmul.f32 %v4944, %v4944
    %v4986 = vmul.f32 %v4949, %v4949
    %v4987 = vmul.f32 %v4952, %v4952
    %v4988 = vmul.f32 %v4957, %v4957
    %v4989 = vsel %vm4962, %v4982, 0.0
    %v4990 = vsel %vm4962, %v4983, 0.0
    %v4991 = vadd.f32 %v4989, %v4990
    %v4992 = vsel %vm4962, %v4984, 0.0
    %v4993 = vadd.f32 %v4991, %v4992
    %v4994 = vsel %vm4962, %v4985, 0.0
    %v4995 = vadd.f32 %v4993, %v4994
    %v4996 = vsel %vm4962, %v4986, 0.0
    %v4997 = vadd.f32 %v4995, %v4996
    %v4998 = vsel %vm4962, %v4987, 0.0
    %v4999 = vadd.f32 %v4997, %v4998
    %v5000 = vsel %vm4962, %v4988, 0.0
    %v5001 = vadd.f32 %v4999, %v5000
    %v5002 = vrot.slane %v5001, 4
    %v5003 = vadd.f32 %v5001, %v5002
    %v5004 = vrot.slane %v5003, 2
    %v5005 = vadd.f32 %v5003, %v5004
    %v5006 = vrot.slane %v5005, 1
    %v5007 = vadd.f32 %v5005, %v5006
    %v5008 = vrcp.pop 56.0
    %v5009 = vmul.f32 %v4981, %v5008
    %v5010 = vmul.f32 %v5007, %v5008
    %v5011 = vmul.f32 %v5009, %v5009
    %v5012 = vsub.f32 %v5010, %v5011
    %v5013 = vmax.f32 %v5012, 0.0
    %v5014 = vld [vmem:[%s8] sm:$0x1]
    %v5015 = vadd.f32 %v5013, 1e-05
    %v5016 = vrsqrt.pop %v5015
    %v5017 = vmul.f32 %v5014, %v5016
    %v5018 = vld [vmem:[%s9] sm:$0x1]
    %v5019 = vmul.f32 %v5009, %v5017
    %v5020 = vsub.f32 %v5018, %v5019
    %v5022 = vlaneseq
    %v5023 = vshrl.u32 %v5022, 7
    %v5024 = vsub.s32 0, %v5023
    %v5025 = vrot.slane %v5017, %v5024
    %v5027 = vmul.f32 %v4933, %v5025
    %v5028 = vmul.f32 %v4936, %v5025
    %v5029 = vmul.f32 %v4941, %v5025
    %v5030 = vmul.f32 %v4944, %v5025
    %v5031 = vmul.f32 %v4949, %v5025
    %v5032 = vmul.f32 %v4952, %v5025
    %v5033 = vmul.f32 %v4957, %v5025
    %v5035 = vlaneseq
    %v5036 = vshrl.u32 %v5035, 7
    %v5037 = vsub.s32 0, %v5036
    %v5038 = vrot.slane %v5020, %v5037
    %v5040 = vadd.f32 %v5027, %v5038
    %v5041 = vadd.f32 %v5028, %v5038
    %v5042 = vadd.f32 %v5029, %v5038
    %v5043 = vadd.f32 %v5030, %v5038
    %v5044 = vadd.f32 %v5031, %v5038
    %v5045 = vadd.f32 %v5032, %v5038
    %v5046 = vadd.f32 %v5033, %v5038
    %v5047 = vmax.f32 %v5040, 0.0
    %v5048 = vmax.f32 %v5041, 0.0
    %v5049 = vmax.f32 %v5042, 0.0
    %v5050 = vmax.f32 %v5043, 0.0
    %v5051 = vmax.f32 %v5044, 0.0
    %v5052 = vmax.f32 %v5045, 0.0
    %v5053 = vmax.f32 %v5046, 0.0
    %5054 = vst.msk [vmem:[#allocation7] sm:$0xff] %vm4962, %v5047
    %5055 = vst.msk [vmem:[#allocation7 + $0x8] sm:$0xff] %vm4962, %v5048
    %5056 = vst.msk [vmem:[#allocation7 + $0x10] sm:$0xff] %vm4962, %v5049
    %5057 = vst.msk [vmem:[#allocation7 + $0x18] sm:$0xff] %vm4962, %v5050
    %5058 = vst.msk [vmem:[#allocation7 + $0x20] sm:$0xff] %vm4962, %v5051
    %5059 = vst.msk [vmem:[#allocation7 + $0x28] sm:$0xff] %vm4962, %v5052
    %5060 = vst.msk [vmem:[#allocation7 + $0x30] sm:$0xff] %vm4962, %v5053
    %v5061 = vld [vmem:[#allocation7] ss:$4 sm:$0x7f]
    %s5062 = scalar_lea.vmem [#allocation7], 1
    %v5063 = vld [vmem:[%s5062] ss:$4 sm:$0x7f]
    %v5064 = vmax.f32 %v5061, %v5063
    %s5065 = scalar_lea.vmem [#allocation7], 2
    %v5066 = vld [vmem:[%s5065] ss:$4 sm:$0x7f]
    %v5067 = vmax.f32 %v5064, %v5066
    %s5068 = scalar_lea.vmem [#allocation7], 3
    %v5069 = vld [vmem:[%s5068] ss:$4 sm:$0x7f]
    %v5070 = vmax.f32 %v5067, %v5069
    %v5071 = vpack.c.bf16 %v5070, %v5070
    %vm5072 = vcmask 519168
    %vm5073 = vmand %vm5072, %vm2960
    %v5074 = vld [vmem:[#allocation8] sm:$0xf]
    %v5075 = vsel %vm5073, %v5071, %v5074
    %5076 = vst [vmem:[#allocation8] sm:$0xf] %v5075
    %s5077 = scalar_lea.vmem [#allocation7], 28
    %v5078 = vld [vmem:[%s5077] ss:$4 sm:$0x7f]
    %s5079 = scalar_lea.vmem [#allocation7], 29
    %v5080 = vld [vmem:[%s5079] ss:$4 sm:$0x7f]
    %v5081 = vmax.f32 %v5078, %v5080
    %s5082 = scalar_lea.vmem [#allocation7], 30
    %v5083 = vld [vmem:[%s5082] ss:$4 sm:$0x7f]
    %v5084 = vmax.f32 %v5081, %v5083
    %s5085 = scalar_lea.vmem [#allocation7], 31
    %v5086 = vld [vmem:[%s5085] ss:$4 sm:$0x7f]
    %v5087 = vmax.f32 %v5084, %v5086
    %v5088 = vpack.c.bf16 %v5087, %v5087
    %s5089 = scalar_lea.vmem [#allocation8], 4
    %v5090 = vld [vmem:[%s5089] sm:$0xf]
    %v5091 = vsel %vm5073, %v5088, %v5090
    %5092 = vst [vmem:[%s5089] sm:$0xf] %v5091
    %v5093 = vld [vmem:[#allocation8] sm:$0x7]
    %vm5094 = vcmask 518144
    %vm5095 = vsmask.f32 2304
    %vm5096 = vmand %vm5094, %vm5095
    %v5097 = vld [vmem:[#allocation4] sm:$0x7]
    %v5098 = vsel %vm5096, %v5093, %v5097
    %5099 = vst [vmem:[#allocation4] sm:$0x7] %v5098
    %v5100 = vld [vmem:[#allocation8] sm:$0x7]
    %v5102 = vshrl.u32 %v5100, 16
    %v5104 = vrot.slane %v5102, 4
    %v5105 = vshll.u32 %v5100, 16
    %v5107 = vrot.slane %v5105, 5
    %v5108 = vor.u32 %v5104, %v5107
    %v5109 = vrot.slane %v5108, 4
    %5110 = vrot.lane.b32.xlu0 %v5109, 64
    %v5111 = vpop.permute.xlu0 %5110
    %vm5113 = vcmask 1042944
    %vm5114 = vmand %vm5113, %vm5095
    %v5115 = vld [vmem:[#allocation4] sm:$0x7]
    %v5116 = vsel %vm5114, %v5111, %v5115
    %5117 = vst [vmem:[#allocation4] sm:$0x7] %v5116
    %v5118 = vld [vmem:[#allocation8] sm:$0xe]
    %v5120 = vrot.slane %v5118, 5
    %v5121 = vrot.slane %v5120, 4
    %v5123 = vld [vmem:[#allocation4 + $0x4] sm:$0x7]
    %v5124 = vsel %vm5096, %v5121, %v5123
    %5125 = vst [vmem:[#allocation4 + $0x4] sm:$0x7] %v5124
    %v5126 = vld [vmem:[%s5089] sm:$0x7]
    %v5128 = vshrl.u32 %v5126, 16
    %v5130 = vrot.slane %v5128, 5
    %v5131 = vshll.u32 %v5126, 16
    %v5133 = vrot.slane %v5131, 6
    %v5134 = vor.u32 %v5130, %v5133
    %v5135 = vrot.slane %v5134, 4
    %vm5138 = vcmask 519170
    %vm5139 = vsmask.f32 7946
    %vm5140 = vmand %vm5138, %vm5139
    %v5141 = vld [vmem:[#allocation4] sm:$0xc]
    %v5142 = vsel %vm5140, %v5134, %v5141
    %5143 = vst [vmem:[#allocation4] sm:$0xc] %v5142
    %vm5144 = vcmask 516096
    %5145 = vst.msk [vmem:[#allocation4 + $0x8] sm:$0x1] %vm5144, %v5135
    %v5146 = vld [vmem:[%s5089] sm:$0x7]
    %v5148 = vrot.slane %v5146, 6
    %v5149 = vrot.slane %v5148, 4
    %5150 = vrot.lane.b32.xlu0 %v5148, 64
    %v5151 = vpop.permute.xlu0 %5150
    %5152 = vrot.lane.b32.xlu0 %v5149, 64
    %v5153 = vpop.permute.xlu0 %5152
    %vm5156 = vcmask 1043970
    %vm5157 = vmand %vm5156, %vm5139
    %v5158 = vld [vmem:[#allocation4] sm:$0xc]
    %v5159 = vsel %vm5157, %v5151, %v5158
    %5160 = vst [vmem:[#allocation4] sm:$0xc] %v5159
    %vm5161 = vcmask 1040896
    %5162 = vst.msk [vmem:[#allocation4 + $0x8] sm:$0x1] %vm5161, %v5153
    %v5163 = vld [vmem:[%s5089] sm:$0xe]
    %v5165 = vshrl.u32 %v5163, 16
    %v5167 = vrot.slane %v5165, 6
    %v5168 = vshll.u32 %v5163, 16
    %v5170 = vrot.slane %v5168, 7
    %v5171 = vor.u32 %v5167, %v5170
    %v5172 = vrot.slane %v5171, 4
    %v5175 = vld [vmem:[#allocation4 + $0x4] sm:$0xc]
    %v5176 = vsel %vm5140, %v5171, %v5175
    %5177 = vst [vmem:[#allocation4 + $0x4] sm:$0xc] %v5176
    %5178 = vst.msk [vmem:[#allocation4 + $0xc] sm:$0x1] %vm5144, %v5172
    %v5179 = vld [vmem:[#allocation4] sm:$0xff]
    %v5180 = vld [vmem:[#allocation4 + $0x8] sm:$0x11]
    %v5181 = vld [vmem:[%s10] sm:$0xf]
    %v5182 = vld [vmem:[%s10 + $0x4] sm:$0xf]
    %v5183 = vld [vmem:[%s10 + $0x8] sm:$0xf]
    %v5184 = vld [vmem:[%s10 + $0xc] sm:$0xf]
    %v5185 = vld [vmem:[%s10 + $0x10] sm:$0xf]
    %v5186 = vld [vmem:[%s10 + $0x14] sm:$0xf]
    %v5187 = vld [vmem:[%s10 + $0x18] sm:$0xf]
    %v5188 = vld [vmem:[%s10 + $0x1c] sm:$0xf]
    %v5189 = vld [vmem:[%s10 + $0x20] sm:$0xf]
    %v5190 = vld [vmem:[%s10 + $0x24] sm:$0xf]
    %v5191 = vld [vmem:[%s10 + $0x28] sm:$0xf]
    %v5192 = vld [vmem:[%s10 + $0x2c] sm:$0xf]
    %v5193 = vld [vmem:[%s10 + $0x30] sm:$0xf]
    %v5194 = vld [vmem:[%s10 + $0x34] sm:$0xf]
    %v5195 = vld [vmem:[%s10 + $0x38] sm:$0xf]
    %v5196 = vld [vmem:[%s10 + $0x3c] sm:$0xf]
    %v5197 = vld [vmem:[%s10 + $0x40] sm:$0xf]
    %v5198 = vld [vmem:[%s10 + $0x44] sm:$0xf]
    %v5199 = vld [vmem:[%s10 + $0x48] sm:$0xf]
    %v5200 = vld [vmem:[%s10 + $0x4c] sm:$0xf]
    %v5201 = vld [vmem:[%s10 + $0x50] sm:$0xf]
    %v5202 = vld [vmem:[%s10 + $0x54] sm:$0xf]
    %v5203 = vld [vmem:[%s10 + $0x58] sm:$0xf]
    %v5204 = vld [vmem:[%s10 + $0x5c] sm:$0xf]
    %v5207 = vunpack.c.l.b16 %v5179
    %v5208 = vunpack.c.h.b16 %v5179
    %v5209 = vunpack.c.l.b16 %v5180
    %v5210 = vunpack.c.h.b16 %v5180
    %v5211 = vpack.c.b16 %v5209, %v5207
    %v5212 = vpack.c.b16 %v5210, %v5208
    %v5238 = vunpack.c.l.b16 %v5181
    %v5239 = vunpack.c.l.b16 %v5182
    %v5240 = vunpack.c.l.b16 %v5183
    %v5241 = vunpack.c.l.b16 %v5184
    %v5242 = vunpack.c.l.b16 %v5185
    %v5243 = vunpack.c.l.b16 %v5186
    %v5244 = vunpack.c.l.b16 %v5187
    %v5245 = vunpack.c.l.b16 %v5188
    %v5246 = vunpack.c.l.b16 %v5189
    %v5247 = vunpack.c.l.b16 %v5190
    %v5248 = vunpack.c.l.b16 %v5191
    %v5249 = vunpack.c.l.b16 %v5192
    %v5250 = vunpack.c.l.b16 %v5193
    %v5251 = vunpack.c.l.b16 %v5194
    %v5252 = vunpack.c.l.b16 %v5195
    %v5253 = vunpack.c.l.b16 %v5196
    %v5254 = vunpack.c.l.b16 %v5197
    %v5255 = vunpack.c.l.b16 %v5198
    %v5256 = vunpack.c.l.b16 %v5199
    %v5257 = vunpack.c.l.b16 %v5200
    %v5258 = vunpack.c.l.b16 %v5201
    %v5259 = vunpack.c.l.b16 %v5202
    %v5260 = vunpack.c.l.b16 %v5203
    %v5261 = vunpack.c.l.b16 %v5204
    %v5262 = vpack.c.b16 %v5239, %v5238
    %v5263 = vpack.c.b16 %v5241, %v5240
    %v5264 = vpack.c.b16 %v5243, %v5242
    %v5265 = vpack.c.b16 %v5245, %v5244
    %v5266 = vpack.c.b16 %v5247, %v5246
    %v5267 = vpack.c.b16 %v5249, %v5248
    %v5268 = vpack.c.b16 %v5251, %v5250
    %v5269 = vpack.c.b16 %v5253, %v5252
    %v5270 = vpack.c.b16 %v5255, %v5254
    %v5271 = vpack.c.b16 %v5257, %v5256
    %v5272 = vpack.c.b16 %v5259, %v5258
    %v5273 = vpack.c.b16 %v5261, %v5260
    %v5287 = vsel %vm4962, %v5212, 0
    %5289 = vmatprep.subr.bf16.mxu0 0
    %5290 = vmatpush1.bf16.msra.mxu0 %v5262
    %5291 = vmatprep.subr.bf16.mxu0 0
    %5292 = vmatpush1.bf16.msra.mxu0 %v5263
    %5293 = vmatprep.subr.bf16.mxu0 0
    %5294 = vmatpush1.bf16.msra.mxu0 %v5264
    %5295 = vmatprep.subr.bf16.mxu0 0
    %5296 = vmatpush1.bf16.msra.mxu0 %v5265
    %5297 = vmatprep.subr.bf16.mxu0 0
    %5298 = vmatpush1.bf16.msra.mxu0 %v5266
    %5299 = vmatprep.subr.bf16.mxu0 0
    %5300 = vmatpush1.bf16.msra.mxu0 %v5267
    %5301 = vmatprep.subr.bf16.mxu0 0
    %5302 = vmatpush1.bf16.msra.mxu0 %v5268
    %5303 = vmatprep.subr.bf16.mxu0 0
    %5304 = vmatpush1.bf16.msra.mxu0 %v5269
    %5305 = vmatprep.subr.bf16.mxu0 0
    %5306 = vmatpush1.bf16.msra.mxu0 %v5270
    %5307 = vmatprep.subr.bf16.mxu0 0
    %5308 = vmatpush1.bf16.msra.mxu0 %v5271
    %5309 = vmatprep.subr.bf16.mxu0 0
    %5310 = vmatpush1.bf16.msra.mxu0 %v5272
    %5311 = vmatprep.subr.bf16.mxu0 0
    %5312 = vmatpush1.bf16.msra.mxu0 %v5273
    %5313 = vmatprep.subr.bf16.mxu0 0
    %5314 = vmatpush1.bf16.msra.mxu0 0
    %5315 = vmatprep.subr.bf16.mxu0 0
    %5316 = vmatpush1.bf16.msra.mxu0 0
    %5317 = vmatprep.subr.bf16.mxu0 0
    %5318 = vmatpush1.bf16.msra.mxu0 0
    %5319 = vmatprep.subr.bf16.mxu0 0
    %5320 = vmatpush1.bf16.msra.mxu0 0
    %5321 = vmatprep.mubr.bf16.mxu0 %v5287
    %5322 = vmatmul.mubr.bf16.gmra.mrb[0].mxu0 %v5211
    %v5323 = vpop.f32.mrb[0].mxu0
    %v5324 = vadd.f32 0.0, %v5323
    %v5325 = vpop.f32.mrb[0].mxu0
    %v5326 = vpop.f32.mrb[0].mxu0
    %v5327 = vadd.f32 0.0, %v5326
    %v5328 = vpop.f32.mrb[0].mxu0
    %5329 = vdwg.mxu0
    %v5330 = vsel %vm4962, %v5324, 0.0
    %vm5331 = vcmask 517120
    %v5332 = vsel %vm5331, %v5327, 0.0
    %v5333 = vadd.f32 %v5330, %v5332
    %v5334 = vrot.slane %v5333, 4
    %v5335 = vadd.f32 %v5333, %v5334
    %v5336 = vrot.slane %v5335, 2
    %v5337 = vadd.f32 %v5335, %v5336
    %v5338 = vrot.slane %v5337, 1
    %v5339 = vadd.f32 %v5337, %v5338
    %v5340 = vmul.f32 %v5324, %v5324
    %v5341 = vmul.f32 %v5327, %v5327
    %v5342 = vsel %vm4962, %v5340, 0.0
    %v5343 = vsel %vm5331, %v5341, 0.0
    %v5344 = vadd.f32 %v5342, %v5343
    %v5345 = vrot.slane %v5344, 4
    %v5346 = vadd.f32 %v5344, %v5345
    %v5347 = vrot.slane %v5346, 2
    %v5348 = vadd.f32 %v5346, %v5347
    %v5349 = vrot.slane %v5348, 1
    %v5350 = vadd.f32 %v5348, %v5349
    %v5351 = vrcp.pop 10.0
    %v5352 = vmul.f32 %v5339, %v5351
    %v5353 = vmul.f32 %v5350, %v5351
    %v5354 = vmul.f32 %v5352, %v5352
    %v5355 = vsub.f32 %v5353, %v5354
    %v5356 = vmax.f32 %v5355, 0.0
    %v5357 = vld [vmem:[%s11] sm:$0x1]
    %v5358 = vadd.f32 %v5356, 1e-05
    %v5359 = vrsqrt.pop %v5358
    %v5360 = vmul.f32 %v5357, %v5359
    %v5361 = vld [vmem:[%s12] sm:$0x1]
    %v5362 = vmul.f32 %v5352, %v5360
    %v5363 = vsub.f32 %v5361, %v5362
    %v5365 = vlaneseq
    %v5366 = vshrl.u32 %v5365, 7
    %v5367 = vsub.s32 0, %v5366
    %v5368 = vrot.slane %v5360, %v5367
    %v5370 = vmul.f32 %v5324, %v5368
    %v5371 = vmul.f32 %v5327, %v5368
    %v5373 = vlaneseq
    %v5374 = vshrl.u32 %v5373, 7
    %v5375 = vsub.s32 0, %v5374
    %v5376 = vrot.slane %v5363, %v5375
    %v5378 = vadd.f32 %v5370, %v5376
    %v5379 = vadd.f32 %v5371, %v5376
    %v5380 = vmax.f32 %v5378, 0.0
    %v5381 = vmax.f32 %v5379, 0.0
    %5382 = vst.msk [vmem:[#allocation9] sm:$0xff] %vm4962, %v5380
    %5383 = vst.msk [vmem:[#allocation9 + $0x8] sm:$0x3] %vm5331, %v5381
    %v5384 = vld [vmem:[#allocation9] ss:$4 sm:$0x1]
    %s5385 = scalar_lea.vmem [#allocation9], 1
    %v5386 = vld [vmem:[%s5385] ss:$4 sm:$0x1]
    %v5387 = vmax.f32 %v5384, %v5386
    %s5388 = scalar_lea.vmem [#allocation9], 2
    %v5389 = vld [vmem:[%s5388] ss:$4 sm:$0x1]
    %v5390 = vmax.f32 %v5387, %v5389
    %s5391 = scalar_lea.vmem [#allocation9], 3
    %v5392 = vld [vmem:[%s5391] ss:$4 sm:$0x1]
    %v5393 = vmax.f32 %v5390, %v5392
    %v5394 = vadd.f32 %v5393, 0.0
    %5395 = vst.msk [vmem:[#allocation10] sm:$0x1] %vm5144, %v5394
    %s5396 = scalar_lea.vmem [#allocation9], 5
    %v5397 = vld [vmem:[%s5396] ss:$4 sm:$0x1]
    %s5398 = scalar_lea.vmem [#allocation9], 6
    %v5399 = vld [vmem:[%s5398] ss:$4 sm:$0x1]
    %v5400 = vmax.f32 %v5397, %v5399
    %s5401 = scalar_lea.vmem [#allocation9], 7
    %v5402 = vld [vmem:[%s5401] ss:$4 sm:$0x1]
    %v5403 = vmax.f32 %v5400, %v5402
    %s5404 = scalar_lea.vmem [#allocation9], 8
    %v5405 = vld [vmem:[%s5404] ss:$4 sm:$0x1]
    %v5406 = vmax.f32 %v5403, %v5405
    %v5407 = vadd.f32 %v5406, 0.0
    %5408 = vst.msk [vmem:[#allocation10 + $0x1] sm:$0x1] %vm5144, %v5407
    %v5409 = vld [vmem:[#allocation10] sm:$0x3]
    %v5410 = vld [vmem:[%s13] sm:$0xff]
    %v5411 = vld [vmem:[%s13 + $0x8] sm:$0xff]
    %v5412 = vld [vmem:[%s13 + $0x10] sm:$0xff]
    %v5413 = vld [vmem:[%s13 + $0x18] sm:$0xff]
    %v5414 = vld [vmem:[%s13 + $0x20] sm:$0xff]
    %v5415 = vld [vmem:[%s13 + $0x28] sm:$0xff]
    %v5416 = vld [vmem:[%s13 + $0x30] sm:$0xff]
    %v5417 = vld [vmem:[%s13 + $0x38] sm:$0xff]
    %v5418 = vld [vmem:[%s14] sm:$0x1]
    %v5420 = vlaneseq
    %v5421 = vshrl.u32 %v5420, 7
    %v5422 = vsub.s32 0, %v5421
    %v5423 = vrot.slane %v5418, %v5422
    %v5426 = vsel %vm4962, %v5409, 0
    %5428 = vmatprep.subr.mxu0 0.0
    %5429 = vmatpush1.msra.mxu0 %v5410
    %5430 = vmatprep.subr.mxu0 0.0
    %5431 = vmatpush1.msra.mxu0 %v5411
    %5432 = vmatprep.subr.mxu0 0.0
    %5433 = vmatpush1.msra.mxu0 %v5412
    %5434 = vmatprep.subr.mxu0 0.0
    %5435 = vmatpush1.msra.mxu0 %v5413
    %5436 = vmatprep.subr.mxu0 0.0
    %5437 = vmatpush1.msra.mxu0 %v5414
    %5438 = vmatprep.subr.mxu0 0.0
    %5439 = vmatpush1.msra.mxu0 %v5415
    %5440 = vmatprep.subr.mxu0 0.0
    %5441 = vmatpush1.msra.mxu0 %v5416
    %5442 = vmatprep.subr.mxu0 0.0
    %5443 = vmatpush1.msra.mxu0 %v5417
    %5444 = vmatprep.subr.mxu0 0.0
    %5445 = vmatpush1.msra.mxu0 0.0
    %5446 = vmatprep.subr.mxu0 0.0
    %5447 = vmatpush1.msra.mxu0 0.0
    %5448 = vmatprep.subr.mxu0 0.0
    %5449 = vmatpush1.msra.mxu0 0.0
    %5450 = vmatprep.subr.mxu0 0.0
    %5451 = vmatpush1.msra.mxu0 0.0
    %5452 = vmatprep.subr.mxu0 0.0
    %5453 = vmatpush1.msra.mxu0 0.0
    %5454 = vmatprep.subr.mxu0 0.0
    %5455 = vmatpush1.msra.mxu0 0.0
    %5456 = vmatprep.subr.mxu0 0.0
    %5457 = vmatpush1.msra.mxu0 0.0
    %5458 = vmatprep.subr.mxu0 0.0
    %5459 = vmatpush1.msra.mxu0 0.0
    %5460 = vmatprep.subr.mxu0 0.0
    %5461 = vmatpush1.msra.mxu0 0.0
    %5462 = vmatprep.subr.mxu0 0.0
    %5463 = vmatpush1.msra.mxu0 0.0
    %5464 = vmatprep.subr.mxu0 0.0
    %5465 = vmatpush1.msra.mxu0 0.0
    %5466 = vmatprep.subr.mxu0 0.0
    %5467 = vmatpush1.msra.mxu0 0.0
    %5468 = vmatprep.subr.mxu0 0.0
    %5469 = vmatpush1.msra.mxu0 0.0
    %5470 = vmatprep.subr.mxu0 0.0
    %5471 = vmatpush1.msra.mxu0 0.0
    %5472 = vmatprep.subr.mxu0 0.0
    %5473 = vmatpush1.msra.mxu0 0.0
    %5474 = vmatprep.subr.mxu0 0.0
    %5475 = vmatpush1.msra.mxu0 0.0
    %5476 = vmatprep.subr.mxu0 0.0
    %5477 = vmatpush1.msra.mxu0 0.0
    %5478 = vmatprep.subr.mxu0 0.0
    %5479 = vmatpush1.msra.mxu0 0.0
    %5480 = vmatprep.subr.mxu0 0.0
    %5481 = vmatpush1.msra.mxu0 0.0
    %5482 = vmatprep.subr.mxu0 0.0
    %5483 = vmatpush1.msra.mxu0 0.0
    %5484 = vmatprep.subr.mxu0 0.0
    %5485 = vmatpush1.msra.mxu0 0.0
    %5486 = vmatprep.subr.mxu0 0.0
    %5487 = vmatpush1.msra.mxu0 0.0
    %5488 = vmatprep.subr.mxu0 0.0
    %5489 = vmatpush1.msra.mxu0 0.0
    %5490 = vmatprep.subr.mxu0 0.0
    %5491 = vmatpush1.msra.mxu0 0.0
    %5492 = vmatprep.mubr.f32.mxu0 0.0
    %5493 = vmatmul.mubr.f32.gmra.mrb[0].mxu0 %v5426
    %v5494 = vpop.f32.mrb[0].mxu0
    %v5495 = vadd.f32 %v5423, %v5494
    %v5496 = vpop.f32.mrb[0].mxu0
    %5497 = vdwg.mxu0
    %vm5498 = vcmask 279552
    %v5499 = vsel %vm5498, %v5495, -inf
    %5500 = vmax.xlane.f32.xlu0 %v5499
    %v5501 = vpop.xlane.xlu0 %5500
    %v5502 = vsub.f32 %v5495, %v5501
    %v5503 = vmul.f32 %v5502, 1.442695
    %v5504 = vpow.pop %v5503
    %v5505 = vsel %vm5498, %v5504, 0.0
    %5506 = vadd.xlane.f32.xlu0 %v5505
    %v5507 = vpop.xlane.xlu0 %5506
    %v5508 = vlog2.pop %v5507
    %v5509 = vmul.f32 %v5508, 0.6931472
    %v5510 = vadd.f32 %v5501, %v5509
    %v5511 = vsub.f32 %v5495, %v5510
    %5512 = vst.msk [vmem:[#allocation12] sm:$0x3] %vm5498, %v5511
    // Predicated region
    $region62: #{audio_cnn_forward.1} parent=1 // pred_check
      _
    $region63: #{audio_cnn_forward.1} parent=1 // pred_check_branch
      %5514 = sbr.rel (0) target = $region65
    $region64: #{audio_cnn_forward.1} parent=1 // pred_region
      %s5516 = ssub.s32 32, 32
      %5517 = vsyncadd [#allocation11], %s5516
      %s5519 = sshll.u32 [#allocation10], 4
      %s5520 = int_to_ptr.vmem [resolvable:$true] %s5519
      %5522 = dma.vmem_to_hbm [thread:$0]  %s5520, 32, %s15, [#allocation11]
    $region65: #{audio_cnn_forward.1} parent=1 // pred_fallthru
      _
    // Predicated region
    $region66: #{audio_cnn_forward.1} parent=1 // pred_check
      _
    $region67: #{audio_cnn_forward.1} parent=1 // pred_check_branch
      %5524 = sbr.rel (0) target = $region69
    $region68: #{audio_cnn_forward.1} parent=1 // pred_region
      %s5526 = ssub.s32 32, 32
      %5527 = vsyncadd [#allocation13], %s5526
      %s5529 = sshll.u32 [#allocation12], 4
      %s5530 = int_to_ptr.vmem [resolvable:$true] %s5529
      %5532 = dma.vmem_to_hbm [thread:$0]  %s5530, 32, %s16, [#allocation13]
    $region69: #{audio_cnn_forward.1} parent=1 // pred_fallthru
      _
    // Predicated region
    $region70: #{audio_cnn_forward.1} parent=1 // pred_check
      _
    $region71: #{audio_cnn_forward.1} parent=1 // pred_check_branch
      %5534 = sbr.rel (0) target = $region73
    $region72: #{audio_cnn_forward.1} parent=1 // pred_region
      %5535 = dma.done [#allocation11], 32
    $region73: #{audio_cnn_forward.1} parent=1 // pred_fallthru
      _
    // Predicated region
    $region74: #{audio_cnn_forward.1} parent=1 // pred_check
      _
    $region75: #{audio_cnn_forward.1} parent=1 // pred_check_branch
      %5537 = sbr.rel (0) target = $region77
    $region76: #{audio_cnn_forward.1} parent=1 // pred_region
      %5538 = dma.done [#allocation13], 32
    $region77: #{audio_cnn_forward.1} parent=1 // pred_fallthru
      _
    %5539 = vsyncpa [#allocation11], 1
    %5540 = vsyncpa [#allocation13], 1

</llo_original>
